<compile_context>
chip_gen: v7x
topology: tpu7x:2x2x1
jax: 0.10.0
libtpu: 0.0.40
codegen_flags: <defaults>
</compile_context>

<pallas_src>
import math

import jax
import jax.numpy as jnp
from jax.experimental import pallas as pl
from jax.experimental.pallas import tpu as pltpu

# ------------------------------ model config ---------------------------------
D = 32            # encoder_embed_dim
H = 4             # encoder_attention_heads
HD = D // H       # head dim
L = 2             # encoder_layers
DFF = 64          # encoder_ffn_embed_dim
IMG = 16          # img_size
PATCH = 8         # patch_size
CHANS = 3         # in_chans
N_PATCH = (IMG // PATCH) ** 2       # 4
VIS_SEQ = N_PATCH + 1               # cls + patches = 5
VIS_POS = N_PATCH + 1 + 2           # vision positional table size = 7
VOCAB = 64
MAX_TEXT_POS = 16                   # max_source_positions
B = 2
TXT_LEN = 8
S_MAX = max(VIS_SEQ, TXT_LEN)       # common padded sequence length = 8
CPP = CHANS * PATCH * PATCH         # 192
BS = B * S_MAX                      # 16
HB = H * B                          # 8   (head-major batched attention)
LN_EPS = 1e-5
NEG_BIAS = -1e9                     # finite stand-in for masked_fill(-inf)

assert TXT_LEN == S_MAX, "kernel assumes text tokens already at the padded length"


# ----------------------------- in-kernel helpers ------------------------------
def _ln(x, w, b, eps=LN_EPS):
    mu = jnp.mean(x, axis=-1, keepdims=True)
    xc = x - mu
    var = jnp.mean(xc * xc, axis=-1, keepdims=True)
    return xc * jax.lax.rsqrt(var + eps) * w + b


def _erf(x):
    # Abramowitz & Stegun 7.1.26 rational approximation (|err| < 1.5e-7):
    # keeps torch.nn.functional.gelu's exact-erf semantics within f32 noise while
    # using only ops with guaranteed Mosaic lowering (exp / where / div).
    p = 0.3275911
    a1, a2, a3, a4, a5 = 0.254829592, -0.284496736, 1.421413741, -1.453152027, 1.061405429
    ax = jnp.abs(x)
    t = 1.0 / (1.0 + p * ax)
    poly = ((((a5 * t + a4) * t + a3) * t + a2) * t + a1) * t
    y = 1.0 - poly * jnp.exp(-(ax * ax))
    return jnp.where(x >= 0.0, y, -y)


def _gelu(x):
    return 0.5 * x * (1.0 + _erf(x * (1.0 / math.sqrt(2.0))))


def _mm(x, w):
    # (M,K) @ (K,N); packed weights are pre-transposed so no in-kernel RHS relayout.
    # Default MXU precision (bf16 multiplicands, f32 accumulate) is an explicit,
    # accepted numerics choice for this retrieval head.
    return jnp.dot(x, w, preferred_element_type=jnp.float32)


# ----------------------------- the fused kernel -------------------------------
def beit3_fused_kernel(patches_ref, convw_ref, vissm_ref,
                       tokids_ref, tokemb_ref, txtmask_ref,
                       pos_ref, wqkv_ref, wout_ref, vecd_ref, vecff_ref,
                       fc1w_ref, fc2w_ref, fln_ref, headw_ref,
                       out_ref, x_scr):
    f32 = jnp.float32
    m = pl.program_id(0)                      # 0 == vision (branch A), 1 == text (branch B)

    # ---------------- modality embedding -> x_scr (one full-tile store each) ----
    @pl.when(m == 0)
    def _vision_embed():
        # non-overlapping conv == im2col patches @ conv_w (pre-transposed) + b
        pe = _mm(patches_ref[...], convw_ref[...]) + vissm_ref[0:1, :]           # (B*N, D)
        cls_tok = jnp.broadcast_to(vissm_ref[1:2, :].reshape(1, 1, D), (B, 1, D))
        pad = jnp.zeros((B, S_MAX - VIS_SEQ, D), f32)
        x_scr[...] = jnp.concatenate([cls_tok, pe.reshape(B, N_PATCH, D), pad], axis=1)

    @pl.when(m == 1)
    def _text_embed():
        # embedding gather done as a one-hot matmul on the MXU (exact)
        ids = tokids_ref[...]                                                    # (BS, 1)
        onehot = (jax.lax.broadcasted_iota(jnp.int32, (BS, VOCAB), 1) == ids).astype(f32)
        x_scr[...] = _mm(onehot, tokemb_ref[...]).reshape(B, S_MAX, D)

    # ---------------- shared prologue (mask computed inline, no mask scratch) ---
    is_vis = (m == 0).astype(f32)
    vis_mask = (jax.lax.broadcasted_iota(jnp.int32, (B, S_MAX), 1) >= VIS_SEQ).astype(f32)
    mask = is_vis * vis_mask + (1.0 - is_vis) * txtmask_ref[...]                 # 1.0 == pad
    pos = pos_ref[0]                                                             # (S_MAX, D)
    x0 = (x_scr[...] + pos[None, :, :]) * (1.0 - mask)[:, :, None]
    xf = x0.reshape(BS, D)
    key_bias = (mask * f32(NEG_BIAS))[:, None, :]                                # (B, 1, S)
    key_bias_h = jnp.concatenate([key_bias] * H, axis=0)                         # (H*B, 1, S)
    scaling = HD ** -0.5

    # ---------------- encoder layers (unrolled, L=2) ----------------------------
    for l in range(L):
        vd = vecd_ref[0, l]    # (11, D):  ln1 w/b, bq, bk, bv, bo, inn w/b, ln2 w/b, fc2_b
        vf = vecff_ref[0, l]   # (3, DFF): fc1_b, ffn_ln w, ffn_ln b

        # ----- self-attention: pre-LN, fused QKV, heads batched on leading dim ---
        h = _ln(xf, vd[0:1], vd[1:2])                                            # (BS, D)
        qkv = _mm(h, wqkv_ref[0, l])                                             # (BS, 3D)
        q = (qkv[:, 0:D] + vd[2:3]) * scaling
        k = qkv[:, D:2 * D] + vd[3:4]
        v = qkv[:, 2 * D:3 * D] + vd[4:5]
        q3 = q.reshape(B, S_MAX, D)
        k3 = k.reshape(B, S_MAX, D)
        v3 = v.reshape(B, S_MAX, D)
        # re-stack heads into the batch dim: index = h*B + b, shape (H*B, S, HD)
        qh = jnp.concatenate([q3[:, :, hh * HD:(hh + 1) * HD] for hh in range(H)], axis=0)
        kh = jnp.concatenate([k3[:, :, hh * HD:(hh + 1) * HD] for hh in range(H)], axis=0)
        vh = jnp.concatenate([v3[:, :, hh * HD:(hh + 1) * HD] for hh in range(H)], axis=0)
        s = jax.lax.dot_general(qh, kh, (((2,), (2,)), ((0,), (0,))),
                                preferred_element_type=jnp.float32) + key_bias_h  # (HB,S,S)
        mx = jnp.max(s, axis=-1, keepdims=True)
        e = jnp.exp(s - mx)
        p = e * pl.reciprocal(jnp.sum(e, axis=-1, keepdims=True), approx=True)
        o = jax.lax.dot_general(p, vh, (((2,), (1,)), ((0,), (0,))),
                                preferred_element_type=jnp.float32)               # (HB,S,HD)
        ctx = jnp.concatenate([o[hh * B:(hh + 1) * B] for hh in range(H)], axis=-1)  # (B,S,D)
        a2 = _ln(ctx.reshape(BS, D), vd[6:7], vd[7:8])      # inner_attn_ln (subln)
        a2 = _mm(a2, wout_ref[0, l]) + vd[5:6]              # out_proj
        xf = xf + a2

        # ----- FFN (pre-LN, exact-erf gelu, sub-LN ffn_layernorm) -----------------
        hf = _ln(xf, vd[8:9], vd[9:10])
        f = _gelu(_mm(hf, fc1w_ref[0, l]) + vf[0:1])
        f = _ln(f, vf[1:2], vf[2:3])                        # ffn_layernorm (subln)
        f = _mm(f, fc2w_ref[0, l]) + vd[10:11]
        xf = xf + f

    # ---------------- final encoder LN + retrieval head + L2 normalize ----------
    fln = fln_ref[0]                                        # (2, D): [weight, bias]
    xf = _ln(xf, fln[0:1], fln[1:2])
    cls_vec = xf.reshape(B, S_MAX, D)[:, 0, :]              # (B, D)
    y = _mm(cls_vec, headw_ref[0])
    nsq = jnp.sum(y * y, axis=-1, keepdims=True)
    out_ref[0] = y * jax.lax.rsqrt(jnp.maximum(nsq, jnp.float32(1e-24)))   # F.normalize


# ----------------------------- specs / wrapper --------------------------------
def _full_spec(shape):
    zero = (0,) * len(shape)
    return pl.BlockSpec(tuple(shape), lambda m, _z=zero: _z)


def _branch_spec(shape):
    rest = (0,) * (len(shape) - 1)
    return pl.BlockSpec((1,) + tuple(shape[1:]), lambda m, _r=rest: (m,) + _r)


def extract_patches(img):
    # (B, C, H, W) NCHW -> (B*N, C*P*P), matching Conv2d(D,C,P,P).flatten(2).transpose(1,2)
    Bp, C, Hh, Ww = img.shape
    gh, gw = Hh // PATCH, Ww // PATCH
    x = img.reshape(Bp, C, gh, PATCH, gw, PATCH)
    x = jnp.transpose(x, (0, 2, 4, 1, 3, 5))
    return x.reshape(Bp * gh * gw, C * PATCH * PATCH)


@jax.jit
def beit3_retrieval_forward(image, text_tokens, text_padding_mask, packed):
    """Returns (vision_cls, language_cls), both L2-normalized (only_infer=True)."""
    patches = extract_patches(image)                              # (B*N, C*P*P)
    tok_ids = text_tokens.reshape(BS, 1).astype(jnp.int32)
    txt_mask = text_padding_mask.astype(jnp.float32)              # (B, S_MAX), 1 == pad

    inputs = (patches, packed["conv_w"], packed["vis_small"],
              tok_ids, packed["tok_emb"], txt_mask,
              packed["pos"], packed["w_qkv"], packed["w_out"], packed["vec_d"],
              packed["vec_ff"], packed["fc1_w"], packed["fc2_w"], packed["fln"],
              packed["head_w"])
    n_shared = 6
    in_specs = ([_full_spec(a.shape) for a in inputs[:n_shared]]
                + [_branch_spec(a.shape) for a in inputs[n_shared:]])

    flops = int(2 * patches.size * D + 2 * BS * VOCAB * D
                + 2 * 2 * L * (BS * D * 3 * D + BS * D * D + 2 * BS * D * DFF)
                + 2 * 2 * L * HB * 2 * S_MAX * S_MAX * HD
                + 2 * 2 * B * D * D)
    transcendentals = int(2 * (L * HB * S_MAX * S_MAX + L * BS * DFF))
    bytes_accessed = int(sum(a.size * a.dtype.itemsize for a in inputs) + 2 * B * D * 4)

    out = pl.pallas_call(
        beit3_fused_kernel,
        out_shape=jax.ShapeDtypeStruct((2, B, D), jnp.float32),
        grid=(2,),
        in_specs=in_specs,
        out_specs=pl.BlockSpec((1, B, D), lambda m: (m, 0, 0)),
        scratch_shapes=[pltpu.VMEM((B, S_MAX, D), jnp.float32)],   # x_scr
        compiler_params=pltpu.CompilerParams(dimension_semantics=("parallel",)),
        cost_estimate=pl.CostEstimate(flops=flops, transcendentals=transcendentals,
                                      bytes_accessed=bytes_accessed),
    )(*inputs)
    return out[0], out[1]


# ----------------------------- deterministic params ---------------------------
def _tn(key, shape, std=0.02):
    return (std * jax.random.truncated_normal(key, -2.0, 2.0, shape)).astype(jnp.float32)


def init_encoder_branch(key):
    ks = list(jax.random.split(key, 6))
    return {
        "ln1_w": jnp.ones((L, D), jnp.float32), "ln1_b": jnp.zeros((L, D), jnp.float32),
        "wq": _tn(ks[0], (L, D, D)), "bq": jnp.zeros((L, D), jnp.float32),
        "wk": _tn(ks[1], (L, D, D)), "bk": jnp.zeros((L, D), jnp.float32),
        "wv": _tn(ks[2], (L, D, D)), "bv": jnp.zeros((L, D), jnp.float32),
        "inn_w": jnp.ones((L, D), jnp.float32), "inn_b": jnp.zeros((L, D), jnp.float32),
        "wo": _tn(ks[3], (L, D, D)), "bo": jnp.zeros((L, D), jnp.float32),
        "ln2_w": jnp.ones((L, D), jnp.float32), "ln2_b": jnp.zeros((L, D), jnp.float32),
        "fc1_w": _tn(ks[4], (L, DFF, D)), "fc1_b": jnp.zeros((L, DFF), jnp.float32),
        "ffnln_w": jnp.ones((L, DFF), jnp.float32), "ffnln_b": jnp.zeros((L, DFF), jnp.float32),
        "fc2_w": _tn(ks[5], (L, D, DFF)), "fc2_b": jnp.zeros((L, D), jnp.float32),
        "fln_w": jnp.ones((1, D), jnp.float32), "fln_b": jnp.zeros((1, D), jnp.float32),
    }


def init_params(key):
    kv, kt, k1, k2, k3, k4, k5, k6, k7 = jax.random.split(key, 9)
    vis = init_encoder_branch(kv)
    vis.update({
        "conv_w": _tn(k1, (D, CHANS, PATCH, PATCH)),
        "conv_b": jnp.zeros((D,), jnp.float32),
        "cls_token": _tn(k2, (1, 1, D)),
        "pos": _tn(k3, (VIS_POS, D)),
    })
    txt = init_encoder_branch(kt)
    txt.update({
        "tok_emb": _tn(k4, (VOCAB, D)),
        "pos": _tn(k5, (MAX_TEXT_POS, D)),
    })
    return {
        "vis": vis,
        "txt": txt,
        "vision_head_w": _tn(k6, (D, D)),
        "language_head_w": _tn(k7, (D, D)),
    }


def _pack_branch(br):
    # All weights pre-transposed to (K, N) so kernel matmuls need no RHS relayout.
    wqT = jnp.swapaxes(br["wq"], -1, -2)
    wkT = jnp.swapaxes(br["wk"], -1, -2)
    wvT = jnp.swapaxes(br["wv"], -1, -2)
    w_qkv = jnp.concatenate([wqT, wkT, wvT], axis=-1)                              # (L, D, 3D)
    w_out = jnp.swapaxes(br["wo"], -1, -2)                                         # (L, D, D)
    fc1_w = jnp.swapaxes(br["fc1_w"], -1, -2)                                      # (L, D, DFF)
    fc2_w = jnp.swapaxes(br["fc2_w"], -1, -2)                                      # (L, DFF, D)
    vec_d = jnp.stack([br["ln1_w"], br["ln1_b"], br["bq"], br["bk"], br["bv"],
                       br["bo"], br["inn_w"], br["inn_b"], br["ln2_w"], br["ln2_b"],
                       br["fc2_b"]], axis=1)                                       # (L, 11, D)
    vec_ff = jnp.stack([br["fc1_b"], br["ffnln_w"], br["ffnln_b"]], axis=1)        # (L, 3, DFF)
    fln = jnp.concatenate([br["fln_w"], br["fln_b"]], axis=0)                      # (2, D)
    return w_qkv, w_out, vec_d, vec_ff, fc1_w, fc2_w, fln


def pack_params(params):
    """One-time packing of all weights into a few branch-stacked DMA-friendly buffers."""
    vis, txt = params["vis"], params["txt"]
    pv, pt = _pack_branch(vis), _pack_branch(txt)
    names = ("w_qkv", "w_out", "vec_d", "vec_ff", "fc1_w", "fc2_w", "fln")
    packed = {n: jnp.stack([a, b], axis=0) for n, a, b in zip(names, pv, pt)}
    # positional slabs starting at offset 2 (fairseq convention), vision zero-padded to S_MAX
    pos_v = jnp.concatenate(
        [vis["pos"][2:2 + VIS_SEQ], jnp.zeros((S_MAX - VIS_SEQ, D), jnp.float32)], axis=0)
    pos_t = txt["pos"][2:2 + S_MAX]
    packed.update({
        "pos": jnp.stack([pos_v, pos_t], axis=0),                                  # (2,S_MAX,D)
        "head_w": jnp.stack([params["vision_head_w"].T,
                             params["language_head_w"].T], 0),                     # (2,D,D)
        "conv_w": vis["conv_w"].reshape(D, CPP).T,                                 # (CPP,D)
        "vis_small": jnp.stack([vis["conv_b"], vis["cls_token"].reshape(D)], 0),   # (2,D)
        "tok_emb": txt["tok_emb"],
    })
    return packed


# ----------------------------- demo -------------------------------------------
if __name__ == "__main__":
    key = jax.random.PRNGKey(0)
    k_img, k_tok, k_par = jax.random.split(key, 3)

    image = jax.random.normal(k_img, (B, CHANS, IMG, IMG), jnp.float32)      # NCHW
    text_tokens = jax.random.randint(k_tok, (B, TXT_LEN), 0, VOCAB)
    padding_mask = jnp.zeros((B, TXT_LEN), jnp.int32).at[1, -2:].set(1)      # 1 == pad

    params = init_params(k_par)
    packed = pack_params(params)                                             # one-time packing

    vision_cls, language_cls = beit3_retrieval_forward(image, text_tokens,
                                                       padding_mask, packed)
    jax.block_until_ready((vision_cls, language_cls))

    assert vision_cls.shape == (B, D) and language_cls.shape == (B, D)
    assert bool(jnp.all(jnp.isfinite(vision_cls)))
    assert bool(jnp.all(jnp.isfinite(language_cls)))
    vn = jnp.linalg.norm(vision_cls, axis=-1)
    ln = jnp.linalg.norm(language_cls, axis=-1)
    assert bool(jnp.all(jnp.abs(vn - 1.0) < 1e-2)) and bool(jnp.all(jnp.abs(ln - 1.0) < 1e-2))
    print("KERNEL_OK")
</pallas_src>

<mosaic_0001>
module attributes {stable_mosaic.version = 11 : i64} {
  func.func @beit3_fused_kernel(%arg0: i32, %arg1: memref<8x192xf32, #tpu.memory_space<vmem>>, %arg2: memref<192x32xf32, #tpu.memory_space<vmem>>, %arg3: memref<2x32xf32, #tpu.memory_space<vmem>>, %arg4: memref<16x1xi32, #tpu.memory_space<vmem>>, %arg5: memref<64x32xf32, #tpu.memory_space<vmem>>, %arg6: memref<2x8xf32, #tpu.memory_space<vmem>>, %arg7: memref<1x8x32xf32, #tpu.memory_space<vmem>>, %arg8: memref<1x2x32x96xf32, #tpu.memory_space<vmem>>, %arg9: memref<1x2x32x32xf32, #tpu.memory_space<vmem>>, %arg10: memref<1x2x11x32xf32, #tpu.memory_space<vmem>>, %arg11: memref<1x2x3x64xf32, #tpu.memory_space<vmem>>, %arg12: memref<1x2x32x64xf32, #tpu.memory_space<vmem>>, %arg13: memref<1x2x64x32xf32, #tpu.memory_space<vmem>>, %arg14: memref<1x2x32xf32, #tpu.memory_space<vmem>>, %arg15: memref<1x32x32xf32, #tpu.memory_space<vmem>>, %arg16: memref<1x2x32xf32, #tpu.memory_space<vmem>>, %arg17: memref<2x8x32xf32, #tpu.memory_space<vmem>>) attributes {dimension_semantics = [#tpu.dimension_semantics<parallel>], iteration_bounds = array<i64: 2>, scalar_prefetch = 0 : i64, scratch_operands = 1 : i64, tpu.core_type = #tpu.core_type<tc>, window_params = [{pipeline_mode = #tpu.pipeline_mode<synchronous>, transform_indices = @transform_0, window_bounds = array<i64: 8, 192>}, {pipeline_mode = #tpu.pipeline_mode<synchronous>, transform_indices = @transform_1, window_bounds = array<i64: 192, 32>}, {pipeline_mode = #tpu.pipeline_mode<synchronous>, transform_indices = @transform_2, window_bounds = array<i64: 2, 32>}, {pipeline_mode = #tpu.pipeline_mode<synchronous>, transform_indices = @transform_3, window_bounds = array<i64: 16, 1>}, {pipeline_mode = #tpu.pipeline_mode<synchronous>, transform_indices = @transform_4, window_bounds = array<i64: 64, 32>}, {pipeline_mode = #tpu.pipeline_mode<synchronous>, transform_indices = @transform_5, window_bounds = array<i64: 2, 8>}, {transform_indices = @transform_6, window_bounds = array<i64: 1, 8, 32>}, {transform_indices = @transform_7, window_bounds = array<i64: 1, 2, 32, 96>}, {transform_indices = @transform_8, window_bounds = array<i64: 1, 2, 32, 32>}, {transform_indices = @transform_9, window_bounds = array<i64: 1, 2, 11, 32>}, {transform_indices = @transform_10, window_bounds = array<i64: 1, 2, 3, 64>}, {transform_indices = @transform_11, window_bounds = array<i64: 1, 2, 32, 64>}, {transform_indices = @transform_12, window_bounds = array<i64: 1, 2, 64, 32>}, {transform_indices = @transform_13, window_bounds = array<i64: 1, 2, 32>}, {transform_indices = @transform_14, window_bounds = array<i64: 1, 32, 32>}, {transform_indices = @transform_15, window_bounds = array<i64: 1, 2, 32>}]} {
    %c0_i32 = arith.constant 0 : i32
    %0 = arith.cmpi eq, %arg0, %c0_i32 : i32
    %1 = arith.extui %0 : i1 to i32
    %c0_i32_0 = arith.constant 0 : i32
    %2 = arith.cmpi ne, %1, %c0_i32_0 : i32
    scf.if %2 {
      %c0_164 = arith.constant 0 : index
      %c0_165 = arith.constant 0 : index
      %492 = vector.load %arg1[%c0_164, %c0_165] : memref<8x192xf32, #tpu.memory_space<vmem>>, vector<8x192xf32>
      %c0_166 = arith.constant 0 : index
      %c0_167 = arith.constant 0 : index
      %493 = vector.load %arg2[%c0_166, %c0_167] : memref<192x32xf32, #tpu.memory_space<vmem>>, vector<192x32xf32>
      %cst_168 = arith.constant dense<0.000000e+00> : vector<8x32xf32>
      %494 = tpu.matmul %492, %493, %cst_168 {dimension_numbers = #tpu.dot_dimension_numbers<[1], [0], [0], [1], [0, 0, 1, 1], [], []>} : vector<8x192xf32>, vector<192x32xf32>, vector<8x32xf32> -> vector<8x32xf32>
      %c0_169 = arith.constant 0 : index
      %c0_170 = arith.constant 0 : index
      %495 = vector.load %arg3[%c0_169, %c0_170] : memref<2x32xf32, #tpu.memory_space<vmem>>, vector<1x32xf32>
      %496 = vector.broadcast %495 : vector<1x32xf32> to vector<8x32xf32>
      %497 = arith.addf %494, %496 : vector<8x32xf32>
      %c1_171 = arith.constant 1 : index
      %c0_172 = arith.constant 0 : index
      %498 = vector.load %arg3[%c1_171, %c0_172] : memref<2x32xf32, #tpu.memory_space<vmem>>, vector<1x32xf32>
      %499 = vector.shape_cast %498 : vector<1x32xf32> to vector<1x1x32xf32>
      %500 = vector.shape_cast %499 : vector<1x1x32xf32> to vector<1x1x32xf32>
      %501 = vector.broadcast %500 : vector<1x1x32xf32> to vector<2x1x32xf32>
      %cst_173 = arith.constant 0.000000e+00 : f32
      %502 = vector.broadcast %cst_173 : f32 to vector<2x3x32xf32>
      %503 = vector.shape_cast %497 : vector<8x32xf32> to vector<2x4x32xf32>
      %504 = tpu.concatenate %501, %503, %502 in 1 : vector<2x1x32xf32>, vector<2x4x32xf32>, vector<2x3x32xf32> -> vector<2x8x32xf32>
      %c0_174 = arith.constant 0 : index
      %c0_175 = arith.constant 0 : index
      %c0_176 = arith.constant 0 : index
      %505 = vector.load %arg17[%c0_174, %c0_175, %c0_176] : memref<2x8x32xf32, #tpu.memory_space<vmem>>, vector<2x8x32xf32>
      tpu.vector_store %arg17[%c0_174, %c0_175, %c0_176], %504 {strides = array<i32>} : memref<2x8x32xf32, #tpu.memory_space<vmem>>, vector<2x8x32xf32>,
    } else {
    }
    %c1_i32 = arith.constant 1 : i32
    %3 = arith.cmpi eq, %arg0, %c1_i32 : i32
    %4 = arith.extui %3 : i1 to i32
    %c0_i32_1 = arith.constant 0 : i32
    %5 = arith.cmpi ne, %4, %c0_i32_1 : i32
    scf.if %5 {
      %c0_164 = arith.constant 0 : index
      %c0_165 = arith.constant 0 : index
      %492 = vector.load %arg4[%c0_164, %c0_165] : memref<16x1xi32, #tpu.memory_space<vmem>>, vector<16x1xi32>
      %493 = tpu.iota {dimensions = array<i32: 1>} : vector<16x64xi32>
      %494 = vector.broadcast %492 : vector<16x1xi32> to vector<16x64xi32>
      %495 = arith.cmpi eq, %493, %494 : vector<16x64xi32>
      %496 = arith.extui %495 : vector<16x64xi1> to vector<16x64xi32>
      %497 = arith.sitofp %496 : vector<16x64xi32> to vector<16x64xf32>
      %c0_166 = arith.constant 0 : index
      %c0_167 = arith.constant 0 : index
      %498 = vector.load %arg5[%c0_166, %c0_167] : memref<64x32xf32, #tpu.memory_space<vmem>>, vector<64x32xf32>
      %cst_168 = arith.constant dense<0.000000e+00> : vector<16x32xf32>
      %499 = tpu.matmul %497, %498, %cst_168 {dimension_numbers = #tpu.dot_dimension_numbers<[1], [0], [0], [1], [0, 0, 1, 1], [], []>} : vector<16x64xf32>, vector<64x32xf32>, vector<16x32xf32> -> vector<16x32xf32>
      %500 = vector.shape_cast %499 : vector<16x32xf32> to vector<2x8x32xf32>
      %c0_169 = arith.constant 0 : index
      %c0_170 = arith.constant 0 : index
      %c0_171 = arith.constant 0 : index
      %501 = vector.load %arg17[%c0_169, %c0_170, %c0_171] : memref<2x8x32xf32, #tpu.memory_space<vmem>>, vector<2x8x32xf32>
      tpu.vector_store %arg17[%c0_169, %c0_170, %c0_171], %500 {strides = array<i32>} : memref<2x8x32xf32, #tpu.memory_space<vmem>>, vector<2x8x32xf32>,
    } else {
    }
    %c0_i32_2 = arith.constant 0 : i32
    %6 = arith.cmpi eq, %arg0, %c0_i32_2 : i32
    %7 = arith.extui %6 : i1 to i32
    %8 = arith.sitofp %7 : i32 to f32
    %9 = tpu.iota {dimensions = array<i32: 1>} : vector<2x8xi32>
    %c5_i32 = arith.constant 5 : i32
    %10 = vector.broadcast %c5_i32 : i32 to vector<2x8xi32>
    %11 = arith.cmpi sge, %9, %10 : vector<2x8xi32>
    %12 = arith.extui %11 : vector<2x8xi1> to vector<2x8xi32>
    %13 = arith.sitofp %12 : vector<2x8xi32> to vector<2x8xf32>
    %14 = vector.broadcast %8 : f32 to vector<2x8xf32>
    %15 = arith.mulf %14, %13 : vector<2x8xf32>
    %cst = arith.constant 1.000000e+00 : f32
    %16 = arith.subf %cst, %8 : f32
    %c0 = arith.constant 0 : index
    %c0_3 = arith.constant 0 : index
    %17 = vector.load %arg6[%c0, %c0_3] : memref<2x8xf32, #tpu.memory_space<vmem>>, vector<2x8xf32>
    %18 = vector.broadcast %16 : f32 to vector<2x8xf32>
    %19 = arith.mulf %18, %17 : vector<2x8xf32>
    %20 = arith.addf %15, %19 : vector<2x8xf32>
    %c0_4 = arith.constant 0 : index
    %c0_5 = arith.constant 0 : index
    %c0_6 = arith.constant 0 : index
    %21 = vector.load %arg7[%c0_4, %c0_5, %c0_6] : memref<1x8x32xf32, #tpu.memory_space<vmem>>, vector<1x8x32xf32>
    %22 = vector.shape_cast %21 : vector<1x8x32xf32> to vector<8x32xf32>
    %c0_7 = arith.constant 0 : index
    %c0_8 = arith.constant 0 : index
    %c0_9 = arith.constant 0 : index
    %23 = vector.load %arg17[%c0_7, %c0_8, %c0_9] : memref<2x8x32xf32, #tpu.memory_space<vmem>>, vector<2x8x32xf32>
    %24 = vector.shape_cast %22 : vector<8x32xf32> to vector<1x8x32xf32>
    %25 = vector.broadcast %24 : vector<1x8x32xf32> to vector<2x8x32xf32>
    %26 = arith.addf %23, %25 : vector<2x8x32xf32>
    %cst_10 = arith.constant 1.000000e+00 : f32
    %27 = vector.broadcast %cst_10 : f32 to vector<2x8xf32>
    %28 = arith.subf %27, %20 : vector<2x8xf32>
    %29 = vector.shape_cast %28 : vector<2x8xf32> to vector<2x8x1xf32>
    %30 = vector.broadcast %29 : vector<2x8x1xf32> to vector<2x8x32xf32>
    %31 = arith.mulf %26, %30 : vector<2x8x32xf32>
    %32 = vector.shape_cast %31 : vector<2x8x32xf32> to vector<16x32xf32>
    %cst_11 = arith.constant -1.000000e+09 : f32
    %33 = vector.broadcast %cst_11 : f32 to vector<2x8xf32>
    %34 = arith.mulf %20, %33 : vector<2x8xf32>
    %35 = vector.shape_cast %34 : vector<2x8xf32> to vector<2x1x8xf32>
    %36 = tpu.concatenate %35, %35, %35, %35 in 0 : vector<2x1x8xf32>, vector<2x1x8xf32>, vector<2x1x8xf32>, vector<2x1x8xf32> -> vector<8x1x8xf32>
    %c0_12 = arith.constant 0 : index
    %c0_13 = arith.constant 0 : index
    %c0_14 = arith.constant 0 : index
    %c0_15 = arith.constant 0 : index
    %37 = vector.load %arg10[%c0_12, %c0_13, %c0_14, %c0_15] : memref<1x2x11x32xf32, #tpu.memory_space<vmem>>, vector<1x1x11x32xf32>
    %38 = vector.shape_cast %37 : vector<1x1x11x32xf32> to vector<11x32xf32>
    %c0_16 = arith.constant 0 : index
    %c0_17 = arith.constant 0 : index
    %c0_18 = arith.constant 0 : index
    %c0_19 = arith.constant 0 : index
    %39 = vector.load %arg11[%c0_16, %c0_17, %c0_18, %c0_19] : memref<1x2x3x64xf32, #tpu.memory_space<vmem>>, vector<1x1x3x64xf32>
    %40 = vector.shape_cast %39 : vector<1x1x3x64xf32> to vector<3x64xf32>
    %41 = vector.extract_strided_slice %38 {offsets = [0, 0], sizes = [1, 32], strides = [1, 1]} : vector<11x32xf32> to vector<1x32xf32>
    %42 = vector.extract_strided_slice %38 {offsets = [1, 0], sizes = [1, 32], strides = [1, 1]} : vector<11x32xf32> to vector<1x32xf32>
    %cst_20 = arith.constant dense<0.000000e+00> : vector<16xf32>
    %43 = vector.multi_reduction <add>, %32, %cst_20 [1] : vector<16x32xf32> to vector<16xf32>
    %44 = vector.shape_cast %43 : vector<16xf32> to vector<16x1xf32>
    %cst_21 = arith.constant 3.200000e+01 : f32
    %45 = vector.broadcast %cst_21 : f32 to vector<16x1xf32>
    %46 = arith.divf %44, %45 : vector<16x1xf32>
    %47 = vector.broadcast %46 : vector<16x1xf32> to vector<16x32xf32>
    %48 = arith.subf %32, %47 : vector<16x32xf32>
    %49 = arith.mulf %48, %48 : vector<16x32xf32>
    %cst_22 = arith.constant dense<0.000000e+00> : vector<16xf32>
    %50 = vector.multi_reduction <add>, %49, %cst_22 [1] : vector<16x32xf32> to vector<16xf32>
    %51 = vector.shape_cast %50 : vector<16xf32> to vector<16x1xf32>
    %cst_23 = arith.constant 3.200000e+01 : f32
    %52 = vector.broadcast %cst_23 : f32 to vector<16x1xf32>
    %53 = arith.divf %51, %52 : vector<16x1xf32>
    %cst_24 = arith.constant 9.99999974E-6 : f32
    %54 = vector.broadcast %cst_24 : f32 to vector<16x1xf32>
    %55 = arith.addf %53, %54 : vector<16x1xf32>
    %56 = math.rsqrt %55 : vector<16x1xf32>
    %57 = vector.broadcast %56 : vector<16x1xf32> to vector<16x32xf32>
    %58 = arith.mulf %48, %57 : vector<16x32xf32>
    %59 = vector.broadcast %41 : vector<1x32xf32> to vector<16x32xf32>
    %60 = arith.mulf %58, %59 : vector<16x32xf32>
    %61 = vector.broadcast %42 : vector<1x32xf32> to vector<16x32xf32>
    %62 = arith.addf %60, %61 : vector<16x32xf32>
    %c0_25 = arith.constant 0 : index
    %c0_26 = arith.constant 0 : index
    %c0_27 = arith.constant 0 : index
    %c0_28 = arith.constant 0 : index
    %63 = vector.load %arg8[%c0_25, %c0_26, %c0_27, %c0_28] : memref<1x2x32x96xf32, #tpu.memory_space<vmem>>, vector<1x1x32x96xf32>
    %64 = vector.shape_cast %63 : vector<1x1x32x96xf32> to vector<32x96xf32>
    %cst_29 = arith.constant dense<0.000000e+00> : vector<16x96xf32>
    %65 = tpu.matmul %62, %64, %cst_29 {dimension_numbers = #tpu.dot_dimension_numbers<[1], [0], [0], [1], [0, 0, 1, 1], [], []>} : vector<16x32xf32>, vector<32x96xf32>, vector<16x96xf32> -> vector<16x96xf32>
    %66 = vector.extract_strided_slice %65 {offsets = [0, 0], sizes = [16, 32], strides = [1, 1]} : vector<16x96xf32> to vector<16x32xf32>
    %67 = vector.extract_strided_slice %38 {offsets = [2, 0], sizes = [1, 32], strides = [1, 1]} : vector<11x32xf32> to vector<1x32xf32>
    %68 = vector.broadcast %67 : vector<1x32xf32> to vector<16x32xf32>
    %69 = arith.addf %66, %68 : vector<16x32xf32>
    %cst_30 = arith.constant 0.353553385 : f32
    %70 = vector.broadcast %cst_30 : f32 to vector<16x32xf32>
    %71 = arith.mulf %69, %70 : vector<16x32xf32>
    %72 = vector.extract_strided_slice %65 {offsets = [0, 32], sizes = [16, 32], strides = [1, 1]} : vector<16x96xf32> to vector<16x32xf32>
    %73 = vector.extract_strided_slice %38 {offsets = [3, 0], sizes = [1, 32], strides = [1, 1]} : vector<11x32xf32> to vector<1x32xf32>
    %74 = vector.broadcast %73 : vector<1x32xf32> to vector<16x32xf32>
    %75 = arith.addf %72, %74 : vector<16x32xf32>
    %76 = vector.extract_strided_slice %65 {offsets = [0, 64], sizes = [16, 32], strides = [1, 1]} : vector<16x96xf32> to vector<16x32xf32>
    %77 = vector.extract_strided_slice %38 {offsets = [4, 0], sizes = [1, 32], strides = [1, 1]} : vector<11x32xf32> to vector<1x32xf32>
    %78 = vector.broadcast %77 : vector<1x32xf32> to vector<16x32xf32>
    %79 = arith.addf %76, %78 : vector<16x32xf32>
    %80 = vector.shape_cast %71 : vector<16x32xf32> to vector<2x8x32xf32>
    %81 = vector.shape_cast %75 : vector<16x32xf32> to vector<2x8x32xf32>
    %82 = vector.shape_cast %79 : vector<16x32xf32> to vector<2x8x32xf32>
    %83 = vector.extract_strided_slice %80 {offsets = [0, 0, 0], sizes = [2, 8, 8], strides = [1, 1, 1]} : vector<2x8x32xf32> to vector<2x8x8xf32>
    %84 = vector.extract_strided_slice %80 {offsets = [0, 0, 8], sizes = [2, 8, 8], strides = [1, 1, 1]} : vector<2x8x32xf32> to vector<2x8x8xf32>
    %85 = vector.extract_strided_slice %80 {offsets = [0, 0, 16], sizes = [2, 8, 8], strides = [1, 1, 1]} : vector<2x8x32xf32> to vector<2x8x8xf32>
    %86 = vector.extract_strided_slice %80 {offsets = [0, 0, 24], sizes = [2, 8, 8], strides = [1, 1, 1]} : vector<2x8x32xf32> to vector<2x8x8xf32>
    %87 = tpu.concatenate %83, %84, %85, %86 in 0 : vector<2x8x8xf32>, vector<2x8x8xf32>, vector<2x8x8xf32>, vector<2x8x8xf32> -> vector<8x8x8xf32>
    %88 = vector.extract_strided_slice %81 {offsets = [0, 0, 0], sizes = [2, 8, 8], strides = [1, 1, 1]} : vector<2x8x32xf32> to vector<2x8x8xf32>
    %89 = vector.extract_strided_slice %81 {offsets = [0, 0, 8], sizes = [2, 8, 8], strides = [1, 1, 1]} : vector<2x8x32xf32> to vector<2x8x8xf32>
    %90 = vector.extract_strided_slice %81 {offsets = [0, 0, 16], sizes = [2, 8, 8], strides = [1, 1, 1]} : vector<2x8x32xf32> to vector<2x8x8xf32>
    %91 = vector.extract_strided_slice %81 {offsets = [0, 0, 24], sizes = [2, 8, 8], strides = [1, 1, 1]} : vector<2x8x32xf32> to vector<2x8x8xf32>
    %92 = tpu.concatenate %88, %89, %90, %91 in 0 : vector<2x8x8xf32>, vector<2x8x8xf32>, vector<2x8x8xf32>, vector<2x8x8xf32> -> vector<8x8x8xf32>
    %93 = vector.extract_strided_slice %82 {offsets = [0, 0, 0], sizes = [2, 8, 8], strides = [1, 1, 1]} : vector<2x8x32xf32> to vector<2x8x8xf32>
    %94 = vector.extract_strided_slice %82 {offsets = [0, 0, 8], sizes = [2, 8, 8], strides = [1, 1, 1]} : vector<2x8x32xf32> to vector<2x8x8xf32>
    %95 = vector.extract_strided_slice %82 {offsets = [0, 0, 16], sizes = [2, 8, 8], strides = [1, 1, 1]} : vector<2x8x32xf32> to vector<2x8x8xf32>
    %96 = vector.extract_strided_slice %82 {offsets = [0, 0, 24], sizes = [2, 8, 8], strides = [1, 1, 1]} : vector<2x8x32xf32> to vector<2x8x8xf32>
    %97 = tpu.concatenate %93, %94, %95, %96 in 0 : vector<2x8x8xf32>, vector<2x8x8xf32>, vector<2x8x8xf32>, vector<2x8x8xf32> -> vector<8x8x8xf32>
    %cst_31 = arith.constant dense<0.000000e+00> : vector<8x8x8xf32>
    %98 = tpu.matmul %87, %92, %cst_31 {dimension_numbers = #tpu.dot_dimension_numbers<[2], [2], [1], [1], [0, 0, 0, 1, 1, 1], [0], [0]>} : vector<8x8x8xf32>, vector<8x8x8xf32>, vector<8x8x8xf32> -> vector<8x8x8xf32>
    %99 = vector.broadcast %36 : vector<8x1x8xf32> to vector<8x8x8xf32>
    %100 = arith.addf %98, %99 : vector<8x8x8xf32>
    %cst_32 = arith.constant dense<0xFF800000> : vector<8x8xf32>
    %101 = vector.multi_reduction <maximumf>, %100, %cst_32 [2] : vector<8x8x8xf32> to vector<8x8xf32>
    %102 = vector.shape_cast %101 : vector<8x8xf32> to vector<8x8x1xf32>
    %103 = vector.broadcast %102 : vector<8x8x1xf32> to vector<8x8x8xf32>
    %104 = arith.subf %100, %103 : vector<8x8x8xf32>
    %105 = math.exp %104 : vector<8x8x8xf32>
    %cst_33 = arith.constant dense<0.000000e+00> : vector<8x8xf32>
    %106 = vector.multi_reduction <add>, %105, %cst_33 [2] : vector<8x8x8xf32> to vector<8x8xf32>
    %107 = vector.shape_cast %106 : vector<8x8xf32> to vector<8x8x1xf32>
    %108 = tpu.reciprocal %107 {approx = true} : vector<8x8x1xf32> -> vector<8x8x1xf32>
    %109 = vector.broadcast %108 : vector<8x8x1xf32> to vector<8x8x8xf32>
    %110 = arith.mulf %105, %109 : vector<8x8x8xf32>
    %cst_34 = arith.constant dense<0.000000e+00> : vector<8x8x8xf32>
    %111 = tpu.matmul %110, %97, %cst_34 {dimension_numbers = #tpu.dot_dimension_numbers<[2], [1], [1], [2], [0, 0, 0, 1, 1, 2], [0], [0]>} : vector<8x8x8xf32>, vector<8x8x8xf32>, vector<8x8x8xf32> -> vector<8x8x8xf32>
    %112 = vector.extract_strided_slice %111 {offsets = [0, 0, 0], sizes = [2, 8, 8], strides = [1, 1, 1]} : vector<8x8x8xf32> to vector<2x8x8xf32>
    %113 = vector.extract_strided_slice %111 {offsets = [2, 0, 0], sizes = [2, 8, 8], strides = [1, 1, 1]} : vector<8x8x8xf32> to vector<2x8x8xf32>
    %114 = vector.extract_strided_slice %111 {offsets = [4, 0, 0], sizes = [2, 8, 8], strides = [1, 1, 1]} : vector<8x8x8xf32> to vector<2x8x8xf32>
    %115 = vector.extract_strided_slice %111 {offsets = [6, 0, 0], sizes = [2, 8, 8], strides = [1, 1, 1]} : vector<8x8x8xf32> to vector<2x8x8xf32>
    %116 = tpu.concatenate %112, %113, %114, %115 in 2 : vector<2x8x8xf32>, vector<2x8x8xf32>, vector<2x8x8xf32>, vector<2x8x8xf32> -> vector<2x8x32xf32>
    %117 = vector.shape_cast %116 : vector<2x8x32xf32> to vector<16x32xf32>
    %118 = vector.extract_strided_slice %38 {offsets = [6, 0], sizes = [1, 32], strides = [1, 1]} : vector<11x32xf32> to vector<1x32xf32>
    %119 = vector.extract_strided_slice %38 {offsets = [7, 0], sizes = [1, 32], strides = [1, 1]} : vector<11x32xf32> to vector<1x32xf32>
    %cst_35 = arith.constant dense<0.000000e+00> : vector<16xf32>
    %120 = vector.multi_reduction <add>, %117, %cst_35 [1] : vector<16x32xf32> to vector<16xf32>
    %121 = vector.shape_cast %120 : vector<16xf32> to vector<16x1xf32>
    %cst_36 = arith.constant 3.200000e+01 : f32
    %122 = vector.broadcast %cst_36 : f32 to vector<16x1xf32>
    %123 = arith.divf %121, %122 : vector<16x1xf32>
    %124 = vector.broadcast %123 : vector<16x1xf32> to vector<16x32xf32>
    %125 = arith.subf %117, %124 : vector<16x32xf32>
    %126 = arith.mulf %125, %125 : vector<16x32xf32>
    %cst_37 = arith.constant dense<0.000000e+00> : vector<16xf32>
    %127 = vector.multi_reduction <add>, %126, %cst_37 [1] : vector<16x32xf32> to vector<16xf32>
    %128 = vector.shape_cast %127 : vector<16xf32> to vector<16x1xf32>
    %cst_38 = arith.constant 3.200000e+01 : f32
    %129 = vector.broadcast %cst_38 : f32 to vector<16x1xf32>
    %130 = arith.divf %128, %129 : vector<16x1xf32>
    %cst_39 = arith.constant 9.99999974E-6 : f32
    %131 = vector.broadcast %cst_39 : f32 to vector<16x1xf32>
    %132 = arith.addf %130, %131 : vector<16x1xf32>
    %133 = math.rsqrt %132 : vector<16x1xf32>
    %134 = vector.broadcast %133 : vector<16x1xf32> to vector<16x32xf32>
    %135 = arith.mulf %125, %134 : vector<16x32xf32>
    %136 = vector.broadcast %118 : vector<1x32xf32> to vector<16x32xf32>
    %137 = arith.mulf %135, %136 : vector<16x32xf32>
    %138 = vector.broadcast %119 : vector<1x32xf32> to vector<16x32xf32>
    %139 = arith.addf %137, %138 : vector<16x32xf32>
    %c0_40 = arith.constant 0 : index
    %c0_41 = arith.constant 0 : index
    %c0_42 = arith.constant 0 : index
    %c0_43 = arith.constant 0 : index
    %140 = vector.load %arg9[%c0_40, %c0_41, %c0_42, %c0_43] : memref<1x2x32x32xf32, #tpu.memory_space<vmem>>, vector<1x1x32x32xf32>
    %141 = vector.shape_cast %140 : vector<1x1x32x32xf32> to vector<32x32xf32>
    %cst_44 = arith.constant dense<0.000000e+00> : vector<16x32xf32>
    %142 = tpu.matmul %139, %141, %cst_44 {dimension_numbers = #tpu.dot_dimension_numbers<[1], [0], [0], [1], [0, 0, 1, 1], [], []>} : vector<16x32xf32>, vector<32x32xf32>, vector<16x32xf32> -> vector<16x32xf32>
    %143 = vector.extract_strided_slice %38 {offsets = [5, 0], sizes = [1, 32], strides = [1, 1]} : vector<11x32xf32> to vector<1x32xf32>
    %144 = vector.broadcast %143 : vector<1x32xf32> to vector<16x32xf32>
    %145 = arith.addf %142, %144 : vector<16x32xf32>
    %146 = arith.addf %32, %145 : vector<16x32xf32>
    %147 = vector.extract_strided_slice %38 {offsets = [8, 0], sizes = [1, 32], strides = [1, 1]} : vector<11x32xf32> to vector<1x32xf32>
    %148 = vector.extract_strided_slice %38 {offsets = [9, 0], sizes = [1, 32], strides = [1, 1]} : vector<11x32xf32> to vector<1x32xf32>
    %cst_45 = arith.constant dense<0.000000e+00> : vector<16xf32>
    %149 = vector.multi_reduction <add>, %146, %cst_45 [1] : vector<16x32xf32> to vector<16xf32>
    %150 = vector.shape_cast %149 : vector<16xf32> to vector<16x1xf32>
    %cst_46 = arith.constant 3.200000e+01 : f32
    %151 = vector.broadcast %cst_46 : f32 to vector<16x1xf32>
    %152 = arith.divf %150, %151 : vector<16x1xf32>
    %153 = vector.broadcast %152 : vector<16x1xf32> to vector<16x32xf32>
    %154 = arith.subf %146, %153 : vector<16x32xf32>
    %155 = arith.mulf %154, %154 : vector<16x32xf32>
    %cst_47 = arith.constant dense<0.000000e+00> : vector<16xf32>
    %156 = vector.multi_reduction <add>, %155, %cst_47 [1] : vector<16x32xf32> to vector<16xf32>
    %157 = vector.shape_cast %156 : vector<16xf32> to vector<16x1xf32>
    %cst_48 = arith.constant 3.200000e+01 : f32
    %158 = vector.broadcast %cst_48 : f32 to vector<16x1xf32>
    %159 = arith.divf %157, %158 : vector<16x1xf32>
    %cst_49 = arith.constant 9.99999974E-6 : f32
    %160 = vector.broadcast %cst_49 : f32 to vector<16x1xf32>
    %161 = arith.addf %159, %160 : vector<16x1xf32>
    %162 = math.rsqrt %161 : vector<16x1xf32>
    %163 = vector.broadcast %162 : vector<16x1xf32> to vector<16x32xf32>
    %164 = arith.mulf %154, %163 : vector<16x32xf32>
    %165 = vector.broadcast %147 : vector<1x32xf32> to vector<16x32xf32>
    %166 = arith.mulf %164, %165 : vector<16x32xf32>
    %167 = vector.broadcast %148 : vector<1x32xf32> to vector<16x32xf32>
    %168 = arith.addf %166, %167 : vector<16x32xf32>
    %c0_50 = arith.constant 0 : index
    %c0_51 = arith.constant 0 : index
    %c0_52 = arith.constant 0 : index
    %c0_53 = arith.constant 0 : index
    %169 = vector.load %arg12[%c0_50, %c0_51, %c0_52, %c0_53] : memref<1x2x32x64xf32, #tpu.memory_space<vmem>>, vector<1x1x32x64xf32>
    %170 = vector.shape_cast %169 : vector<1x1x32x64xf32> to vector<32x64xf32>
    %cst_54 = arith.constant dense<0.000000e+00> : vector<16x64xf32>
    %171 = tpu.matmul %168, %170, %cst_54 {dimension_numbers = #tpu.dot_dimension_numbers<[1], [0], [0], [1], [0, 0, 1, 1], [], []>} : vector<16x32xf32>, vector<32x64xf32>, vector<16x64xf32> -> vector<16x64xf32>
    %172 = vector.extract_strided_slice %40 {offsets = [0, 0], sizes = [1, 64], strides = [1, 1]} : vector<3x64xf32> to vector<1x64xf32>
    %173 = vector.broadcast %172 : vector<1x64xf32> to vector<16x64xf32>
    %174 = arith.addf %171, %173 : vector<16x64xf32>
    %cst_55 = arith.constant 5.000000e-01 : f32
    %175 = vector.broadcast %cst_55 : f32 to vector<16x64xf32>
    %176 = arith.mulf %175, %174 : vector<16x64xf32>
    %cst_56 = arith.constant 0.707106769 : f32
    %177 = vector.broadcast %cst_56 : f32 to vector<16x64xf32>
    %178 = arith.mulf %174, %177 : vector<16x64xf32>
    %179 = math.absf %178 : vector<16x64xf32>
    %cst_57 = arith.constant 0.327591091 : f32
    %180 = vector.broadcast %cst_57 : f32 to vector<16x64xf32>
    %181 = arith.mulf %180, %179 : vector<16x64xf32>
    %cst_58 = arith.constant 1.000000e+00 : f32
    %182 = vector.broadcast %cst_58 : f32 to vector<16x64xf32>
    %183 = arith.addf %182, %181 : vector<16x64xf32>
    %cst_59 = arith.constant 1.000000e+00 : f32
    %184 = vector.broadcast %cst_59 : f32 to vector<16x64xf32>
    %185 = arith.divf %184, %183 : vector<16x64xf32>
    %cst_60 = arith.constant 1.06140542 : f32
    %186 = vector.broadcast %cst_60 : f32 to vector<16x64xf32>
    %187 = arith.mulf %186, %185 : vector<16x64xf32>
    %cst_61 = arith.constant -1.45315206 : f32
    %188 = vector.broadcast %cst_61 : f32 to vector<16x64xf32>
    %189 = arith.addf %187, %188 : vector<16x64xf32>
    %190 = arith.mulf %189, %185 : vector<16x64xf32>
    %cst_62 = arith.constant 1.42141378 : f32
    %191 = vector.broadcast %cst_62 : f32 to vector<16x64xf32>
    %192 = arith.addf %190, %191 : vector<16x64xf32>
    %193 = arith.mulf %192, %185 : vector<16x64xf32>
    %cst_63 = arith.constant -0.284496725 : f32
    %194 = vector.broadcast %cst_63 : f32 to vector<16x64xf32>
    %195 = arith.addf %193, %194 : vector<16x64xf32>
    %196 = arith.mulf %195, %185 : vector<16x64xf32>
    %cst_64 = arith.constant 0.254829586 : f32
    %197 = vector.broadcast %cst_64 : f32 to vector<16x64xf32>
    %198 = arith.addf %196, %197 : vector<16x64xf32>
    %199 = arith.mulf %198, %185 : vector<16x64xf32>
    %200 = arith.mulf %179, %179 : vector<16x64xf32>
    %cst_65 = arith.constant 0.000000e+00 : f32
    %201 = vector.broadcast %cst_65 : f32 to vector<16x64xf32>
    %202 = arith.subf %201, %200 : vector<16x64xf32>
    %203 = math.exp %202 : vector<16x64xf32>
    %204 = arith.mulf %199, %203 : vector<16x64xf32>
    %cst_66 = arith.constant 1.000000e+00 : f32
    %205 = vector.broadcast %cst_66 : f32 to vector<16x64xf32>
    %206 = arith.subf %205, %204 : vector<16x64xf32>
    %cst_67 = arith.constant 0.000000e+00 : f32
    %207 = vector.broadcast %cst_67 : f32 to vector<16x64xf32>
    %208 = arith.cmpf oge, %178, %207 : vector<16x64xf32>
    %cst_68 = arith.constant 0.000000e+00 : f32
    %209 = vector.broadcast %cst_68 : f32 to vector<16x64xf32>
    %210 = arith.subf %209, %206 : vector<16x64xf32>
    %211 = arith.select %208, %206, %210 : vector<16x64xi1>, vector<16x64xf32>
    %cst_69 = arith.constant 1.000000e+00 : f32
    %212 = vector.broadcast %cst_69 : f32 to vector<16x64xf32>
    %213 = arith.addf %212, %211 : vector<16x64xf32>
    %214 = arith.mulf %176, %213 : vector<16x64xf32>
    %215 = vector.extract_strided_slice %40 {offsets = [1, 0], sizes = [1, 64], strides = [1, 1]} : vector<3x64xf32> to vector<1x64xf32>
    %216 = vector.extract_strided_slice %40 {offsets = [2, 0], sizes = [1, 64], strides = [1, 1]} : vector<3x64xf32> to vector<1x64xf32>
    %cst_70 = arith.constant dense<0.000000e+00> : vector<16xf32>
    %217 = vector.multi_reduction <add>, %214, %cst_70 [1] : vector<16x64xf32> to vector<16xf32>
    %218 = vector.shape_cast %217 : vector<16xf32> to vector<16x1xf32>
    %cst_71 = arith.constant 6.400000e+01 : f32
    %219 = vector.broadcast %cst_71 : f32 to vector<16x1xf32>
    %220 = arith.divf %218, %219 : vector<16x1xf32>
    %221 = vector.broadcast %220 : vector<16x1xf32> to vector<16x64xf32>
    %222 = arith.subf %214, %221 : vector<16x64xf32>
    %223 = arith.mulf %222, %222 : vector<16x64xf32>
    %cst_72 = arith.constant dense<0.000000e+00> : vector<16xf32>
    %224 = vector.multi_reduction <add>, %223, %cst_72 [1] : vector<16x64xf32> to vector<16xf32>
    %225 = vector.shape_cast %224 : vector<16xf32> to vector<16x1xf32>
    %cst_73 = arith.constant 6.400000e+01 : f32
    %226 = vector.broadcast %cst_73 : f32 to vector<16x1xf32>
    %227 = arith.divf %225, %226 : vector<16x1xf32>
    %cst_74 = arith.constant 9.99999974E-6 : f32
    %228 = vector.broadcast %cst_74 : f32 to vector<16x1xf32>
    %229 = arith.addf %227, %228 : vector<16x1xf32>
    %230 = math.rsqrt %229 : vector<16x1xf32>
    %231 = vector.broadcast %230 : vector<16x1xf32> to vector<16x64xf32>
    %232 = arith.mulf %222, %231 : vector<16x64xf32>
    %233 = vector.broadcast %215 : vector<1x64xf32> to vector<16x64xf32>
    %234 = arith.mulf %232, %233 : vector<16x64xf32>
    %235 = vector.broadcast %216 : vector<1x64xf32> to vector<16x64xf32>
    %236 = arith.addf %234, %235 : vector<16x64xf32>
    %c0_75 = arith.constant 0 : index
    %c0_76 = arith.constant 0 : index
    %c0_77 = arith.constant 0 : index
    %c0_78 = arith.constant 0 : index
    %237 = vector.load %arg13[%c0_75, %c0_76, %c0_77, %c0_78] : memref<1x2x64x32xf32, #tpu.memory_space<vmem>>, vector<1x1x64x32xf32>
    %238 = vector.shape_cast %237 : vector<1x1x64x32xf32> to vector<64x32xf32>
    %cst_79 = arith.constant dense<0.000000e+00> : vector<16x32xf32>
    %239 = tpu.matmul %236, %238, %cst_79 {dimension_numbers = #tpu.dot_dimension_numbers<[1], [0], [0], [1], [0, 0, 1, 1], [], []>} : vector<16x64xf32>, vector<64x32xf32>, vector<16x32xf32> -> vector<16x32xf32>
    %240 = vector.extract_strided_slice %38 {offsets = [10, 0], sizes = [1, 32], strides = [1, 1]} : vector<11x32xf32> to vector<1x32xf32>
    %241 = vector.broadcast %240 : vector<1x32xf32> to vector<16x32xf32>
    %242 = arith.addf %239, %241 : vector<16x32xf32>
    %243 = arith.addf %146, %242 : vector<16x32xf32>
    %c0_80 = arith.constant 0 : index
    %c1 = arith.constant 1 : index
    %c0_81 = arith.constant 0 : index
    %c0_82 = arith.constant 0 : index
    %244 = vector.load %arg10[%c0_80, %c1, %c0_81, %c0_82] : memref<1x2x11x32xf32, #tpu.memory_space<vmem>>, vector<1x1x11x32xf32>
    %245 = vector.shape_cast %244 : vector<1x1x11x32xf32> to vector<11x32xf32>
    %c0_83 = arith.constant 0 : index
    %c1_84 = arith.constant 1 : index
    %c0_85 = arith.constant 0 : index
    %c0_86 = arith.constant 0 : index
    %246 = vector.load %arg11[%c0_83, %c1_84, %c0_85, %c0_86] : memref<1x2x3x64xf32, #tpu.memory_space<vmem>>, vector<1x1x3x64xf32>
    %247 = vector.shape_cast %246 : vector<1x1x3x64xf32> to vector<3x64xf32>
    %248 = vector.extract_strided_slice %245 {offsets = [0, 0], sizes = [1, 32], strides = [1, 1]} : vector<11x32xf32> to vector<1x32xf32>
    %249 = vector.extract_strided_slice %245 {offsets = [1, 0], sizes = [1, 32], strides = [1, 1]} : vector<11x32xf32> to vector<1x32xf32>
    %cst_87 = arith.constant dense<0.000000e+00> : vector<16xf32>
    %250 = vector.multi_reduction <add>, %243, %cst_87 [1] : vector<16x32xf32> to vector<16xf32>
    %251 = vector.shape_cast %250 : vector<16xf32> to vector<16x1xf32>
    %cst_88 = arith.constant 3.200000e+01 : f32
    %252 = vector.broadcast %cst_88 : f32 to vector<16x1xf32>
    %253 = arith.divf %251, %252 : vector<16x1xf32>
    %254 = vector.broadcast %253 : vector<16x1xf32> to vector<16x32xf32>
    %255 = arith.subf %243, %254 : vector<16x32xf32>
    %256 = arith.mulf %255, %255 : vector<16x32xf32>
    %cst_89 = arith.constant dense<0.000000e+00> : vector<16xf32>
    %257 = vector.multi_reduction <add>, %256, %cst_89 [1] : vector<16x32xf32> to vector<16xf32>
    %258 = vector.shape_cast %257 : vector<16xf32> to vector<16x1xf32>
    %cst_90 = arith.constant 3.200000e+01 : f32
    %259 = vector.broadcast %cst_90 : f32 to vector<16x1xf32>
    %260 = arith.divf %258, %259 : vector<16x1xf32>
    %cst_91 = arith.constant 9.99999974E-6 : f32
    %261 = vector.broadcast %cst_91 : f32 to vector<16x1xf32>
    %262 = arith.addf %260, %261 : vector<16x1xf32>
    %263 = math.rsqrt %262 : vector<16x1xf32>
    %264 = vector.broadcast %263 : vector<16x1xf32> to vector<16x32xf32>
    %265 = arith.mulf %255, %264 : vector<16x32xf32>
    %266 = vector.broadcast %248 : vector<1x32xf32> to vector<16x32xf32>
    %267 = arith.mulf %265, %266 : vector<16x32xf32>
    %268 = vector.broadcast %249 : vector<1x32xf32> to vector<16x32xf32>
    %269 = arith.addf %267, %268 : vector<16x32xf32>
    %c0_92 = arith.constant 0 : index
    %c1_93 = arith.constant 1 : index
    %c0_94 = arith.constant 0 : index
    %c0_95 = arith.constant 0 : index
    %270 = vector.load %arg8[%c0_92, %c1_93, %c0_94, %c0_95] : memref<1x2x32x96xf32, #tpu.memory_space<vmem>>, vector<1x1x32x96xf32>
    %271 = vector.shape_cast %270 : vector<1x1x32x96xf32> to vector<32x96xf32>
    %cst_96 = arith.constant dense<0.000000e+00> : vector<16x96xf32>
    %272 = tpu.matmul %269, %271, %cst_96 {dimension_numbers = #tpu.dot_dimension_numbers<[1], [0], [0], [1], [0, 0, 1, 1], [], []>} : vector<16x32xf32>, vector<32x96xf32>, vector<16x96xf32> -> vector<16x96xf32>
    %273 = vector.extract_strided_slice %272 {offsets = [0, 0], sizes = [16, 32], strides = [1, 1]} : vector<16x96xf32> to vector<16x32xf32>
    %274 = vector.extract_strided_slice %245 {offsets = [2, 0], sizes = [1, 32], strides = [1, 1]} : vector<11x32xf32> to vector<1x32xf32>
    %275 = vector.broadcast %274 : vector<1x32xf32> to vector<16x32xf32>
    %276 = arith.addf %273, %275 : vector<16x32xf32>
    %cst_97 = arith.constant 0.353553385 : f32
    %277 = vector.broadcast %cst_97 : f32 to vector<16x32xf32>
    %278 = arith.mulf %276, %277 : vector<16x32xf32>
    %279 = vector.extract_strided_slice %272 {offsets = [0, 32], sizes = [16, 32], strides = [1, 1]} : vector<16x96xf32> to vector<16x32xf32>
    %280 = vector.extract_strided_slice %245 {offsets = [3, 0], sizes = [1, 32], strides = [1, 1]} : vector<11x32xf32> to vector<1x32xf32>
    %281 = vector.broadcast %280 : vector<1x32xf32> to vector<16x32xf32>
    %282 = arith.addf %279, %281 : vector<16x32xf32>
    %283 = vector.extract_strided_slice %272 {offsets = [0, 64], sizes = [16, 32], strides = [1, 1]} : vector<16x96xf32> to vector<16x32xf32>
    %284 = vector.extract_strided_slice %245 {offsets = [4, 0], sizes = [1, 32], strides = [1, 1]} : vector<11x32xf32> to vector<1x32xf32>
    %285 = vector.broadcast %284 : vector<1x32xf32> to vector<16x32xf32>
    %286 = arith.addf %283, %285 : vector<16x32xf32>
    %287 = vector.shape_cast %278 : vector<16x32xf32> to vector<2x8x32xf32>
    %288 = vector.shape_cast %282 : vector<16x32xf32> to vector<2x8x32xf32>
    %289 = vector.shape_cast %286 : vector<16x32xf32> to vector<2x8x32xf32>
    %290 = vector.extract_strided_slice %287 {offsets = [0, 0, 0], sizes = [2, 8, 8], strides = [1, 1, 1]} : vector<2x8x32xf32> to vector<2x8x8xf32>
    %291 = vector.extract_strided_slice %287 {offsets = [0, 0, 8], sizes = [2, 8, 8], strides = [1, 1, 1]} : vector<2x8x32xf32> to vector<2x8x8xf32>
    %292 = vector.extract_strided_slice %287 {offsets = [0, 0, 16], sizes = [2, 8, 8], strides = [1, 1, 1]} : vector<2x8x32xf32> to vector<2x8x8xf32>
    %293 = vector.extract_strided_slice %287 {offsets = [0, 0, 24], sizes = [2, 8, 8], strides = [1, 1, 1]} : vector<2x8x32xf32> to vector<2x8x8xf32>
    %294 = tpu.concatenate %290, %291, %292, %293 in 0 : vector<2x8x8xf32>, vector<2x8x8xf32>, vector<2x8x8xf32>, vector<2x8x8xf32> -> vector<8x8x8xf32>
    %295 = vector.extract_strided_slice %288 {offsets = [0, 0, 0], sizes = [2, 8, 8], strides = [1, 1, 1]} : vector<2x8x32xf32> to vector<2x8x8xf32>
    %296 = vector.extract_strided_slice %288 {offsets = [0, 0, 8], sizes = [2, 8, 8], strides = [1, 1, 1]} : vector<2x8x32xf32> to vector<2x8x8xf32>
    %297 = vector.extract_strided_slice %288 {offsets = [0, 0, 16], sizes = [2, 8, 8], strides = [1, 1, 1]} : vector<2x8x32xf32> to vector<2x8x8xf32>
    %298 = vector.extract_strided_slice %288 {offsets = [0, 0, 24], sizes = [2, 8, 8], strides = [1, 1, 1]} : vector<2x8x32xf32> to vector<2x8x8xf32>
    %299 = tpu.concatenate %295, %296, %297, %298 in 0 : vector<2x8x8xf32>, vector<2x8x8xf32>, vector<2x8x8xf32>, vector<2x8x8xf32> -> vector<8x8x8xf32>
    %300 = vector.extract_strided_slice %289 {offsets = [0, 0, 0], sizes = [2, 8, 8], strides = [1, 1, 1]} : vector<2x8x32xf32> to vector<2x8x8xf32>
    %301 = vector.extract_strided_slice %289 {offsets = [0, 0, 8], sizes = [2, 8, 8], strides = [1, 1, 1]} : vector<2x8x32xf32> to vector<2x8x8xf32>
    %302 = vector.extract_strided_slice %289 {offsets = [0, 0, 16], sizes = [2, 8, 8], strides = [1, 1, 1]} : vector<2x8x32xf32> to vector<2x8x8xf32>
    %303 = vector.extract_strided_slice %289 {offsets = [0, 0, 24], sizes = [2, 8, 8], strides = [1, 1, 1]} : vector<2x8x32xf32> to vector<2x8x8xf32>
    %304 = tpu.concatenate %300, %301, %302, %303 in 0 : vector<2x8x8xf32>, vector<2x8x8xf32>, vector<2x8x8xf32>, vector<2x8x8xf32> -> vector<8x8x8xf32>
    %cst_98 = arith.constant dense<0.000000e+00> : vector<8x8x8xf32>
    %305 = tpu.matmul %294, %299, %cst_98 {dimension_numbers = #tpu.dot_dimension_numbers<[2], [2], [1], [1], [0, 0, 0, 1, 1, 1], [0], [0]>} : vector<8x8x8xf32>, vector<8x8x8xf32>, vector<8x8x8xf32> -> vector<8x8x8xf32>
    %306 = vector.broadcast %36 : vector<8x1x8xf32> to vector<8x8x8xf32>
    %307 = arith.addf %305, %306 : vector<8x8x8xf32>
    %cst_99 = arith.constant dense<0xFF800000> : vector<8x8xf32>
    %308 = vector.multi_reduction <maximumf>, %307, %cst_99 [2] : vector<8x8x8xf32> to vector<8x8xf32>
    %309 = vector.shape_cast %308 : vector<8x8xf32> to vector<8x8x1xf32>
    %310 = vector.broadcast %309 : vector<8x8x1xf32> to vector<8x8x8xf32>
    %311 = arith.subf %307, %310 : vector<8x8x8xf32>
    %312 = math.exp %311 : vector<8x8x8xf32>
    %cst_100 = arith.constant dense<0.000000e+00> : vector<8x8xf32>
    %313 = vector.multi_reduction <add>, %312, %cst_100 [2] : vector<8x8x8xf32> to vector<8x8xf32>
    %314 = vector.shape_cast %313 : vector<8x8xf32> to vector<8x8x1xf32>
    %315 = tpu.reciprocal %314 {approx = true} : vector<8x8x1xf32> -> vector<8x8x1xf32>
    %316 = vector.broadcast %315 : vector<8x8x1xf32> to vector<8x8x8xf32>
    %317 = arith.mulf %312, %316 : vector<8x8x8xf32>
    %cst_101 = arith.constant dense<0.000000e+00> : vector<8x8x8xf32>
    %318 = tpu.matmul %317, %304, %cst_101 {dimension_numbers = #tpu.dot_dimension_numbers<[2], [1], [1], [2], [0, 0, 0, 1, 1, 2], [0], [0]>} : vector<8x8x8xf32>, vector<8x8x8xf32>, vector<8x8x8xf32> -> vector<8x8x8xf32>
    %319 = vector.extract_strided_slice %318 {offsets = [0, 0, 0], sizes = [2, 8, 8], strides = [1, 1, 1]} : vector<8x8x8xf32> to vector<2x8x8xf32>
    %320 = vector.extract_strided_slice %318 {offsets = [2, 0, 0], sizes = [2, 8, 8], strides = [1, 1, 1]} : vector<8x8x8xf32> to vector<2x8x8xf32>
    %321 = vector.extract_strided_slice %318 {offsets = [4, 0, 0], sizes = [2, 8, 8], strides = [1, 1, 1]} : vector<8x8x8xf32> to vector<2x8x8xf32>
    %322 = vector.extract_strided_slice %318 {offsets = [6, 0, 0], sizes = [2, 8, 8], strides = [1, 1, 1]} : vector<8x8x8xf32> to vector<2x8x8xf32>
    %323 = tpu.concatenate %319, %320, %321, %322 in 2 : vector<2x8x8xf32>, vector<2x8x8xf32>, vector<2x8x8xf32>, vector<2x8x8xf32> -> vector<2x8x32xf32>
    %324 = vector.shape_cast %323 : vector<2x8x32xf32> to vector<16x32xf32>
    %325 = vector.extract_strided_slice %245 {offsets = [6, 0], sizes = [1, 32], strides = [1, 1]} : vector<11x32xf32> to vector<1x32xf32>
    %326 = vector.extract_strided_slice %245 {offsets = [7, 0], sizes = [1, 32], strides = [1, 1]} : vector<11x32xf32> to vector<1x32xf32>
    %cst_102 = arith.constant dense<0.000000e+00> : vector<16xf32>
    %327 = vector.multi_reduction <add>, %324, %cst_102 [1] : vector<16x32xf32> to vector<16xf32>
    %328 = vector.shape_cast %327 : vector<16xf32> to vector<16x1xf32>
    %cst_103 = arith.constant 3.200000e+01 : f32
    %329 = vector.broadcast %cst_103 : f32 to vector<16x1xf32>
    %330 = arith.divf %328, %329 : vector<16x1xf32>
    %331 = vector.broadcast %330 : vector<16x1xf32> to vector<16x32xf32>
    %332 = arith.subf %324, %331 : vector<16x32xf32>
    %333 = arith.mulf %332, %332 : vector<16x32xf32>
    %cst_104 = arith.constant dense<0.000000e+00> : vector<16xf32>
    %334 = vector.multi_reduction <add>, %333, %cst_104 [1] : vector<16x32xf32> to vector<16xf32>
    %335 = vector.shape_cast %334 : vector<16xf32> to vector<16x1xf32>
    %cst_105 = arith.constant 3.200000e+01 : f32
    %336 = vector.broadcast %cst_105 : f32 to vector<16x1xf32>
    %337 = arith.divf %335, %336 : vector<16x1xf32>
    %cst_106 = arith.constant 9.99999974E-6 : f32
    %338 = vector.broadcast %cst_106 : f32 to vector<16x1xf32>
    %339 = arith.addf %337, %338 : vector<16x1xf32>
    %340 = math.rsqrt %339 : vector<16x1xf32>
    %341 = vector.broadcast %340 : vector<16x1xf32> to vector<16x32xf32>
    %342 = arith.mulf %332, %341 : vector<16x32xf32>
    %343 = vector.broadcast %325 : vector<1x32xf32> to vector<16x32xf32>
    %344 = arith.mulf %342, %343 : vector<16x32xf32>
    %345 = vector.broadcast %326 : vector<1x32xf32> to vector<16x32xf32>
    %346 = arith.addf %344, %345 : vector<16x32xf32>
    %c0_107 = arith.constant 0 : index
    %c1_108 = arith.constant 1 : index
    %c0_109 = arith.constant 0 : index
    %c0_110 = arith.constant 0 : index
    %347 = vector.load %arg9[%c0_107, %c1_108, %c0_109, %c0_110] : memref<1x2x32x32xf32, #tpu.memory_space<vmem>>, vector<1x1x32x32xf32>
    %348 = vector.shape_cast %347 : vector<1x1x32x32xf32> to vector<32x32xf32>
    %cst_111 = arith.constant dense<0.000000e+00> : vector<16x32xf32>
    %349 = tpu.matmul %346, %348, %cst_111 {dimension_numbers = #tpu.dot_dimension_numbers<[1], [0], [0], [1], [0, 0, 1, 1], [], []>} : vector<16x32xf32>, vector<32x32xf32>, vector<16x32xf32> -> vector<16x32xf32>
    %350 = vector.extract_strided_slice %245 {offsets = [5, 0], sizes = [1, 32], strides = [1, 1]} : vector<11x32xf32> to vector<1x32xf32>
    %351 = vector.broadcast %350 : vector<1x32xf32> to vector<16x32xf32>
    %352 = arith.addf %349, %351 : vector<16x32xf32>
    %353 = arith.addf %243, %352 : vector<16x32xf32>
    %354 = vector.extract_strided_slice %245 {offsets = [8, 0], sizes = [1, 32], strides = [1, 1]} : vector<11x32xf32> to vector<1x32xf32>
    %355 = vector.extract_strided_slice %245 {offsets = [9, 0], sizes = [1, 32], strides = [1, 1]} : vector<11x32xf32> to vector<1x32xf32>
    %cst_112 = arith.constant dense<0.000000e+00> : vector<16xf32>
    %356 = vector.multi_reduction <add>, %353, %cst_112 [1] : vector<16x32xf32> to vector<16xf32>
    %357 = vector.shape_cast %356 : vector<16xf32> to vector<16x1xf32>
    %cst_113 = arith.constant 3.200000e+01 : f32
    %358 = vector.broadcast %cst_113 : f32 to vector<16x1xf32>
    %359 = arith.divf %357, %358 : vector<16x1xf32>
    %360 = vector.broadcast %359 : vector<16x1xf32> to vector<16x32xf32>
    %361 = arith.subf %353, %360 : vector<16x32xf32>
    %362 = arith.mulf %361, %361 : vector<16x32xf32>
    %cst_114 = arith.constant dense<0.000000e+00> : vector<16xf32>
    %363 = vector.multi_reduction <add>, %362, %cst_114 [1] : vector<16x32xf32> to vector<16xf32>
    %364 = vector.shape_cast %363 : vector<16xf32> to vector<16x1xf32>
    %cst_115 = arith.constant 3.200000e+01 : f32
    %365 = vector.broadcast %cst_115 : f32 to vector<16x1xf32>
    %366 = arith.divf %364, %365 : vector<16x1xf32>
    %cst_116 = arith.constant 9.99999974E-6 : f32
    %367 = vector.broadcast %cst_116 : f32 to vector<16x1xf32>
    %368 = arith.addf %366, %367 : vector<16x1xf32>
    %369 = math.rsqrt %368 : vector<16x1xf32>
    %370 = vector.broadcast %369 : vector<16x1xf32> to vector<16x32xf32>
    %371 = arith.mulf %361, %370 : vector<16x32xf32>
    %372 = vector.broadcast %354 : vector<1x32xf32> to vector<16x32xf32>
    %373 = arith.mulf %371, %372 : vector<16x32xf32>
    %374 = vector.broadcast %355 : vector<1x32xf32> to vector<16x32xf32>
    %375 = arith.addf %373, %374 : vector<16x32xf32>
    %c0_117 = arith.constant 0 : index
    %c1_118 = arith.constant 1 : index
    %c0_119 = arith.constant 0 : index
    %c0_120 = arith.constant 0 : index
    %376 = vector.load %arg12[%c0_117, %c1_118, %c0_119, %c0_120] : memref<1x2x32x64xf32, #tpu.memory_space<vmem>>, vector<1x1x32x64xf32>
    %377 = vector.shape_cast %376 : vector<1x1x32x64xf32> to vector<32x64xf32>
    %cst_121 = arith.constant dense<0.000000e+00> : vector<16x64xf32>
    %378 = tpu.matmul %375, %377, %cst_121 {dimension_numbers = #tpu.dot_dimension_numbers<[1], [0], [0], [1], [0, 0, 1, 1], [], []>} : vector<16x32xf32>, vector<32x64xf32>, vector<16x64xf32> -> vector<16x64xf32>
    %379 = vector.extract_strided_slice %247 {offsets = [0, 0], sizes = [1, 64], strides = [1, 1]} : vector<3x64xf32> to vector<1x64xf32>
    %380 = vector.broadcast %379 : vector<1x64xf32> to vector<16x64xf32>
    %381 = arith.addf %378, %380 : vector<16x64xf32>
    %cst_122 = arith.constant 5.000000e-01 : f32
    %382 = vector.broadcast %cst_122 : f32 to vector<16x64xf32>
    %383 = arith.mulf %382, %381 : vector<16x64xf32>
    %cst_123 = arith.constant 0.707106769 : f32
    %384 = vector.broadcast %cst_123 : f32 to vector<16x64xf32>
    %385 = arith.mulf %381, %384 : vector<16x64xf32>
    %386 = math.absf %385 : vector<16x64xf32>
    %cst_124 = arith.constant 0.327591091 : f32
    %387 = vector.broadcast %cst_124 : f32 to vector<16x64xf32>
    %388 = arith.mulf %387, %386 : vector<16x64xf32>
    %cst_125 = arith.constant 1.000000e+00 : f32
    %389 = vector.broadcast %cst_125 : f32 to vector<16x64xf32>
    %390 = arith.addf %389, %388 : vector<16x64xf32>
    %cst_126 = arith.constant 1.000000e+00 : f32
    %391 = vector.broadcast %cst_126 : f32 to vector<16x64xf32>
    %392 = arith.divf %391, %390 : vector<16x64xf32>
    %cst_127 = arith.constant 1.06140542 : f32
    %393 = vector.broadcast %cst_127 : f32 to vector<16x64xf32>
    %394 = arith.mulf %393, %392 : vector<16x64xf32>
    %cst_128 = arith.constant -1.45315206 : f32
    %395 = vector.broadcast %cst_128 : f32 to vector<16x64xf32>
    %396 = arith.addf %394, %395 : vector<16x64xf32>
    %397 = arith.mulf %396, %392 : vector<16x64xf32>
    %cst_129 = arith.constant 1.42141378 : f32
    %398 = vector.broadcast %cst_129 : f32 to vector<16x64xf32>
    %399 = arith.addf %397, %398 : vector<16x64xf32>
    %400 = arith.mulf %399, %392 : vector<16x64xf32>
    %cst_130 = arith.constant -0.284496725 : f32
    %401 = vector.broadcast %cst_130 : f32 to vector<16x64xf32>
    %402 = arith.addf %400, %401 : vector<16x64xf32>
    %403 = arith.mulf %402, %392 : vector<16x64xf32>
    %cst_131 = arith.constant 0.254829586 : f32
    %404 = vector.broadcast %cst_131 : f32 to vector<16x64xf32>
    %405 = arith.addf %403, %404 : vector<16x64xf32>
    %406 = arith.mulf %405, %392 : vector<16x64xf32>
    %407 = arith.mulf %386, %386 : vector<16x64xf32>
    %cst_132 = arith.constant 0.000000e+00 : f32
    %408 = vector.broadcast %cst_132 : f32 to vector<16x64xf32>
    %409 = arith.subf %408, %407 : vector<16x64xf32>
    %410 = math.exp %409 : vector<16x64xf32>
    %411 = arith.mulf %406, %410 : vector<16x64xf32>
    %cst_133 = arith.constant 1.000000e+00 : f32
    %412 = vector.broadcast %cst_133 : f32 to vector<16x64xf32>
    %413 = arith.subf %412, %411 : vector<16x64xf32>
    %cst_134 = arith.constant 0.000000e+00 : f32
    %414 = vector.broadcast %cst_134 : f32 to vector<16x64xf32>
    %415 = arith.cmpf oge, %385, %414 : vector<16x64xf32>
    %cst_135 = arith.constant 0.000000e+00 : f32
    %416 = vector.broadcast %cst_135 : f32 to vector<16x64xf32>
    %417 = arith.subf %416, %413 : vector<16x64xf32>
    %418 = arith.select %415, %413, %417 : vector<16x64xi1>, vector<16x64xf32>
    %cst_136 = arith.constant 1.000000e+00 : f32
    %419 = vector.broadcast %cst_136 : f32 to vector<16x64xf32>
    %420 = arith.addf %419, %418 : vector<16x64xf32>
    %421 = arith.mulf %383, %420 : vector<16x64xf32>
    %422 = vector.extract_strided_slice %247 {offsets = [1, 0], sizes = [1, 64], strides = [1, 1]} : vector<3x64xf32> to vector<1x64xf32>
    %423 = vector.extract_strided_slice %247 {offsets = [2, 0], sizes = [1, 64], strides = [1, 1]} : vector<3x64xf32> to vector<1x64xf32>
    %cst_137 = arith.constant dense<0.000000e+00> : vector<16xf32>
    %424 = vector.multi_reduction <add>, %421, %cst_137 [1] : vector<16x64xf32> to vector<16xf32>
    %425 = vector.shape_cast %424 : vector<16xf32> to vector<16x1xf32>
    %cst_138 = arith.constant 6.400000e+01 : f32
    %426 = vector.broadcast %cst_138 : f32 to vector<16x1xf32>
    %427 = arith.divf %425, %426 : vector<16x1xf32>
    %428 = vector.broadcast %427 : vector<16x1xf32> to vector<16x64xf32>
    %429 = arith.subf %421, %428 : vector<16x64xf32>
    %430 = arith.mulf %429, %429 : vector<16x64xf32>
    %cst_139 = arith.constant dense<0.000000e+00> : vector<16xf32>
    %431 = vector.multi_reduction <add>, %430, %cst_139 [1] : vector<16x64xf32> to vector<16xf32>
    %432 = vector.shape_cast %431 : vector<16xf32> to vector<16x1xf32>
    %cst_140 = arith.constant 6.400000e+01 : f32
    %433 = vector.broadcast %cst_140 : f32 to vector<16x1xf32>
    %434 = arith.divf %432, %433 : vector<16x1xf32>
    %cst_141 = arith.constant 9.99999974E-6 : f32
    %435 = vector.broadcast %cst_141 : f32 to vector<16x1xf32>
    %436 = arith.addf %434, %435 : vector<16x1xf32>
    %437 = math.rsqrt %436 : vector<16x1xf32>
    %438 = vector.broadcast %437 : vector<16x1xf32> to vector<16x64xf32>
    %439 = arith.mulf %429, %438 : vector<16x64xf32>
    %440 = vector.broadcast %422 : vector<1x64xf32> to vector<16x64xf32>
    %441 = arith.mulf %439, %440 : vector<16x64xf32>
    %442 = vector.broadcast %423 : vector<1x64xf32> to vector<16x64xf32>
    %443 = arith.addf %441, %442 : vector<16x64xf32>
    %c0_142 = arith.constant 0 : index
    %c1_143 = arith.constant 1 : index
    %c0_144 = arith.constant 0 : index
    %c0_145 = arith.constant 0 : index
    %444 = vector.load %arg13[%c0_142, %c1_143, %c0_144, %c0_145] : memref<1x2x64x32xf32, #tpu.memory_space<vmem>>, vector<1x1x64x32xf32>
    %445 = vector.shape_cast %444 : vector<1x1x64x32xf32> to vector<64x32xf32>
    %cst_146 = arith.constant dense<0.000000e+00> : vector<16x32xf32>
    %446 = tpu.matmul %443, %445, %cst_146 {dimension_numbers = #tpu.dot_dimension_numbers<[1], [0], [0], [1], [0, 0, 1, 1], [], []>} : vector<16x64xf32>, vector<64x32xf32>, vector<16x32xf32> -> vector<16x32xf32>
    %447 = vector.extract_strided_slice %245 {offsets = [10, 0], sizes = [1, 32], strides = [1, 1]} : vector<11x32xf32> to vector<1x32xf32>
    %448 = vector.broadcast %447 : vector<1x32xf32> to vector<16x32xf32>
    %449 = arith.addf %446, %448 : vector<16x32xf32>
    %450 = arith.addf %353, %449 : vector<16x32xf32>
    %c0_147 = arith.constant 0 : index
    %c0_148 = arith.constant 0 : index
    %c0_149 = arith.constant 0 : index
    %451 = vector.load %arg14[%c0_147, %c0_148, %c0_149] : memref<1x2x32xf32, #tpu.memory_space<vmem>>, vector<1x2x32xf32>
    %452 = vector.shape_cast %451 : vector<1x2x32xf32> to vector<2x32xf32>
    %453 = vector.extract_strided_slice %452 {offsets = [0, 0], sizes = [1, 32], strides = [1, 1]} : vector<2x32xf32> to vector<1x32xf32>
    %454 = vector.extract_strided_slice %452 {offsets = [1, 0], sizes = [1, 32], strides = [1, 1]} : vector<2x32xf32> to vector<1x32xf32>
    %cst_150 = arith.constant dense<0.000000e+00> : vector<16xf32>
    %455 = vector.multi_reduction <add>, %450, %cst_150 [1] : vector<16x32xf32> to vector<16xf32>
    %456 = vector.shape_cast %455 : vector<16xf32> to vector<16x1xf32>
    %cst_151 = arith.constant 3.200000e+01 : f32
    %457 = vector.broadcast %cst_151 : f32 to vector<16x1xf32>
    %458 = arith.divf %456, %457 : vector<16x1xf32>
    %459 = vector.broadcast %458 : vector<16x1xf32> to vector<16x32xf32>
    %460 = arith.subf %450, %459 : vector<16x32xf32>
    %461 = arith.mulf %460, %460 : vector<16x32xf32>
    %cst_152 = arith.constant dense<0.000000e+00> : vector<16xf32>
    %462 = vector.multi_reduction <add>, %461, %cst_152 [1] : vector<16x32xf32> to vector<16xf32>
    %463 = vector.shape_cast %462 : vector<16xf32> to vector<16x1xf32>
    %cst_153 = arith.constant 3.200000e+01 : f32
    %464 = vector.broadcast %cst_153 : f32 to vector<16x1xf32>
    %465 = arith.divf %463, %464 : vector<16x1xf32>
    %cst_154 = arith.constant 9.99999974E-6 : f32
    %466 = vector.broadcast %cst_154 : f32 to vector<16x1xf32>
    %467 = arith.addf %465, %466 : vector<16x1xf32>
    %468 = math.rsqrt %467 : vector<16x1xf32>
    %469 = vector.broadcast %468 : vector<16x1xf32> to vector<16x32xf32>
    %470 = arith.mulf %460, %469 : vector<16x32xf32>
    %471 = vector.broadcast %453 : vector<1x32xf32> to vector<16x32xf32>
    %472 = arith.mulf %470, %471 : vector<16x32xf32>
    %473 = vector.broadcast %454 : vector<1x32xf32> to vector<16x32xf32>
    %474 = arith.addf %472, %473 : vector<16x32xf32>
    %475 = vector.shape_cast %474 : vector<16x32xf32> to vector<2x8x32xf32>
    %476 = vector.extract_strided_slice %475 {offsets = [0, 0, 0], sizes = [2, 1, 32], strides = [1, 1, 1]} : vector<2x8x32xf32> to vector<2x1x32xf32>
    %477 = vector.shape_cast %476 : vector<2x1x32xf32> to vector<2x32xf32>
    %c0_155 = arith.constant 0 : index
    %c0_156 = arith.constant 0 : index
    %c0_157 = arith.constant 0 : index
    %478 = vector.load %arg15[%c0_155, %c0_156, %c0_157] : memref<1x32x32xf32, #tpu.memory_space<vmem>>, vector<1x32x32xf32>
    %479 = vector.shape_cast %478 : vector<1x32x32xf32> to vector<32x32xf32>
    %cst_158 = arith.constant dense<0.000000e+00> : vector<2x32xf32>
    %480 = tpu.matmul %477, %479, %cst_158 {dimension_numbers = #tpu.dot_dimension_numbers<[1], [0], [0], [1], [0, 0, 1, 1], [], []>} : vector<2x32xf32>, vector<32x32xf32>, vector<2x32xf32> -> vector<2x32xf32>
    %481 = arith.mulf %480, %480 : vector<2x32xf32>
    %cst_159 = arith.constant dense<0.000000e+00> : vector<2xf32>
    %482 = vector.multi_reduction <add>, %481, %cst_159 [1] : vector<2x32xf32> to vector<2xf32>
    %483 = vector.shape_cast %482 : vector<2xf32> to vector<2x1xf32>
    %cst_160 = arith.constant 1.000000e-24 : f32
    %484 = vector.broadcast %cst_160 : f32 to vector<2x1xf32>
    %485 = arith.maximumf %483, %484 : vector<2x1xf32>
    %486 = math.rsqrt %485 : vector<2x1xf32>
    %487 = vector.broadcast %486 : vector<2x1xf32> to vector<2x32xf32>
    %488 = arith.mulf %480, %487 : vector<2x32xf32>
    %c0_161 = arith.constant 0 : index
    %c0_162 = arith.constant 0 : index
    %c0_163 = arith.constant 0 : index
    %489 = vector.load %arg16[%c0_161, %c0_162, %c0_163] : memref<1x2x32xf32, #tpu.memory_space<vmem>>, vector<1x2x32xf32>
    %490 = vector.shape_cast %489 : vector<1x2x32xf32> to vector<2x32xf32>
    %491 = vector.shape_cast %488 : vector<2x32xf32> to vector<1x2x32xf32>
    tpu.vector_store %arg16[%c0_161, %c0_162, %c0_163], %491 {strides = array<i32>} : memref<1x2x32xf32, #tpu.memory_space<vmem>>, vector<1x2x32xf32>,
    return
  }
  func.func @transform_0(%arg0: i32) -> (i32, i32) {
    %c0_i32 = arith.constant 0 : i32
    %c0_i32_0 = arith.constant 0 : i32
    %c0_i32_1 = arith.constant 0 : i32
    return %c0_i32, %c0_i32_0 : i32, i32
  }
  func.func @transform_1(%arg0: i32) -> (i32, i32) {
    %c0_i32 = arith.constant 0 : i32
    %c0_i32_0 = arith.constant 0 : i32
    %c0_i32_1 = arith.constant 0 : i32
    return %c0_i32, %c0_i32_0 : i32, i32
  }
  func.func @transform_2(%arg0: i32) -> (i32, i32) {
    %c0_i32 = arith.constant 0 : i32
    %c0_i32_0 = arith.constant 0 : i32
    %c0_i32_1 = arith.constant 0 : i32
    return %c0_i32, %c0_i32_0 : i32, i32
  }
  func.func @transform_3(%arg0: i32) -> (i32, i32) {
    %c0_i32 = arith.constant 0 : i32
    %c0_i32_0 = arith.constant 0 : i32
    %c0_i32_1 = arith.constant 0 : i32
    return %c0_i32, %c0_i32_0 : i32, i32
  }
  func.func @transform_4(%arg0: i32) -> (i32, i32) {
    %c0_i32 = arith.constant 0 : i32
    %c0_i32_0 = arith.constant 0 : i32
    %c0_i32_1 = arith.constant 0 : i32
    return %c0_i32, %c0_i32_0 : i32, i32
  }
  func.func @transform_5(%arg0: i32) -> (i32, i32) {
    %c0_i32 = arith.constant 0 : i32
    %c0_i32_0 = arith.constant 0 : i32
    %c0_i32_1 = arith.constant 0 : i32
    return %c0_i32, %c0_i32_0 : i32, i32
  }
  func.func @transform_6(%arg0: i32) -> (i32, i32, i32) {
    %c0_i32 = arith.constant 0 : i32
    %c0_i32_0 = arith.constant 0 : i32
    %c0_i32_1 = arith.constant 0 : i32
    return %arg0, %c0_i32, %c0_i32_0 : i32, i32, i32
  }
  func.func @transform_7(%arg0: i32) -> (i32, i32, i32, i32) {
    %c0_i32 = arith.constant 0 : i32
    %c0_i32_0 = arith.constant 0 : i32
    %c0_i32_1 = arith.constant 0 : i32
    %c0_i32_2 = arith.constant 0 : i32
    return %arg0, %c0_i32, %c0_i32_0, %c0_i32_1 : i32, i32, i32, i32
  }
  func.func @transform_8(%arg0: i32) -> (i32, i32, i32, i32) {
    %c0_i32 = arith.constant 0 : i32
    %c0_i32_0 = arith.constant 0 : i32
    %c0_i32_1 = arith.constant 0 : i32
    %c0_i32_2 = arith.constant 0 : i32
    return %arg0, %c0_i32, %c0_i32_0, %c0_i32_1 : i32, i32, i32, i32
  }
  func.func @transform_9(%arg0: i32) -> (i32, i32, i32, i32) {
    %c0_i32 = arith.constant 0 : i32
    %c0_i32_0 = arith.constant 0 : i32
    %c0_i32_1 = arith.constant 0 : i32
    %c0_i32_2 = arith.constant 0 : i32
    return %arg0, %c0_i32, %c0_i32_0, %c0_i32_1 : i32, i32, i32, i32
  }
  func.func @transform_10(%arg0: i32) -> (i32, i32, i32, i32) {
    %c0_i32 = arith.constant 0 : i32
    %c0_i32_0 = arith.constant 0 : i32
    %c0_i32_1 = arith.constant 0 : i32
    %c0_i32_2 = arith.constant 0 : i32
    return %arg0, %c0_i32, %c0_i32_0, %c0_i32_1 : i32, i32, i32, i32
  }
  func.func @transform_11(%arg0: i32) -> (i32, i32, i32, i32) {
    %c0_i32 = arith.constant 0 : i32
    %c0_i32_0 = arith.constant 0 : i32
    %c0_i32_1 = arith.constant 0 : i32
    %c0_i32_2 = arith.constant 0 : i32
    return %arg0, %c0_i32, %c0_i32_0, %c0_i32_1 : i32, i32, i32, i32
  }
  func.func @transform_12(%arg0: i32) -> (i32, i32, i32, i32) {
    %c0_i32 = arith.constant 0 : i32
    %c0_i32_0 = arith.constant 0 : i32
    %c0_i32_1 = arith.constant 0 : i32
    %c0_i32_2 = arith.constant 0 : i32
    return %arg0, %c0_i32, %c0_i32_0, %c0_i32_1 : i32, i32, i32, i32
  }
  func.func @transform_13(%arg0: i32) -> (i32, i32, i32) {
    %c0_i32 = arith.constant 0 : i32
    %c0_i32_0 = arith.constant 0 : i32
    %c0_i32_1 = arith.constant 0 : i32
    return %arg0, %c0_i32, %c0_i32_0 : i32, i32, i32
  }
  func.func @transform_14(%arg0: i32) -> (i32, i32, i32) {
    %c0_i32 = arith.constant 0 : i32
    %c0_i32_0 = arith.constant 0 : i32
    %c0_i32_1 = arith.constant 0 : i32
    return %arg0, %c0_i32, %c0_i32_0 : i32, i32, i32
  }
  func.func @transform_15(%arg0: i32) -> (i32, i32, i32) {
    %c0_i32 = arith.constant 0 : i32
    %c0_i32_0 = arith.constant 0 : i32
    %c0_i32_1 = arith.constant 0 : i32
    return %arg0, %c0_i32, %c0_i32_0 : i32, i32, i32
  }
}

</mosaic_0001>

<llo_original>
// kernel: beit3_retrieval_forward.1
$region0: #{beit3_retrieval_forward.1}
  #allocation0 [shape = 'u32[]', space=smem, size = 0x4, offset = 0x4, fixed_abs, tag = 'smem constant byte address 0x4 - core index']
  #allocation1 [shape = 'u32[144,128]{1,0:T(1,128)}', space=vmem, size = 0x12000, scoped, tag = 'internal scratch']
  #allocation2 [shape = 'f32[2,8,32]{2,1,0:T(8,128)}', space=vmem, size = 0x2000, scoped, tag = 'scratch operand']
  %s0 = inlined_call_operand.vmem [shape: f32[8,192], index: 0, kind: input, shape index: {}]
  %s1 = inlined_call_operand.vmem [shape: f32[192,32], index: 1, kind: input, shape index: {}]
  %s2 = inlined_call_operand.vmem [shape: f32[2,32], index: 2, kind: input, shape index: {}]
  %s3 = inlined_call_operand.vmem [shape: s32[16,1], index: 3, kind: input, shape index: {}]
  %s4 = inlined_call_operand.vmem [shape: f32[64,32], index: 4, kind: input, shape index: {}]
  %s5 = inlined_call_operand.vmem [shape: f32[2,8], index: 5, kind: input, shape index: {}]
  %s6 = inlined_call_operand.vmem [shape: f32[2,8,32], index: 6, kind: input, shape index: {}]
  %s7 = inlined_call_operand.vmem [shape: f32[2,2,32,96], index: 7, kind: input, shape index: {}]
  %s8 = inlined_call_operand.vmem [shape: f32[2,2,32,32], index: 8, kind: input, shape index: {}]
  %s9 = inlined_call_operand.vmem [shape: f32[2,2,11,32], index: 9, kind: input, shape index: {}]
  %s10 = inlined_call_operand.vmem [shape: f32[2,2,3,64], index: 10, kind: input, shape index: {}]
  %s11 = inlined_call_operand.vmem [shape: f32[2,2,32,64], index: 11, kind: input, shape index: {}]
  %s12 = inlined_call_operand.vmem [shape: f32[2,2,64,32], index: 12, kind: input, shape index: {}]
  %s13 = inlined_call_operand.vmem [shape: f32[2,2,32], index: 13, kind: input, shape index: {}]
  %s14 = inlined_call_operand.vmem [shape: f32[2,32,32], index: 14, kind: input, shape index: {}]
  %s15 = inlined_call_operand.vmem [shape: f32[2,2,32], index: 15, kind: output, shape index: {}]
  %s16 = sld [smem:[#allocation0]]
  $region101: #{beit3_retrieval_forward.1} parent=0
    _
  %s18 = ssub.s32 1, %s16
  %s19 = scalar_select 0, %s18, %s16
  loop: start=0, step=1, limit=4
  $region2: #{beit3_retrieval_forward.1} parent=0 // loop_pre_header
    _
  $region3: #{beit3_retrieval_forward.1} parent=0 // loop_header
    %s21 = sphi 0, %s25
    %p22 = scmp.ge.s32.totalorder %s21, 4
    %s29 = sphi 0, %s29
    %s31 = sphi 0, %s29
    %s32 = sphi 0, %s31
    %s46 = sphi 0, %s32
    %s50 = sphi 0, %s50
    %s52 = sphi 0, %s50
    %s53 = sphi 0, %s52
    %s67 = sphi 0, %s53
    %s71 = sphi 0, %s71
    %s73 = sphi 0, %s71
    %s74 = sphi 0, %s73
    %s88 = sphi 0, %s74
    %s92 = sphi 0, %s92
    %s94 = sphi 0, %s92
    %s95 = sphi 0, %s94
    %s109 = sphi 0, %s95
    %s113 = sphi 0, %s113
    %s115 = sphi 0, %s113
    %s116 = sphi 0, %s115
    %s130 = sphi 0, %s116
    %s134 = sphi 0, %s134
    %s136 = sphi 0, %s134
    %s137 = sphi 0, %s136
    %s151 = sphi 0, %s137
    %s157 = sphi 0, %s159
    %s160 = sphi 0, %s157
    %s161 = sphi 0, %s160
    %s177 = sphi 0, %s161
    %s183 = sphi 0, %s185
    %s186 = sphi 0, %s183
    %s187 = sphi 0, %s186
    %s203 = sphi 0, %s187
    %s209 = sphi 0, %s211
    %s212 = sphi 0, %s209
    %s213 = sphi 0, %s212
    %s229 = sphi 0, %s213
    %s235 = sphi 0, %s237
    %s238 = sphi 0, %s235
    %s239 = sphi 0, %s238
    %s255 = sphi 0, %s239
    %s261 = sphi 0, %s263
    %s264 = sphi 0, %s261
    %s265 = sphi 0, %s264
    %s281 = sphi 0, %s265
    %s287 = sphi 0, %s289
    %s290 = sphi 0, %s287
    %s291 = sphi 0, %s290
    %s307 = sphi 0, %s291
    %s313 = sphi 0, %s315
    %s316 = sphi 0, %s313
    %s317 = sphi 0, %s316
    %s333 = sphi 0, %s317
    %s339 = sphi 0, %s341
    %s342 = sphi 0, %s339
    %s343 = sphi 0, %s342
    %s359 = sphi 0, %s343
    %s365 = sphi 0, %s367
    %s368 = sphi 0, %s365
    %s369 = sphi 0, %s368
    %s385 = sphi 0, %s369
    %s391 = sphi 0, %s393
    %s394 = sphi 0, %s391
    %s395 = sphi 0, %s394
    %s411 = sphi 0, %s395
  $region4: #{beit3_retrieval_forward.1} parent=0 // loop_header_branch
    %24 = sbr.rel (%p22) target = $region8
  $region5: #{beit3_retrieval_forward.1} parent=0 // loop_body
    %s26 = ssub.s32 %s21, 1
    %s27 = ssub.s32 %s21, 2
    %s28 = sadd.s32 %s21, 1
    %s30 = sadd.s32 %s29, 1
    %p33 = scmp.eq.s32.totalorder %s21, 1
    %p34 = scmp.ne.s32.totalorder %s29, %s31
    %p35 = scmp.eq.s32.totalorder %s21, 0
    %p36 = por %p34, %p35
    %p37 = scmp.ne.s32.totalorder %s29, %s31
    %p38 = scmp.eq.s32.totalorder %s26, 1
    %p39 = por %p37, %p38
    %p40 = scmp.ne.s32.totalorder %s31, %s32
    %p41 = scmp.eq.s32.totalorder %s26, 0
    %p42 = por %p40, %p41
    %p43 = scmp.ne.s32.totalorder %s31, %s32
    %p44 = scmp.eq.s32.totalorder %s27, 1
    %p45 = por %p43, %p44
    %p47 = scmp.ne.s32.totalorder %s32, %s46
    %p48 = scmp.eq.s32.totalorder %s27, 0
    %p49 = por %p47, %p48
    %s51 = sadd.s32 %s50, 1
    %p54 = scmp.eq.s32.totalorder %s21, 1
    %p55 = scmp.ne.s32.totalorder %s50, %s52
    %p56 = scmp.eq.s32.totalorder %s21, 0
    %p57 = por %p55, %p56
    %p58 = scmp.ne.s32.totalorder %s50, %s52
    %p59 = scmp.eq.s32.totalorder %s26, 1
    %p60 = por %p58, %p59
    %p61 = scmp.ne.s32.totalorder %s52, %s53
    %p62 = scmp.eq.s32.totalorder %s26, 0
    %p63 = por %p61, %p62
    %p64 = scmp.ne.s32.totalorder %s52, %s53
    %p65 = scmp.eq.s32.totalorder %s27, 1
    %p66 = por %p64, %p65
    %p68 = scmp.ne.s32.totalorder %s53, %s67
    %p69 = scmp.eq.s32.totalorder %s27, 0
    %p70 = por %p68, %p69
    %s72 = sadd.s32 %s71, 1
    %p75 = scmp.eq.s32.totalorder %s21, 1
    %p76 = scmp.ne.s32.totalorder %s71, %s73
    %p77 = scmp.eq.s32.totalorder %s21, 0
    %p78 = por %p76, %p77
    %p79 = scmp.ne.s32.totalorder %s71, %s73
    %p80 = scmp.eq.s32.totalorder %s26, 1
    %p81 = por %p79, %p80
    %p82 = scmp.ne.s32.totalorder %s73, %s74
    %p83 = scmp.eq.s32.totalorder %s26, 0
    %p84 = por %p82, %p83
    %p85 = scmp.ne.s32.totalorder %s73, %s74
    %p86 = scmp.eq.s32.totalorder %s27, 1
    %p87 = por %p85, %p86
    %p89 = scmp.ne.s32.totalorder %s74, %s88
    %p90 = scmp.eq.s32.totalorder %s27, 0
    %p91 = por %p89, %p90
    %s93 = sadd.s32 %s92, 1
    %p96 = scmp.eq.s32.totalorder %s21, 1
    %p97 = scmp.ne.s32.totalorder %s92, %s94
    %p98 = scmp.eq.s32.totalorder %s21, 0
    %p99 = por %p97, %p98
    %p100 = scmp.ne.s32.totalorder %s92, %s94
    %p101 = scmp.eq.s32.totalorder %s26, 1
    %p102 = por %p100, %p101
    %p103 = scmp.ne.s32.totalorder %s94, %s95
    %p104 = scmp.eq.s32.totalorder %s26, 0
    %p105 = por %p103, %p104
    %p106 = scmp.ne.s32.totalorder %s94, %s95
    %p107 = scmp.eq.s32.totalorder %s27, 1
    %p108 = por %p106, %p107
    %p110 = scmp.ne.s32.totalorder %s95, %s109
    %p111 = scmp.eq.s32.totalorder %s27, 0
    %p112 = por %p110, %p111
    %s114 = sadd.s32 %s113, 1
    %p117 = scmp.eq.s32.totalorder %s21, 1
    %p118 = scmp.ne.s32.totalorder %s113, %s115
    %p119 = scmp.eq.s32.totalorder %s21, 0
    %p120 = por %p118, %p119
    %p121 = scmp.ne.s32.totalorder %s113, %s115
    %p122 = scmp.eq.s32.totalorder %s26, 1
    %p123 = por %p121, %p122
    %p124 = scmp.ne.s32.totalorder %s115, %s116
    %p125 = scmp.eq.s32.totalorder %s26, 0
    %p126 = por %p124, %p125
    %p127 = scmp.ne.s32.totalorder %s115, %s116
    %p128 = scmp.eq.s32.totalorder %s27, 1
    %p129 = por %p127, %p128
    %p131 = scmp.ne.s32.totalorder %s116, %s130
    %p132 = scmp.eq.s32.totalorder %s27, 0
    %p133 = por %p131, %p132
    %s135 = sadd.s32 %s134, 1
    %p138 = scmp.eq.s32.totalorder %s21, 1
    %p139 = scmp.ne.s32.totalorder %s134, %s136
    %p140 = scmp.eq.s32.totalorder %s21, 0
    %p141 = por %p139, %p140
    %p142 = scmp.ne.s32.totalorder %s134, %s136
    %p143 = scmp.eq.s32.totalorder %s26, 1
    %p144 = por %p142, %p143
    %p145 = scmp.ne.s32.totalorder %s136, %s137
    %p146 = scmp.eq.s32.totalorder %s26, 0
    %p147 = por %p145, %p146
    %p148 = scmp.ne.s32.totalorder %s136, %s137
    %p149 = scmp.eq.s32.totalorder %s27, 1
    %p150 = por %p148, %p149
    %p152 = scmp.ne.s32.totalorder %s137, %s151
    %p153 = scmp.eq.s32.totalorder %s27, 0
    %p154 = por %p152, %p153
    %s155 = ssub.s32 %s21, %s28
    %p156 = scmp.eq.s32.totalorder %s155, 0
    %s158 = sadd.s32 %s157, 1
    %s159 = scalar_select %p156, %s157, %s158
    %p162 = pneg %p156
    %p163 = scmp.eq.s32.totalorder %s21, 1
    %p164 = por %p162, %p163
    %p165 = scmp.ne.s32.totalorder %s157, %s160
    %p166 = scmp.eq.s32.totalorder %s21, 0
    %p167 = por %p165, %p166
    %p168 = scmp.ne.s32.totalorder %s157, %s160
    %p169 = scmp.eq.s32.totalorder %s26, 1
    %p170 = por %p168, %p169
    %p171 = scmp.ne.s32.totalorder %s160, %s161
    %p172 = scmp.eq.s32.totalorder %s26, 0
    %p173 = por %p171, %p172
    %p174 = scmp.ne.s32.totalorder %s160, %s161
    %p175 = scmp.eq.s32.totalorder %s27, 1
    %p176 = por %p174, %p175
    %p178 = scmp.ne.s32.totalorder %s161, %s177
    %p179 = scmp.eq.s32.totalorder %s27, 0
    %p180 = por %p178, %p179
    %s181 = ssub.s32 %s21, %s28
    %p182 = scmp.eq.s32.totalorder %s181, 0
    %s184 = sadd.s32 %s183, 1
    %s185 = scalar_select %p182, %s183, %s184
    %p188 = pneg %p182
    %p189 = scmp.eq.s32.totalorder %s21, 1
    %p190 = por %p188, %p189
    %p191 = scmp.ne.s32.totalorder %s183, %s186
    %p192 = scmp.eq.s32.totalorder %s21, 0
    %p193 = por %p191, %p192
    %p194 = scmp.ne.s32.totalorder %s183, %s186
    %p195 = scmp.eq.s32.totalorder %s26, 1
    %p196 = por %p194, %p195
    %p197 = scmp.ne.s32.totalorder %s186, %s187
    %p198 = scmp.eq.s32.totalorder %s26, 0
    %p199 = por %p197, %p198
    %p200 = scmp.ne.s32.totalorder %s186, %s187
    %p201 = scmp.eq.s32.totalorder %s27, 1
    %p202 = por %p200, %p201
    %p204 = scmp.ne.s32.totalorder %s187, %s203
    %p205 = scmp.eq.s32.totalorder %s27, 0
    %p206 = por %p204, %p205
    %s207 = ssub.s32 %s21, %s28
    %p208 = scmp.eq.s32.totalorder %s207, 0
    %s210 = sadd.s32 %s209, 1
    %s211 = scalar_select %p208, %s209, %s210
    %p214 = pneg %p208
    %p215 = scmp.eq.s32.totalorder %s21, 1
    %p216 = por %p214, %p215
    %p217 = scmp.ne.s32.totalorder %s209, %s212
    %p218 = scmp.eq.s32.totalorder %s21, 0
    %p219 = por %p217, %p218
    %p220 = scmp.ne.s32.totalorder %s209, %s212
    %p221 = scmp.eq.s32.totalorder %s26, 1
    %p222 = por %p220, %p221
    %p223 = scmp.ne.s32.totalorder %s212, %s213
    %p224 = scmp.eq.s32.totalorder %s26, 0
    %p225 = por %p223, %p224
    %p226 = scmp.ne.s32.totalorder %s212, %s213
    %p227 = scmp.eq.s32.totalorder %s27, 1
    %p228 = por %p226, %p227
    %p230 = scmp.ne.s32.totalorder %s213, %s229
    %p231 = scmp.eq.s32.totalorder %s27, 0
    %p232 = por %p230, %p231
    %s233 = ssub.s32 %s21, %s28
    %p234 = scmp.eq.s32.totalorder %s233, 0
    %s236 = sadd.s32 %s235, 1
    %s237 = scalar_select %p234, %s235, %s236
    %p240 = pneg %p234
    %p241 = scmp.eq.s32.totalorder %s21, 1
    %p242 = por %p240, %p241
    %p243 = scmp.ne.s32.totalorder %s235, %s238
    %p244 = scmp.eq.s32.totalorder %s21, 0
    %p245 = por %p243, %p244
    %p246 = scmp.ne.s32.totalorder %s235, %s238
    %p247 = scmp.eq.s32.totalorder %s26, 1
    %p248 = por %p246, %p247
    %p249 = scmp.ne.s32.totalorder %s238, %s239
    %p250 = scmp.eq.s32.totalorder %s26, 0
    %p251 = por %p249, %p250
    %p252 = scmp.ne.s32.totalorder %s238, %s239
    %p253 = scmp.eq.s32.totalorder %s27, 1
    %p254 = por %p252, %p253
    %p256 = scmp.ne.s32.totalorder %s239, %s255
    %p257 = scmp.eq.s32.totalorder %s27, 0
    %p258 = por %p256, %p257
    %s259 = ssub.s32 %s21, %s28
    %p260 = scmp.eq.s32.totalorder %s259, 0
    %s262 = sadd.s32 %s261, 1
    %s263 = scalar_select %p260, %s261, %s262
    %p266 = pneg %p260
    %p267 = scmp.eq.s32.totalorder %s21, 1
    %p268 = por %p266, %p267
    %p269 = scmp.ne.s32.totalorder %s261, %s264
    %p270 = scmp.eq.s32.totalorder %s21, 0
    %p271 = por %p269, %p270
    %p272 = scmp.ne.s32.totalorder %s261, %s264
    %p273 = scmp.eq.s32.totalorder %s26, 1
    %p274 = por %p272, %p273
    %p275 = scmp.ne.s32.totalorder %s264, %s265
    %p276 = scmp.eq.s32.totalorder %s26, 0
    %p277 = por %p275, %p276
    %p278 = scmp.ne.s32.totalorder %s264, %s265
    %p279 = scmp.eq.s32.totalorder %s27, 1
    %p280 = por %p278, %p279
    %p282 = scmp.ne.s32.totalorder %s265, %s281
    %p283 = scmp.eq.s32.totalorder %s27, 0
    %p284 = por %p282, %p283
    %s285 = ssub.s32 %s21, %s28
    %p286 = scmp.eq.s32.totalorder %s285, 0
    %s288 = sadd.s32 %s287, 1
    %s289 = scalar_select %p286, %s287, %s288
    %p292 = pneg %p286
    %p293 = scmp.eq.s32.totalorder %s21, 1
    %p294 = por %p292, %p293
    %p295 = scmp.ne.s32.totalorder %s287, %s290
    %p296 = scmp.eq.s32.totalorder %s21, 0
    %p297 = por %p295, %p296
    %p298 = scmp.ne.s32.totalorder %s287, %s290
    %p299 = scmp.eq.s32.totalorder %s26, 1
    %p300 = por %p298, %p299
    %p301 = scmp.ne.s32.totalorder %s290, %s291
    %p302 = scmp.eq.s32.totalorder %s26, 0
    %p303 = por %p301, %p302
    %p304 = scmp.ne.s32.totalorder %s290, %s291
    %p305 = scmp.eq.s32.totalorder %s27, 1
    %p306 = por %p304, %p305
    %p308 = scmp.ne.s32.totalorder %s291, %s307
    %p309 = scmp.eq.s32.totalorder %s27, 0
    %p310 = por %p308, %p309
    %s311 = ssub.s32 %s21, %s28
    %p312 = scmp.eq.s32.totalorder %s311, 0
    %s314 = sadd.s32 %s313, 1
    %s315 = scalar_select %p312, %s313, %s314
    %p318 = pneg %p312
    %p319 = scmp.eq.s32.totalorder %s21, 1
    %p320 = por %p318, %p319
    %p321 = scmp.ne.s32.totalorder %s313, %s316
    %p322 = scmp.eq.s32.totalorder %s21, 0
    %p323 = por %p321, %p322
    %p324 = scmp.ne.s32.totalorder %s313, %s316
    %p325 = scmp.eq.s32.totalorder %s26, 1
    %p326 = por %p324, %p325
    %p327 = scmp.ne.s32.totalorder %s316, %s317
    %p328 = scmp.eq.s32.totalorder %s26, 0
    %p329 = por %p327, %p328
    %p330 = scmp.ne.s32.totalorder %s316, %s317
    %p331 = scmp.eq.s32.totalorder %s27, 1
    %p332 = por %p330, %p331
    %p334 = scmp.ne.s32.totalorder %s317, %s333
    %p335 = scmp.eq.s32.totalorder %s27, 0
    %p336 = por %p334, %p335
    %s337 = ssub.s32 %s21, %s28
    %p338 = scmp.eq.s32.totalorder %s337, 0
    %s340 = sadd.s32 %s339, 1
    %s341 = scalar_select %p338, %s339, %s340
    %p344 = pneg %p338
    %p345 = scmp.eq.s32.totalorder %s21, 1
    %p346 = por %p344, %p345
    %p347 = scmp.ne.s32.totalorder %s339, %s342
    %p348 = scmp.eq.s32.totalorder %s21, 0
    %p349 = por %p347, %p348
    %p350 = scmp.ne.s32.totalorder %s339, %s342
    %p351 = scmp.eq.s32.totalorder %s26, 1
    %p352 = por %p350, %p351
    %p353 = scmp.ne.s32.totalorder %s342, %s343
    %p354 = scmp.eq.s32.totalorder %s26, 0
    %p355 = por %p353, %p354
    %p356 = scmp.ne.s32.totalorder %s342, %s343
    %p357 = scmp.eq.s32.totalorder %s27, 1
    %p358 = por %p356, %p357
    %p360 = scmp.ne.s32.totalorder %s343, %s359
    %p361 = scmp.eq.s32.totalorder %s27, 0
    %p362 = por %p360, %p361
    %s363 = ssub.s32 %s21, %s28
    %p364 = scmp.eq.s32.totalorder %s363, 0
    %s366 = sadd.s32 %s365, 1
    %s367 = scalar_select %p364, %s365, %s366
    %p370 = pneg %p364
    %p371 = scmp.eq.s32.totalorder %s21, 1
    %p372 = por %p370, %p371
    %p373 = scmp.ne.s32.totalorder %s365, %s368
    %p374 = scmp.eq.s32.totalorder %s21, 0
    %p375 = por %p373, %p374
    %p376 = scmp.ne.s32.totalorder %s365, %s368
    %p377 = scmp.eq.s32.totalorder %s26, 1
    %p378 = por %p376, %p377
    %p379 = scmp.ne.s32.totalorder %s368, %s369
    %p380 = scmp.eq.s32.totalorder %s26, 0
    %p381 = por %p379, %p380
    %p382 = scmp.ne.s32.totalorder %s368, %s369
    %p383 = scmp.eq.s32.totalorder %s27, 1
    %p384 = por %p382, %p383
    %p386 = scmp.ne.s32.totalorder %s369, %s385
    %p387 = scmp.eq.s32.totalorder %s27, 0
    %p388 = por %p386, %p387
    %s389 = ssub.s32 %s21, %s28
    %p390 = scmp.eq.s32.totalorder %s389, 0
    %s392 = sadd.s32 %s391, 1
    %s393 = scalar_select %p390, %s391, %s392
    %p396 = pneg %p390
    %p397 = scmp.eq.s32.totalorder %s21, 1
    %p398 = por %p396, %p397
    %p399 = scmp.ne.s32.totalorder %s391, %s394
    %p400 = scmp.eq.s32.totalorder %s21, 0
    %p401 = por %p399, %p400
    %p402 = scmp.ne.s32.totalorder %s391, %s394
    %p403 = scmp.eq.s32.totalorder %s26, 1
    %p404 = por %p402, %p403
    %p405 = scmp.ne.s32.totalorder %s394, %s395
    %p406 = scmp.eq.s32.totalorder %s26, 0
    %p407 = por %p405, %p406
    %p408 = scmp.ne.s32.totalorder %s394, %s395
    %p409 = scmp.eq.s32.totalorder %s27, 1
    %p410 = por %p408, %p409
    %p412 = scmp.ne.s32.totalorder %s395, %s411
    %p413 = scmp.eq.s32.totalorder %s27, 0
    %p414 = por %p412, %p413
    %p415 = scmp.le.s32.totalorder 1, %s21
    %p416 = scmp.lt.s32.totalorder %s21, 3
    %p417 = pnand %p415, %p416
    %p418 = pneg %p417
    // Predicated region
    $region9: #{beit3_retrieval_forward.1} parent=5 // pred_check
      _
    $region10: #{beit3_retrieval_forward.1} parent=5 // pred_check_branch
      %420 = sbr.rel (%p417) target = $region12
    $region11: #{beit3_retrieval_forward.1} parent=5 // pred_region
      %s421 = ssub.s32 %s21, 1
      // Predicated region
      $region13: #{beit3_retrieval_forward.1} parent=11 // pred_check
        %p422 = pneg %p42
      $region14: #{beit3_retrieval_forward.1} parent=11 // pred_check_branch
        %424 = sbr.rel (%p422) target = $region16
      $region15: #{beit3_retrieval_forward.1} parent=11 // pred_region
        _
      $region16: #{beit3_retrieval_forward.1} parent=11 // pred_fallthru
        _
      // Predicated region
      $region17: #{beit3_retrieval_forward.1} parent=11 // pred_check
        %p425 = pneg %p63
      $region18: #{beit3_retrieval_forward.1} parent=11 // pred_check_branch
        %427 = sbr.rel (%p425) target = $region20
      $region19: #{beit3_retrieval_forward.1} parent=11 // pred_region
        _
      $region20: #{beit3_retrieval_forward.1} parent=11 // pred_fallthru
        _
      // Predicated region
      $region21: #{beit3_retrieval_forward.1} parent=11 // pred_check
        %p428 = pneg %p84
      $region22: #{beit3_retrieval_forward.1} parent=11 // pred_check_branch
        %430 = sbr.rel (%p428) target = $region24
      $region23: #{beit3_retrieval_forward.1} parent=11 // pred_region
        _
      $region24: #{beit3_retrieval_forward.1} parent=11 // pred_fallthru
        _
      // Predicated region
      $region25: #{beit3_retrieval_forward.1} parent=11 // pred_check
        %p431 = pneg %p105
      $region26: #{beit3_retrieval_forward.1} parent=11 // pred_check_branch
        %433 = sbr.rel (%p431) target = $region28
      $region27: #{beit3_retrieval_forward.1} parent=11 // pred_region
        _
      $region28: #{beit3_retrieval_forward.1} parent=11 // pred_fallthru
        _
      // Predicated region
      $region29: #{beit3_retrieval_forward.1} parent=11 // pred_check
        %p434 = pneg %p126
      $region30: #{beit3_retrieval_forward.1} parent=11 // pred_check_branch
        %436 = sbr.rel (%p434) target = $region32
      $region31: #{beit3_retrieval_forward.1} parent=11 // pred_region
        _
      $region32: #{beit3_retrieval_forward.1} parent=11 // pred_fallthru
        _
      // Predicated region
      $region33: #{beit3_retrieval_forward.1} parent=11 // pred_check
        %p437 = pneg %p147
      $region34: #{beit3_retrieval_forward.1} parent=11 // pred_check_branch
        %439 = sbr.rel (%p437) target = $region36
      $region35: #{beit3_retrieval_forward.1} parent=11 // pred_region
        _
      $region36: #{beit3_retrieval_forward.1} parent=11 // pred_fallthru
        _
    $region12: #{beit3_retrieval_forward.1} parent=5 // pred_fallthru
      _
    %p440 = scmp.lt.s32.totalorder %s21, 2
    // Predicated region
    $region37: #{beit3_retrieval_forward.1} parent=5 // pred_check
      %p441 = pneg %p440
    $region38: #{beit3_retrieval_forward.1} parent=5 // pred_check_branch
      %443 = sbr.rel (%p441) target = $region40
    $region39: #{beit3_retrieval_forward.1} parent=5 // pred_region
      // Predicated region
      $region41: #{beit3_retrieval_forward.1} parent=39 // pred_check
        %p444 = pneg %p167
      $region42: #{beit3_retrieval_forward.1} parent=39 // pred_check_branch
        %446 = sbr.rel (%p444) target = $region44
      $region43: #{beit3_retrieval_forward.1} parent=39 // pred_region
        %p447 = scmp.lt.s32.totalorder %s21, 1
        %s448 = scalar_select %p447, %s21, 1
        %s449 = smul.addr %s448, 8
        %s450 = scalar_lea.vmem %s6, %s449
      $region44: #{beit3_retrieval_forward.1} parent=39 // pred_fallthru
        _
      // Predicated region
      $region45: #{beit3_retrieval_forward.1} parent=39 // pred_check
        %p451 = pneg %p193
      $region46: #{beit3_retrieval_forward.1} parent=39 // pred_check_branch
        %453 = sbr.rel (%p451) target = $region48
      $region47: #{beit3_retrieval_forward.1} parent=39 // pred_region
        %p454 = scmp.lt.s32.totalorder %s21, 1
        %s455 = scalar_select %p454, %s21, 1
        %s456 = smul.addr %s455, 8
        %s457 = smul.addr %s456, 8
        %s458 = scalar_lea.vmem %s7, %s457
      $region48: #{beit3_retrieval_forward.1} parent=39 // pred_fallthru
        _
      // Predicated region
      $region49: #{beit3_retrieval_forward.1} parent=39 // pred_check
        %p459 = pneg %p219
      $region50: #{beit3_retrieval_forward.1} parent=39 // pred_check_branch
        %461 = sbr.rel (%p459) target = $region52
      $region51: #{beit3_retrieval_forward.1} parent=39 // pred_region
        %p462 = scmp.lt.s32.totalorder %s21, 1
        %s463 = scalar_select %p462, %s21, 1
        %s464 = smul.addr %s463, 8
        %s465 = smul.addr %s464, 8
        %s466 = scalar_lea.vmem %s8, %s465
      $region52: #{beit3_retrieval_forward.1} parent=39 // pred_fallthru
        _
      // Predicated region
      $region53: #{beit3_retrieval_forward.1} parent=39 // pred_check
        %p467 = pneg %p245
      $region54: #{beit3_retrieval_forward.1} parent=39 // pred_check_branch
        %469 = sbr.rel (%p467) target = $region56
      $region55: #{beit3_retrieval_forward.1} parent=39 // pred_region
        %p470 = scmp.lt.s32.totalorder %s21, 1
        %s471 = scalar_select %p470, %s21, 1
        %s472 = smul.addr %s471, 4
        %s473 = smul.addr %s472, 8
        %s474 = scalar_lea.vmem %s9, %s473
      $region56: #{beit3_retrieval_forward.1} parent=39 // pred_fallthru
        _
      // Predicated region
      $region57: #{beit3_retrieval_forward.1} parent=39 // pred_check
        %p475 = pneg %p271
      $region58: #{beit3_retrieval_forward.1} parent=39 // pred_check_branch
        %477 = sbr.rel (%p475) target = $region60
      $region59: #{beit3_retrieval_forward.1} parent=39 // pred_region
        %p478 = scmp.lt.s32.totalorder %s21, 1
        %s479 = scalar_select %p478, %s21, 1
        %s480 = smul.addr %s479, 2
        %s481 = smul.addr %s480, 4
        %s482 = scalar_lea.vmem %s10, %s481
      $region60: #{beit3_retrieval_forward.1} parent=39 // pred_fallthru
        _
      // Predicated region
      $region61: #{beit3_retrieval_forward.1} parent=39 // pred_check
        %p483 = pneg %p297
      $region62: #{beit3_retrieval_forward.1} parent=39 // pred_check_branch
        %485 = sbr.rel (%p483) target = $region64
      $region63: #{beit3_retrieval_forward.1} parent=39 // pred_region
        %p486 = scmp.lt.s32.totalorder %s21, 1
        %s487 = scalar_select %p486, %s21, 1
        %s488 = smul.addr %s487, 8
        %s489 = smul.addr %s488, 8
        %s490 = scalar_lea.vmem %s11, %s489
      $region64: #{beit3_retrieval_forward.1} parent=39 // pred_fallthru
        _
      // Predicated region
      $region65: #{beit3_retrieval_forward.1} parent=39 // pred_check
        %p491 = pneg %p323
      $region66: #{beit3_retrieval_forward.1} parent=39 // pred_check_branch
        %493 = sbr.rel (%p491) target = $region68
      $region67: #{beit3_retrieval_forward.1} parent=39 // pred_region
        %p494 = scmp.lt.s32.totalorder %s21, 1
        %s495 = scalar_select %p494, %s21, 1
        %s496 = smul.addr %s495, 16
        %s497 = smul.addr %s496, 8
        %s498 = scalar_lea.vmem %s12, %s497
      $region68: #{beit3_retrieval_forward.1} parent=39 // pred_fallthru
        _
      // Predicated region
      $region69: #{beit3_retrieval_forward.1} parent=39 // pred_check
        %p499 = pneg %p349
      $region70: #{beit3_retrieval_forward.1} parent=39 // pred_check_branch
        %501 = sbr.rel (%p499) target = $region72
      $region71: #{beit3_retrieval_forward.1} parent=39 // pred_region
        %p502 = scmp.lt.s32.totalorder %s21, 1
        %s503 = scalar_select %p502, %s21, 1
        %s504 = smul.addr %s503, 2
        %s505 = scalar_lea.vmem %s13, %s504
      $region72: #{beit3_retrieval_forward.1} parent=39 // pred_fallthru
        _
      // Predicated region
      $region73: #{beit3_retrieval_forward.1} parent=39 // pred_check
        %p506 = pneg %p375
      $region74: #{beit3_retrieval_forward.1} parent=39 // pred_check_branch
        %508 = sbr.rel (%p506) target = $region76
      $region75: #{beit3_retrieval_forward.1} parent=39 // pred_region
        %p509 = scmp.lt.s32.totalorder %s21, 1
        %s510 = scalar_select %p509, %s21, 1
        %s511 = smul.addr %s510, 4
        %s512 = smul.addr %s511, 8
        %s513 = scalar_lea.vmem %s14, %s512
      $region76: #{beit3_retrieval_forward.1} parent=39 // pred_fallthru
        _
    $region40: #{beit3_retrieval_forward.1} parent=5 // pred_fallthru
      _
    %p514 = scmp.le.s32.totalorder 1, %s21
    %p515 = scmp.lt.s32.totalorder %s21, 3
    %p516 = pnand %p514, %p515
    %p517 = pneg %p516
    // Predicated region
    $region77: #{beit3_retrieval_forward.1} parent=5 // pred_check
      _
    $region78: #{beit3_retrieval_forward.1} parent=5 // pred_check_branch
      %519 = sbr.rel (%p516) target = $region80
    $region79: #{beit3_retrieval_forward.1} parent=5 // pred_region
      %s520 = ssub.s32 %s21, 1
      %p521 = pneg %p42
      %p522 = pneg %p39
      %p523 = pneg %p63
      %p524 = pneg %p60
      %p525 = pneg %p84
      %p526 = pneg %p81
      %p527 = pneg %p105
      %p528 = pneg %p102
      %p529 = pneg %p126
      %p530 = pneg %p123
      %p531 = pneg %p147
      %p532 = pneg %p144
      %p533 = scmp.lt.s32.totalorder %s26, 1
      %s534 = scalar_select %p533, %s26, 1
      %s535 = smul.addr %s534, 8
      %s536 = scalar_lea.vmem %s6, %s535
      %p537 = pneg %p173
      %p538 = pneg %p170
      %p539 = scmp.lt.s32.totalorder %s26, 1
      %s540 = scalar_select %p539, %s26, 1
      %s541 = smul.addr %s540, 8
      %s542 = smul.addr %s541, 8
      %s543 = scalar_lea.vmem %s7, %s542
      %p544 = pneg %p199
      %p545 = pneg %p196
      %p546 = scmp.lt.s32.totalorder %s26, 1
      %s547 = scalar_select %p546, %s26, 1
      %s548 = smul.addr %s547, 8
      %s549 = smul.addr %s548, 8
      %s550 = scalar_lea.vmem %s8, %s549
      %p551 = pneg %p225
      %p552 = pneg %p222
      %p553 = scmp.lt.s32.totalorder %s26, 1
      %s554 = scalar_select %p553, %s26, 1
      %s555 = smul.addr %s554, 4
      %s556 = smul.addr %s555, 8
      %s557 = scalar_lea.vmem %s9, %s556
      %p558 = pneg %p251
      %p559 = pneg %p248
      %p560 = scmp.lt.s32.totalorder %s26, 1
      %s561 = scalar_select %p560, %s26, 1
      %s562 = smul.addr %s561, 2
      %s563 = smul.addr %s562, 4
      %s564 = scalar_lea.vmem %s10, %s563
      %p565 = pneg %p277
      %p566 = pneg %p274
      %p567 = scmp.lt.s32.totalorder %s26, 1
      %s568 = scalar_select %p567, %s26, 1
      %s569 = smul.addr %s568, 8
      %s570 = smul.addr %s569, 8
      %s571 = scalar_lea.vmem %s11, %s570
      %p572 = pneg %p303
      %p573 = pneg %p300
      %p574 = scmp.lt.s32.totalorder %s26, 1
      %s575 = scalar_select %p574, %s26, 1
      %s576 = smul.addr %s575, 16
      %s577 = smul.addr %s576, 8
      %s578 = scalar_lea.vmem %s12, %s577
      %p579 = pneg %p329
      %p580 = pneg %p326
      %p581 = scmp.lt.s32.totalorder %s26, 1
      %s582 = scalar_select %p581, %s26, 1
      %s583 = smul.addr %s582, 2
      %s584 = scalar_lea.vmem %s13, %s583
      %p585 = pneg %p355
      %p586 = pneg %p352
      %p587 = scmp.lt.s32.totalorder %s26, 1
      %s588 = scalar_select %p587, %s26, 1
      %s589 = smul.addr %s588, 4
      %s590 = smul.addr %s589, 8
      %s591 = scalar_lea.vmem %s14, %s590
      %p592 = pneg %p381
      %p593 = pneg %p378
      %p594 = pneg %p407
      %p595 = pneg %p404
      %p596 = scmp.lt.s32.totalorder %s26, 1
      %s597 = scalar_select %p596, %s26, 1
      %s598 = smul.addr %s597, 2
      %s599 = scalar_lea.vmem %s15, %s598
      %p600 = scmp.lt.s32.totalorder %s26, 1
      %s601 = scalar_select %p600, %s26, 1
      %s602 = smul.addr %s601, 8
      %s603 = scalar_lea.vmem %s6, %s602
      %p604 = scmp.lt.s32.totalorder %s26, 1
      %s605 = scalar_select %p604, %s26, 1
      %s606 = smul.addr %s605, 8
      %s607 = smul.addr %s606, 8
      %s608 = scalar_lea.vmem %s7, %s607
      %p609 = scmp.lt.s32.totalorder %s26, 1
      %s610 = scalar_select %p609, %s26, 1
      %s611 = smul.addr %s610, 8
      %s612 = smul.addr %s611, 8
      %s613 = scalar_lea.vmem %s8, %s612
      %p614 = scmp.lt.s32.totalorder %s26, 1
      %s615 = scalar_select %p614, %s26, 1
      %s616 = smul.addr %s615, 4
      %s617 = smul.addr %s616, 8
      %s618 = scalar_lea.vmem %s9, %s617
      %p619 = scmp.lt.s32.totalorder %s26, 1
      %s620 = scalar_select %p619, %s26, 1
      %s621 = smul.addr %s620, 2
      %s622 = smul.addr %s621, 4
      %s623 = scalar_lea.vmem %s10, %s622
      %p624 = scmp.lt.s32.totalorder %s26, 1
      %s625 = scalar_select %p624, %s26, 1
      %s626 = smul.addr %s625, 8
      %s627 = smul.addr %s626, 8
      %s628 = scalar_lea.vmem %s11, %s627
      %p629 = scmp.lt.s32.totalorder %s26, 1
      %s630 = scalar_select %p629, %s26, 1
      %s631 = smul.addr %s630, 16
      %s632 = smul.addr %s631, 8
      %s633 = scalar_lea.vmem %s12, %s632
      %p634 = scmp.lt.s32.totalorder %s26, 1
      %s635 = scalar_select %p634, %s26, 1
      %s636 = smul.addr %s635, 2
      %s637 = scalar_lea.vmem %s13, %s636
      %p638 = scmp.lt.s32.totalorder %s26, 1
      %s639 = scalar_select %p638, %s26, 1
      %s640 = smul.addr %s639, 4
      %s641 = smul.addr %s640, 8
      %s642 = scalar_lea.vmem %s14, %s641
      %p643 = scmp.lt.s32.totalorder %s26, 1
      %s644 = scalar_select %p643, %s26, 1
      %s645 = smul.addr %s644, 2
      %s646 = scalar_lea.vmem %s15, %s645
      %p647 = scmp.eq.s32.totalorder %s26, 0
      // Predicated region
      $region81: #{beit3_retrieval_forward.1} parent=79 // pred_check
        %p648 = pneg %p647
      $region82: #{beit3_retrieval_forward.1} parent=79 // pred_check_branch
        %650 = sbr.rel (%p648) target = $region84
      $region83: #{beit3_retrieval_forward.1} parent=79 // pred_region
        %v651 = vld [vmem:[%s0] sm:$0xff]
        %v652 = vld [vmem:[%s0 + $0x8] sm:$0xff]
        %v653 = vld [vmem:[%s1] sm:$0xff]
        %v654 = vld [vmem:[%s1 + $0x8] sm:$0xff]
        %v655 = vld [vmem:[%s1 + $0x10] sm:$0xff]
        %v656 = vld [vmem:[%s1 + $0x18] sm:$0xff]
        %v657 = vld [vmem:[%s1 + $0x20] sm:$0xff]
        %v658 = vld [vmem:[%s1 + $0x28] sm:$0xff]
        %v659 = vld [vmem:[%s1 + $0x30] sm:$0xff]
        %v660 = vld [vmem:[%s1 + $0x38] sm:$0xff]
        %v661 = vld [vmem:[%s1 + $0x40] sm:$0xff]
        %v662 = vld [vmem:[%s1 + $0x48] sm:$0xff]
        %v663 = vld [vmem:[%s1 + $0x50] sm:$0xff]
        %v664 = vld [vmem:[%s1 + $0x58] sm:$0xff]
        %v665 = vld [vmem:[%s1 + $0x60] sm:$0xff]
        %v666 = vld [vmem:[%s1 + $0x68] sm:$0xff]
        %v667 = vld [vmem:[%s1 + $0x70] sm:$0xff]
        %v668 = vld [vmem:[%s1 + $0x78] sm:$0xff]
        %v669 = vld [vmem:[%s1 + $0x80] sm:$0xff]
        %v670 = vld [vmem:[%s1 + $0x88] sm:$0xff]
        %v671 = vld [vmem:[%s1 + $0x90] sm:$0xff]
        %v672 = vld [vmem:[%s1 + $0x98] sm:$0xff]
        %v673 = vld [vmem:[%s1 + $0xa0] sm:$0xff]
        %v674 = vld [vmem:[%s1 + $0xa8] sm:$0xff]
        %v675 = vld [vmem:[%s1 + $0xb0] sm:$0xff]
        %v676 = vld [vmem:[%s1 + $0xb8] sm:$0xff]
        %v677 = vld [vmem:[%s2] sm:$0x1]
        %v678 = vlaneseq
        %v679 = vshrl.u32 %v678, 7
        %v680 = vsub.s32 0, %v679
        %v681 = vrot.slane %v677, %v680
        %vm682 = vcmask 523264
        %v684 = vsel %vm682, %v652, 0
        %686 = vmatprep.subr.mxu0 0.0
        %687 = vmatpush1.msra.mxu0 %v653
        %688 = vmatprep.subr.mxu0 0.0
        %689 = vmatpush1.msra.mxu0 %v654
        %690 = vmatprep.subr.mxu0 0.0
        %691 = vmatpush1.msra.mxu0 %v655
        %692 = vmatprep.subr.mxu0 0.0
        %693 = vmatpush1.msra.mxu0 %v656
        %694 = vmatprep.subr.mxu0 0.0
        %695 = vmatpush1.msra.mxu0 %v657
        %696 = vmatprep.subr.mxu0 0.0
        %697 = vmatpush1.msra.mxu0 %v658
        %698 = vmatprep.subr.mxu0 0.0
        %699 = vmatpush1.msra.mxu0 %v659
        %700 = vmatprep.subr.mxu0 0.0
        %701 = vmatpush1.msra.mxu0 %v660
        %702 = vmatprep.subr.mxu0 0.0
        %703 = vmatpush1.msra.mxu0 %v661
        %704 = vmatprep.subr.mxu0 0.0
        %705 = vmatpush1.msra.mxu0 %v662
        %706 = vmatprep.subr.mxu0 0.0
        %707 = vmatpush1.msra.mxu0 %v663
        %708 = vmatprep.subr.mxu0 0.0
        %709 = vmatpush1.msra.mxu0 %v664
        %710 = vmatprep.subr.mxu0 0.0
        %711 = vmatpush1.msra.mxu0 %v665
        %712 = vmatprep.subr.mxu0 0.0
        %713 = vmatpush1.msra.mxu0 %v666
        %714 = vmatprep.subr.mxu0 0.0
        %715 = vmatpush1.msra.mxu0 %v667
        %716 = vmatprep.subr.mxu0 0.0
        %717 = vmatpush1.msra.mxu0 %v668
        %718 = vmatprep.subr.mxu0 0.0
        %719 = vmatpush1.msra.mxu0 %v669
        %720 = vmatprep.subr.mxu0 0.0
        %721 = vmatpush1.msra.mxu0 %v670
        %722 = vmatprep.subr.mxu0 0.0
        %723 = vmatpush1.msra.mxu0 %v671
        %724 = vmatprep.subr.mxu0 0.0
        %725 = vmatpush1.msra.mxu0 %v672
        %726 = vmatprep.subr.mxu0 0.0
        %727 = vmatpush1.msra.mxu0 %v673
        %728 = vmatprep.subr.mxu0 0.0
        %729 = vmatpush1.msra.mxu0 %v674
        %730 = vmatprep.subr.mxu0 0.0
        %731 = vmatpush1.msra.mxu0 %v675
        %732 = vmatprep.subr.mxu0 0.0
        %733 = vmatpush1.msra.mxu0 %v676
        %734 = vmatprep.subr.mxu0 0.0
        %735 = vmatpush1.msra.mxu0 0.0
        %736 = vmatprep.subr.mxu0 0.0
        %737 = vmatpush1.msra.mxu0 0.0
        %738 = vmatprep.subr.mxu0 0.0
        %739 = vmatpush1.msra.mxu0 0.0
        %740 = vmatprep.subr.mxu0 0.0
        %741 = vmatpush1.msra.mxu0 0.0
        %742 = vmatprep.subr.mxu0 0.0
        %743 = vmatpush1.msra.mxu0 0.0
        %744 = vmatprep.subr.mxu0 0.0
        %745 = vmatpush1.msra.mxu0 0.0
        %746 = vmatprep.subr.mxu0 0.0
        %747 = vmatpush1.msra.mxu0 0.0
        %748 = vmatprep.subr.mxu0 0.0
        %749 = vmatpush1.msra.mxu0 0.0
        %750 = vmatprep.mubr.f32.mxu0 %v684
        %751 = vmatmul.mubr.f32.gmra.mrb[0].mxu0 %v651
        %v752 = vpop.f32.mrb[0].mxu0
        %v753 = vadd.f32 %v681, %v752
        %v754 = vpop.f32.mrb[0].mxu0
        %755 = vdwg.mxu0
        %v756 = vld [vmem:[%s2 + $0x1] sm:$0x1]
        %v758 = vcombine.high %v753, %v753
        %v759 = vrot.slane %v753, 7
        %v760 = vrot.slane %v758, 7
        %vm763 = vcmask 1040384
        %v764 = vsel %vm763, %v756, %v759
        %v765 = vsel %vm763, %v756, %v760
        %vm766 = vcmask 1044480
        %v767 = vsel %vm766, %v764, 0.0
        %v768 = vsel %vm766, %v765, 0.0
        %vm769 = vcmask 261120
        %770 = vst.msk [vmem:[#allocation2] sm:$0xff] %vm769, %v767
        %771 = vst.msk [vmem:[#allocation2 + $0x8] sm:$0xff] %vm769, %v768
      $region84: #{beit3_retrieval_forward.1} parent=79 // pred_fallthru
        _
      %p772 = scmp.eq.s32.totalorder %s26, 1
      // Predicated region
      $region85: #{beit3_retrieval_forward.1} parent=79 // pred_check
        %p773 = pneg %p772
      $region86: #{beit3_retrieval_forward.1} parent=79 // pred_check_branch
        %775 = sbr.rel (%p773) target = $region88
      $region87: #{beit3_retrieval_forward.1} parent=79 // pred_region
        %v776 = vld [vmem:[%s3] sm:$0xff]
        %v777 = vld [vmem:[%s3 + $0x8] sm:$0xff]
        %v778 = vlaneseq
        %v779 = vand.u32 %v778, 127
        %780 = vset.pattern.permute.xlu0 0
        %781 = vperm.xlu0 %780, %v776
        %v782 = vpop.permute.xlu0 %781
        %783 = vset.pattern.permute.xlu0 0
        %784 = vperm.xlu0 %783, %v777
        %v785 = vpop.permute.xlu0 %784
        %vm786 = vcmp.eq.s32.totalorder %v779, %v782
        %vm787 = vcmp.eq.s32.totalorder %v779, %v785
        %v788 = vsel %vm786, 1, 0
        %v789 = vsel %vm787, 1, 0
        %v790 = vcvt.s32.f32 %v788
        %v791 = vcvt.s32.f32 %v789
        %v792 = vld [vmem:[%s4] sm:$0xff]
        %v793 = vld [vmem:[%s4 + $0x8] sm:$0xff]
        %v794 = vld [vmem:[%s4 + $0x10] sm:$0xff]
        %v795 = vld [vmem:[%s4 + $0x18] sm:$0xff]
        %v796 = vld [vmem:[%s4 + $0x20] sm:$0xff]
        %v797 = vld [vmem:[%s4 + $0x28] sm:$0xff]
        %v798 = vld [vmem:[%s4 + $0x30] sm:$0xff]
        %v799 = vld [vmem:[%s4 + $0x38] sm:$0xff]
        %vm800 = vcmask 523264
        %v802 = vsel %vm800, %v790, 0
        %v805 = vsel %vm800, %v791, 0
        %807 = vmatprep.subr.mxu0 0.0
        %808 = vmatpush1.msra.mxu0 %v792
        %809 = vmatprep.subr.mxu0 0.0
        %810 = vmatpush1.msra.mxu0 %v793
        %811 = vmatprep.subr.mxu0 0.0
        %812 = vmatpush1.msra.mxu0 %v794
        %813 = vmatprep.subr.mxu0 0.0
        %814 = vmatpush1.msra.mxu0 %v795
        %815 = vmatprep.subr.mxu0 0.0
        %816 = vmatpush1.msra.mxu0 %v796
        %817 = vmatprep.subr.mxu0 0.0
        %818 = vmatpush1.msra.mxu0 %v797
        %819 = vmatprep.subr.mxu0 0.0
        %820 = vmatpush1.msra.mxu0 %v798
        %821 = vmatprep.subr.mxu0 0.0
        %822 = vmatpush1.msra.mxu0 %v799
        %823 = vmatprep.subr.mxu0 0.0
        %824 = vmatpush1.msra.mxu0 0.0
        %825 = vmatprep.subr.mxu0 0.0
        %826 = vmatpush1.msra.mxu0 0.0
        %827 = vmatprep.subr.mxu0 0.0
        %828 = vmatpush1.msra.mxu0 0.0
        %829 = vmatprep.subr.mxu0 0.0
        %830 = vmatpush1.msra.mxu0 0.0
        %831 = vmatprep.subr.mxu0 0.0
        %832 = vmatpush1.msra.mxu0 0.0
        %833 = vmatprep.subr.mxu0 0.0
        %834 = vmatpush1.msra.mxu0 0.0
        %835 = vmatprep.subr.mxu0 0.0
        %836 = vmatpush1.msra.mxu0 0.0
        %837 = vmatprep.subr.mxu0 0.0
        %838 = vmatpush1.msra.mxu0 0.0
        %839 = vmatprep.subr.mxu0 0.0
        %840 = vmatpush1.msra.mxu0 0.0
        %841 = vmatprep.subr.mxu0 0.0
        %842 = vmatpush1.msra.mxu0 0.0
        %843 = vmatprep.subr.mxu0 0.0
        %844 = vmatpush1.msra.mxu0 0.0
        %845 = vmatprep.subr.mxu0 0.0
        %846 = vmatpush1.msra.mxu0 0.0
        %847 = vmatprep.subr.mxu0 0.0
        %848 = vmatpush1.msra.mxu0 0.0
        %849 = vmatprep.subr.mxu0 0.0
        %850 = vmatpush1.msra.mxu0 0.0
        %851 = vmatprep.subr.mxu0 0.0
        %852 = vmatpush1.msra.mxu0 0.0
        %853 = vmatprep.subr.mxu0 0.0
        %854 = vmatpush1.msra.mxu0 0.0
        %855 = vmatprep.subr.mxu0 0.0
        %856 = vmatpush1.msra.mxu0 0.0
        %857 = vmatprep.subr.mxu0 0.0
        %858 = vmatpush1.msra.mxu0 0.0
        %859 = vmatprep.subr.mxu0 0.0
        %860 = vmatpush1.msra.mxu0 0.0
        %861 = vmatprep.subr.mxu0 0.0
        %862 = vmatpush1.msra.mxu0 0.0
        %863 = vmatprep.subr.mxu0 0.0
        %864 = vmatpush1.msra.mxu0 0.0
        %865 = vmatprep.subr.mxu0 0.0
        %866 = vmatpush1.msra.mxu0 0.0
        %867 = vmatprep.subr.mxu0 0.0
        %868 = vmatpush1.msra.mxu0 0.0
        %869 = vmatprep.subr.mxu0 0.0
        %870 = vmatpush1.msra.mxu0 0.0
        %871 = vmatprep.mubr.f32.mxu0 0.0
        %872 = vmatmul.mubr.f32.gmra.mrb[0].mxu0 %v802
        %v873 = vpop.f32.mrb[0].mxu0
        %v874 = vadd.f32 0.0, %v873
        %v875 = vpop.f32.mrb[0].mxu0
        %876 = vmatprep.mubr.f32.mxu0 0.0
        %877 = vmatmul.mubr.f32.gmra.mrb[0].mxu0 %v805
        %v878 = vpop.f32.mrb[0].mxu0
        %v879 = vadd.f32 0.0, %v878
        %v880 = vpop.f32.mrb[0].mxu0
        %881 = vdwg.mxu0
        %vm882 = vcmask 261120
        %883 = vst.msk [vmem:[#allocation2] sm:$0xff] %vm882, %v874
        %884 = vst.msk [vmem:[#allocation2 + $0x8] sm:$0xff] %vm882, %v879
      $region88: #{beit3_retrieval_forward.1} parent=79 // pred_fallthru
        _
      %s885 = scalar_select %p647, 1, 0
      %s886 = scvt.s32.f32 %s885
      %v887 = vlaneseq
      %v888 = vand.u32 %v887, 127
      %vm889 = vcmp.ge.s32.totalorder %v888, 5
      %v890 = vsel %vm889, 1, 0
      %v891 = vcvt.s32.f32 %v890
      %v892 = vstv %s886
      %v893 = vmul.f32 %v892, %v891
      %s894 = ssub.f32 1.0, %s886
      %v895 = vld [vmem:[%s5] sm:$0x3]
      %v896 = vstv %s894
      %v897 = vmul.f32 %v896, %v895
      %v898 = vadd.f32 %v893, %v897
      %v899 = vld [vmem:[%s603] sm:$0xff]
      %v900 = vld [vmem:[#allocation2] sm:$0xff]
      %v901 = vld [vmem:[#allocation2 + $0x8] sm:$0xff]
      %v902 = vadd.f32 %v900, %v899
      %v903 = vadd.f32 %v901, %v899
      %v904 = vsub.f32 1.0, %v898
      %v905 = vlaneseq
      %v906 = vshrl.u32 %v905, 7
      %v907 = vsub.s32 0, %v906
      %v908 = vrot.slane %v904, %v907
      %910 = vbcast.lane.b32.xlu0 %v908, 256
      %v911 = vpop.permute.xlu0 %910
      %v912 = vlaneseq
      %v913 = vshrl.u32 %v912, 7
      %v914 = vsub.s32 1, %v913
      %v915 = vrot.slane %v904, %v914
      %917 = vbcast.lane.b32.xlu0 %v915, 256
      %v918 = vpop.permute.xlu0 %917
      %v919 = vmul.f32 %v902, %v911
      %v920 = vmul.f32 %v903, %v918
      %v921 = vmul.f32 %v898, -1e+09
      %v924 = vunpack.c.l.s4 1966171168
      %v925 = vunpack.c.0.s8 %v924
      %v926 = vlaneseq
      %v927 = vshrl.u32 %v926, 7
      %v928 = vsub.s32 %v925, %v927
      %v929 = vrot.slane %v921, %v928
      %v930 = vcombine.high %v929, %v929
      %v932 = vunpack.c.l.s4 1966171168
      %v933 = vunpack.c.0.s8 %v932
      %v934 = vlaneseq
      %v935 = vshrl.u32 %v934, 7
      %v936 = vsub.s32 %v933, %v935
      %v937 = vrot.slane %v929, %v936
      %v939 = vunpack.c.l.s4 1966171168
      %v940 = vunpack.c.0.s8 %v939
      %v941 = vlaneseq
      %v942 = vshrl.u32 %v941, 7
      %v943 = vsub.s32 %v940, %v942
      %v944 = vrot.slane %v930, %v943
      %v945 = vld [vmem:[%s618] sm:$0xff]
      %v946 = vld [vmem:[%s618 + $0x8] sm:$0x7]
      %v947 = vld [vmem:[%s623] sm:$0x7]
      %vm948 = vcmask 261120
      %v949 = vsel %vm948, %v919, 0.0
      %950 = vadd.xlane.f32.xlu0 %v949
      %v951 = vpop.xlane.xlu0 %950
      %v952 = vsel %vm948, %v920, 0.0
      %953 = vadd.xlane.f32.xlu0 %v952
      %v954 = vpop.xlane.xlu0 %953
      %v955 = vrcp.pop 32.0
      %v956 = vmul.f32 %v951, %v955
      %v957 = vmul.f32 %v954, %v955
      %v958 = vsub.f32 %v919, %v956
      %v959 = vsub.f32 %v920, %v957
      %v960 = vmul.f32 %v958, %v958
      %v961 = vmul.f32 %v959, %v959
      %v962 = vsel %vm948, %v960, 0.0
      %963 = vadd.xlane.f32.xlu0 %v962
      %v964 = vpop.xlane.xlu0 %963
      %v965 = vsel %vm948, %v961, 0.0
      %966 = vadd.xlane.f32.xlu0 %v965
      %v967 = vpop.xlane.xlu0 %966
      %v968 = vmul.f32 %v964, %v955
      %v969 = vmul.f32 %v967, %v955
      %v970 = vadd.f32 %v968, 1e-05
      %v971 = vadd.f32 %v969, 1e-05
      %v972 = vrsqrt.pop %v970
      %v973 = vrsqrt.pop %v971
      %v974 = vmul.f32 %v958, %v972
      %v975 = vmul.f32 %v959, %v973
      %v976 = vlaneseq
      %v977 = vshrl.u32 %v976, 7
      %v978 = vsub.s32 0, %v977
      %v979 = vrot.slane %v945, %v978
      %v980 = vmul.f32 %v974, %v979
      %v981 = vmul.f32 %v975, %v979
      %v982 = vlaneseq
      %v983 = vshrl.u32 %v982, 7
      %v984 = vsub.s32 1, %v983
      %v985 = vrot.slane %v945, %v984
      %v986 = vadd.f32 %v980, %v985
      %v987 = vadd.f32 %v981, %v985
      %v988 = vld [vmem:[%s608] sm:$0xff]
      %v989 = vld [vmem:[%s608 + $0x8] sm:$0xff]
      %v990 = vld [vmem:[%s608 + $0x10] sm:$0xff]
      %v991 = vld [vmem:[%s608 + $0x18] sm:$0xff]
      %v993 = vsel %vm948, %v986, 0
      %v996 = vsel %vm948, %v987, 0
      %998 = vmatprep.subr.mxu0 0.0
      %999 = vmatpush1.msra.mxu0 %v988
      %1000 = vmatprep.subr.mxu0 0.0
      %1001 = vmatpush1.msra.mxu0 %v989
      %1002 = vmatprep.subr.mxu0 0.0
      %1003 = vmatpush1.msra.mxu0 %v990
      %1004 = vmatprep.subr.mxu0 0.0
      %1005 = vmatpush1.msra.mxu0 %v991
      %1006 = vmatprep.subr.mxu0 0.0
      %1007 = vmatpush1.msra.mxu0 0.0
      %1008 = vmatprep.subr.mxu0 0.0
      %1009 = vmatpush1.msra.mxu0 0.0
      %1010 = vmatprep.subr.mxu0 0.0
      %1011 = vmatpush1.msra.mxu0 0.0
      %1012 = vmatprep.subr.mxu0 0.0
      %1013 = vmatpush1.msra.mxu0 0.0
      %1014 = vmatprep.subr.mxu0 0.0
      %1015 = vmatpush1.msra.mxu0 0.0
      %1016 = vmatprep.subr.mxu0 0.0
      %1017 = vmatpush1.msra.mxu0 0.0
      %1018 = vmatprep.subr.mxu0 0.0
      %1019 = vmatpush1.msra.mxu0 0.0
      %1020 = vmatprep.subr.mxu0 0.0
      %1021 = vmatpush1.msra.mxu0 0.0
      %1022 = vmatprep.subr.mxu0 0.0
      %1023 = vmatpush1.msra.mxu0 0.0
      %1024 = vmatprep.subr.mxu0 0.0
      %1025 = vmatpush1.msra.mxu0 0.0
      %1026 = vmatprep.subr.mxu0 0.0
      %1027 = vmatpush1.msra.mxu0 0.0
      %1028 = vmatprep.subr.mxu0 0.0
      %1029 = vmatpush1.msra.mxu0 0.0
      %1030 = vmatprep.subr.mxu0 0.0
      %1031 = vmatpush1.msra.mxu0 0.0
      %1032 = vmatprep.subr.mxu0 0.0
      %1033 = vmatpush1.msra.mxu0 0.0
      %1034 = vmatprep.subr.mxu0 0.0
      %1035 = vmatpush1.msra.mxu0 0.0
      %1036 = vmatprep.subr.mxu0 0.0
      %1037 = vmatpush1.msra.mxu0 0.0
      %1038 = vmatprep.subr.mxu0 0.0
      %1039 = vmatpush1.msra.mxu0 0.0
      %1040 = vmatprep.subr.mxu0 0.0
      %1041 = vmatpush1.msra.mxu0 0.0
      %1042 = vmatprep.subr.mxu0 0.0
      %1043 = vmatpush1.msra.mxu0 0.0
      %1044 = vmatprep.subr.mxu0 0.0
      %1045 = vmatpush1.msra.mxu0 0.0
      %1046 = vmatprep.subr.mxu0 0.0
      %1047 = vmatpush1.msra.mxu0 0.0
      %1048 = vmatprep.subr.mxu0 0.0
      %1049 = vmatpush1.msra.mxu0 0.0
      %1050 = vmatprep.subr.mxu0 0.0
      %1051 = vmatpush1.msra.mxu0 0.0
      %1052 = vmatprep.subr.mxu0 0.0
      %1053 = vmatpush1.msra.mxu0 0.0
      %1054 = vmatprep.subr.mxu0 0.0
      %1055 = vmatpush1.msra.mxu0 0.0
      %1056 = vmatprep.subr.mxu0 0.0
      %1057 = vmatpush1.msra.mxu0 0.0
      %1058 = vmatprep.subr.mxu0 0.0
      %1059 = vmatpush1.msra.mxu0 0.0
      %1060 = vmatprep.subr.mxu0 0.0
      %1061 = vmatpush1.msra.mxu0 0.0
      %1062 = vmatprep.mubr.f32.mxu0 0.0
      %1063 = vmatmul.mubr.f32.gmra.mrb[0].mxu0 %v993
      %v1064 = vpop.f32.mrb[0].mxu0
      %v1065 = vadd.f32 0.0, %v1064
      %v1066 = vpop.f32.mrb[0].mxu0
      %1067 = vmatprep.mubr.f32.mxu0 0.0
      %1068 = vmatmul.mubr.f32.gmra.mrb[0].mxu0 %v996
      %v1069 = vpop.f32.mrb[0].mxu0
      %v1070 = vadd.f32 0.0, %v1069
      %v1071 = vpop.f32.mrb[0].mxu0
      %1072 = vdwg.mxu0
      %v1073 = vlaneseq
      %v1074 = vshrl.u32 %v1073, 7
      %v1075 = vsub.s32 2, %v1074
      %v1076 = vrot.slane %v945, %v1075
      %v1077 = vadd.f32 %v1065, %v1076
      %v1078 = vadd.f32 %v1070, %v1076
      %v1079 = vmul.f32 %v1077, 0.35355338
      %v1080 = vmul.f32 %v1078, 0.35355338
      %v1081 = vlaneseq
      %v1082 = vshrl.u32 %v1081, 7
      %v1083 = vsub.s32 3, %v1082
      %v1084 = vrot.slane %v945, %v1083
      %1086 = vrot.lane.b32.xlu0 %v1084, 32
      %v1087 = vpop.permute.xlu0 %1086
      %v1089 = vadd.f32 %v1065, %v1087
      %v1090 = vadd.f32 %v1070, %v1087
      %v1091 = vlaneseq
      %v1092 = vshrl.u32 %v1091, 7
      %v1093 = vsub.s32 4, %v1092
      %v1094 = vrot.slane %v945, %v1093
      %1096 = vrot.lane.b32.xlu0 %v1094, 64
      %v1097 = vpop.permute.xlu0 %1096
      %v1099 = vadd.f32 %v1065, %v1097
      %v1100 = vadd.f32 %v1070, %v1097
      %1103 = vrot.lane.b32.xlu0 %v1079, 120
      %v1104 = vpop.permute.xlu0 %1103
      %1105 = vrot.lane.b32.xlu0 %v1080, 120
      %v1106 = vpop.permute.xlu0 %1105
      %1107 = vrot.lane.b32.xlu0 %v1079, 112
      %v1108 = vpop.permute.xlu0 %1107
      %1109 = vrot.lane.b32.xlu0 %v1080, 112
      %v1110 = vpop.permute.xlu0 %1109
      %1111 = vrot.lane.b32.xlu0 %v1079, 104
      %v1112 = vpop.permute.xlu0 %1111
      %1113 = vrot.lane.b32.xlu0 %v1080, 104
      %v1114 = vpop.permute.xlu0 %1113
      %1117 = vrot.lane.b32.xlu0 %v1089, 120
      %v1118 = vpop.permute.xlu0 %1117
      %1119 = vrot.lane.b32.xlu0 %v1090, 120
      %v1120 = vpop.permute.xlu0 %1119
      %1121 = vrot.lane.b32.xlu0 %v1089, 112
      %v1122 = vpop.permute.xlu0 %1121
      %1123 = vrot.lane.b32.xlu0 %v1090, 112
      %v1124 = vpop.permute.xlu0 %1123
      %1125 = vrot.lane.b32.xlu0 %v1089, 104
      %v1126 = vpop.permute.xlu0 %1125
      %1127 = vrot.lane.b32.xlu0 %v1090, 104
      %v1128 = vpop.permute.xlu0 %1127
      %1131 = vrot.lane.b32.xlu0 %v1099, 120
      %v1132 = vpop.permute.xlu0 %1131
      %1133 = vrot.lane.b32.xlu0 %v1100, 120
      %v1134 = vpop.permute.xlu0 %1133
      %1135 = vrot.lane.b32.xlu0 %v1099, 112
      %v1136 = vpop.permute.xlu0 %1135
      %1137 = vrot.lane.b32.xlu0 %v1100, 112
      %v1138 = vpop.permute.xlu0 %1137
      %1139 = vrot.lane.b32.xlu0 %v1099, 104
      %v1140 = vpop.permute.xlu0 %1139
      %1141 = vrot.lane.b32.xlu0 %v1100, 104
      %v1142 = vpop.permute.xlu0 %1141
      %v1143 = vlaneseq
      %v1144 = vshrl.u32 %v1143, 7
      %v1145 = vsub.s32 0, %v1144
      %v1146 = vrot.slane %v937, %v1145
      %v1147 = vlaneseq
      %v1148 = vshrl.u32 %v1147, 7
      %v1149 = vsub.s32 0, %v1148
      %v1150 = vrot.slane %v944, %v1149
      %1153 = vrot.lane.b32.xlu0 %v1089, 96
      %v1154 = vpop.permute.xlu0 %1153
      %vm1155 = vcmask 64512
      %v1156 = vsel %vm1155, %v1079, 0
      %v1158 = vsel %vm1155, %v1154, 0
      %1160 = vmatprep.subr.mxu0 0.0
      %1161 = vmatpush1.xpose.msra.mxu0 %v1158
      %1162 = vmatprep.subr.mxu0 0.0
      %1163 = vmatpush1.xpose.msra.mxu0 0.0
      %1164 = vmatprep.subr.mxu0 0.0
      %1165 = vmatpush1.xpose.msra.mxu0 0.0
      %1166 = vmatprep.subr.mxu0 0.0
      %1167 = vmatpush1.xpose.msra.mxu0 0.0
      %1168 = vmatprep.subr.mxu0 0.0
      %1169 = vmatpush1.xpose.msra.mxu0 0.0
      %1170 = vmatprep.subr.mxu0 0.0
      %1171 = vmatpush1.xpose.msra.mxu0 0.0
      %1172 = vmatprep.subr.mxu0 0.0
      %1173 = vmatpush1.xpose.msra.mxu0 0.0
      %1174 = vmatprep.subr.mxu0 0.0
      %1175 = vmatpush1.xpose.msra.mxu0 0.0
      %1176 = vmatprep.subr.mxu0 0.0
      %1177 = vmatpush1.xpose.msra.mxu0 0.0
      %1178 = vmatprep.subr.mxu0 0.0
      %1179 = vmatpush1.xpose.msra.mxu0 0.0
      %1180 = vmatprep.subr.mxu0 0.0
      %1181 = vmatpush1.xpose.msra.mxu0 0.0
      %1182 = vmatprep.subr.mxu0 0.0
      %1183 = vmatpush1.xpose.msra.mxu0 0.0
      %1184 = vmatprep.subr.mxu0 0.0
      %1185 = vmatpush1.xpose.msra.mxu0 0.0
      %1186 = vmatprep.subr.mxu0 0.0
      %1187 = vmatpush1.xpose.msra.mxu0 0.0
      %1188 = vmatprep.subr.mxu0 0.0
      %1189 = vmatpush1.xpose.msra.mxu0 0.0
      %1190 = vmatprep.subr.mxu0 0.0
      %1191 = vmatpush1.xpose.msra.mxu0 0.0
      %1192 = vmatprep.subr.mxu0 0.0
      %1193 = vmatpush1.xpose.msra.mxu0 0.0
      %1194 = vmatprep.subr.mxu0 0.0
      %1195 = vmatpush1.xpose.msra.mxu0 0.0
      %1196 = vmatprep.subr.mxu0 0.0
      %1197 = vmatpush1.xpose.msra.mxu0 0.0
      %1198 = vmatprep.subr.mxu0 0.0
      %1199 = vmatpush1.xpose.msra.mxu0 0.0
      %1200 = vmatprep.subr.mxu0 0.0
      %1201 = vmatpush1.xpose.msra.mxu0 0.0
      %1202 = vmatprep.subr.mxu0 0.0
      %1203 = vmatpush1.xpose.msra.mxu0 0.0
      %1204 = vmatprep.subr.mxu0 0.0
      %1205 = vmatpush1.xpose.msra.mxu0 0.0
      %1206 = vmatprep.subr.mxu0 0.0
      %1207 = vmatpush1.xpose.msra.mxu0 0.0
      %1208 = vmatprep.subr.mxu0 0.0
      %1209 = vmatpush1.xpose.msra.mxu0 0.0
      %1210 = vmatprep.subr.mxu0 0.0
      %1211 = vmatpush1.xpose.msra.mxu0 0.0
      %1212 = vmatprep.subr.mxu0 0.0
      %1213 = vmatpush1.xpose.msra.mxu0 0.0
      %1214 = vmatprep.subr.mxu0 0.0
      %1215 = vmatpush1.xpose.msra.mxu0 0.0
      %1216 = vmatprep.subr.mxu0 0.0
      %1217 = vmatpush1.xpose.msra.mxu0 0.0
      %1218 = vmatprep.subr.mxu0 0.0
      %1219 = vmatpush1.xpose.msra.mxu0 0.0
      %1220 = vmatprep.subr.mxu0 0.0
      %1221 = vmatpush1.xpose.msra.mxu0 0.0
      %1222 = vmatprep.subr.mxu0 0.0
      %1223 = vmatpush1.xpose.msra.mxu0 0.0
      %1224 = vmatprep.mubr.f32.mxu0 0.0
      %1225 = vmatmul.mubr.f32.gmra.mrb[0].mxu0 %v1156
      %v1226 = vpop.f32.mrb[0].mxu0
      %v1227 = vadd.f32 %v1146, %v1226
      %v1228 = vpop.f32.mrb[0].mxu0
      %1229 = vdwg.mxu0
      %1230 = vrot.lane.b32.xlu0 %v1090, 96
      %v1231 = vpop.permute.xlu0 %1230
      %v1232 = vsel %vm1155, %v1080, 0
      %v1234 = vsel %vm1155, %v1231, 0
      %1236 = vmatprep.subr.mxu0 0.0
      %1237 = vmatpush1.xpose.msra.mxu0 %v1234
      %1238 = vmatprep.subr.mxu0 0.0
      %1239 = vmatpush1.xpose.msra.mxu0 0.0
      %1240 = vmatprep.subr.mxu0 0.0
      %1241 = vmatpush1.xpose.msra.mxu0 0.0
      %1242 = vmatprep.subr.mxu0 0.0
      %1243 = vmatpush1.xpose.msra.mxu0 0.0
      %1244 = vmatprep.subr.mxu0 0.0
      %1245 = vmatpush1.xpose.msra.mxu0 0.0
      %1246 = vmatprep.subr.mxu0 0.0
      %1247 = vmatpush1.xpose.msra.mxu0 0.0
      %1248 = vmatprep.subr.mxu0 0.0
      %1249 = vmatpush1.xpose.msra.mxu0 0.0
      %1250 = vmatprep.subr.mxu0 0.0
      %1251 = vmatpush1.xpose.msra.mxu0 0.0
      %1252 = vmatprep.subr.mxu0 0.0
      %1253 = vmatpush1.xpose.msra.mxu0 0.0
      %1254 = vmatprep.subr.mxu0 0.0
      %1255 = vmatpush1.xpose.msra.mxu0 0.0
      %1256 = vmatprep.subr.mxu0 0.0
      %1257 = vmatpush1.xpose.msra.mxu0 0.0
      %1258 = vmatprep.subr.mxu0 0.0
      %1259 = vmatpush1.xpose.msra.mxu0 0.0
      %1260 = vmatprep.subr.mxu0 0.0
      %1261 = vmatpush1.xpose.msra.mxu0 0.0
      %1262 = vmatprep.subr.mxu0 0.0
      %1263 = vmatpush1.xpose.msra.mxu0 0.0
      %1264 = vmatprep.subr.mxu0 0.0
      %1265 = vmatpush1.xpose.msra.mxu0 0.0
      %1266 = vmatprep.subr.mxu0 0.0
      %1267 = vmatpush1.xpose.msra.mxu0 0.0
      %1268 = vmatprep.subr.mxu0 0.0
      %1269 = vmatpush1.xpose.msra.mxu0 0.0
      %1270 = vmatprep.subr.mxu0 0.0
      %1271 = vmatpush1.xpose.msra.mxu0 0.0
      %1272 = vmatprep.subr.mxu0 0.0
      %1273 = vmatpush1.xpose.msra.mxu0 0.0
      %1274 = vmatprep.subr.mxu0 0.0
      %1275 = vmatpush1.xpose.msra.mxu0 0.0
      %1276 = vmatprep.subr.mxu0 0.0
      %1277 = vmatpush1.xpose.msra.mxu0 0.0
      %1278 = vmatprep.subr.mxu0 0.0
      %1279 = vmatpush1.xpose.msra.mxu0 0.0
      %1280 = vmatprep.subr.mxu0 0.0
      %1281 = vmatpush1.xpose.msra.mxu0 0.0
      %1282 = vmatprep.subr.mxu0 0.0
      %1283 = vmatpush1.xpose.msra.mxu0 0.0
      %1284 = vmatprep.subr.mxu0 0.0
      %1285 = vmatpush1.xpose.msra.mxu0 0.0
      %1286 = vmatprep.subr.mxu0 0.0
      %1287 = vmatpush1.xpose.msra.mxu0 0.0
      %1288 = vmatprep.subr.mxu0 0.0
      %1289 = vmatpush1.xpose.msra.mxu0 0.0
      %1290 = vmatprep.subr.mxu0 0.0
      %1291 = vmatpush1.xpose.msra.mxu0 0.0
      %1292 = vmatprep.subr.mxu0 0.0
      %1293 = vmatpush1.xpose.msra.mxu0 0.0
      %1294 = vmatprep.subr.mxu0 0.0
      %1295 = vmatpush1.xpose.msra.mxu0 0.0
      %1296 = vmatprep.subr.mxu0 0.0
      %1297 = vmatpush1.xpose.msra.mxu0 0.0
      %1298 = vmatprep.subr.mxu0 0.0
      %1299 = vmatpush1.xpose.msra.mxu0 0.0
      %1300 = vmatprep.mubr.f32.mxu0 0.0
      %1301 = vmatmul.mubr.f32.gmra.mrb[0].mxu0 %v1232
      %v1302 = vpop.f32.mrb[0].mxu0
      %v1303 = vadd.f32 %v1150, %v1302
      %v1304 = vpop.f32.mrb[0].mxu0
      %1305 = vdwg.mxu0
      %1306 = vrot.lane.b32.xlu0 %v1118, 96
      %v1307 = vpop.permute.xlu0 %1306
      %v1308 = vsel %vm1155, %v1104, 0
      %v1310 = vsel %vm1155, %v1307, 0
      %1312 = vmatprep.subr.mxu0 0.0
      %1313 = vmatpush1.xpose.msra.mxu0 %v1310
      %1314 = vmatprep.subr.mxu0 0.0
      %1315 = vmatpush1.xpose.msra.mxu0 0.0
      %1316 = vmatprep.subr.mxu0 0.0
      %1317 = vmatpush1.xpose.msra.mxu0 0.0
      %1318 = vmatprep.subr.mxu0 0.0
      %1319 = vmatpush1.xpose.msra.mxu0 0.0
      %1320 = vmatprep.subr.mxu0 0.0
      %1321 = vmatpush1.xpose.msra.mxu0 0.0
      %1322 = vmatprep.subr.mxu0 0.0
      %1323 = vmatpush1.xpose.msra.mxu0 0.0
      %1324 = vmatprep.subr.mxu0 0.0
      %1325 = vmatpush1.xpose.msra.mxu0 0.0
      %1326 = vmatprep.subr.mxu0 0.0
      %1327 = vmatpush1.xpose.msra.mxu0 0.0
      %1328 = vmatprep.subr.mxu0 0.0
      %1329 = vmatpush1.xpose.msra.mxu0 0.0
      %1330 = vmatprep.subr.mxu0 0.0
      %1331 = vmatpush1.xpose.msra.mxu0 0.0
      %1332 = vmatprep.subr.mxu0 0.0
      %1333 = vmatpush1.xpose.msra.mxu0 0.0
      %1334 = vmatprep.subr.mxu0 0.0
      %1335 = vmatpush1.xpose.msra.mxu0 0.0
      %1336 = vmatprep.subr.mxu0 0.0
      %1337 = vmatpush1.xpose.msra.mxu0 0.0
      %1338 = vmatprep.subr.mxu0 0.0
      %1339 = vmatpush1.xpose.msra.mxu0 0.0
      %1340 = vmatprep.subr.mxu0 0.0
      %1341 = vmatpush1.xpose.msra.mxu0 0.0
      %1342 = vmatprep.subr.mxu0 0.0
      %1343 = vmatpush1.xpose.msra.mxu0 0.0
      %1344 = vmatprep.subr.mxu0 0.0
      %1345 = vmatpush1.xpose.msra.mxu0 0.0
      %1346 = vmatprep.subr.mxu0 0.0
      %1347 = vmatpush1.xpose.msra.mxu0 0.0
      %1348 = vmatprep.subr.mxu0 0.0
      %1349 = vmatpush1.xpose.msra.mxu0 0.0
      %1350 = vmatprep.subr.mxu0 0.0
      %1351 = vmatpush1.xpose.msra.mxu0 0.0
      %1352 = vmatprep.subr.mxu0 0.0
      %1353 = vmatpush1.xpose.msra.mxu0 0.0
      %1354 = vmatprep.subr.mxu0 0.0
      %1355 = vmatpush1.xpose.msra.mxu0 0.0
      %1356 = vmatprep.subr.mxu0 0.0
      %1357 = vmatpush1.xpose.msra.mxu0 0.0
      %1358 = vmatprep.subr.mxu0 0.0
      %1359 = vmatpush1.xpose.msra.mxu0 0.0
      %1360 = vmatprep.subr.mxu0 0.0
      %1361 = vmatpush1.xpose.msra.mxu0 0.0
      %1362 = vmatprep.subr.mxu0 0.0
      %1363 = vmatpush1.xpose.msra.mxu0 0.0
      %1364 = vmatprep.subr.mxu0 0.0
      %1365 = vmatpush1.xpose.msra.mxu0 0.0
      %1366 = vmatprep.subr.mxu0 0.0
      %1367 = vmatpush1.xpose.msra.mxu0 0.0
      %1368 = vmatprep.subr.mxu0 0.0
      %1369 = vmatpush1.xpose.msra.mxu0 0.0
      %1370 = vmatprep.subr.mxu0 0.0
      %1371 = vmatpush1.xpose.msra.mxu0 0.0
      %1372 = vmatprep.subr.mxu0 0.0
      %1373 = vmatpush1.xpose.msra.mxu0 0.0
      %1374 = vmatprep.subr.mxu0 0.0
      %1375 = vmatpush1.xpose.msra.mxu0 0.0
      %1376 = vmatprep.mubr.f32.mxu0 0.0
      %1377 = vmatmul.mubr.f32.gmra.mrb[0].mxu0 %v1308
      %v1378 = vpop.f32.mrb[0].mxu0
      %v1379 = vadd.f32 %v1146, %v1378
      %v1380 = vpop.f32.mrb[0].mxu0
      %1381 = vdwg.mxu0
      %1382 = vrot.lane.b32.xlu0 %v1120, 96
      %v1383 = vpop.permute.xlu0 %1382
      %v1384 = vsel %vm1155, %v1106, 0
      %v1386 = vsel %vm1155, %v1383, 0
      %1388 = vmatprep.subr.mxu0 0.0
      %1389 = vmatpush1.xpose.msra.mxu0 %v1386
      %1390 = vmatprep.subr.mxu0 0.0
      %1391 = vmatpush1.xpose.msra.mxu0 0.0
      %1392 = vmatprep.subr.mxu0 0.0
      %1393 = vmatpush1.xpose.msra.mxu0 0.0
      %1394 = vmatprep.subr.mxu0 0.0
      %1395 = vmatpush1.xpose.msra.mxu0 0.0
      %1396 = vmatprep.subr.mxu0 0.0
      %1397 = vmatpush1.xpose.msra.mxu0 0.0
      %1398 = vmatprep.subr.mxu0 0.0
      %1399 = vmatpush1.xpose.msra.mxu0 0.0
      %1400 = vmatprep.subr.mxu0 0.0
      %1401 = vmatpush1.xpose.msra.mxu0 0.0
      %1402 = vmatprep.subr.mxu0 0.0
      %1403 = vmatpush1.xpose.msra.mxu0 0.0
      %1404 = vmatprep.subr.mxu0 0.0
      %1405 = vmatpush1.xpose.msra.mxu0 0.0
      %1406 = vmatprep.subr.mxu0 0.0
      %1407 = vmatpush1.xpose.msra.mxu0 0.0
      %1408 = vmatprep.subr.mxu0 0.0
      %1409 = vmatpush1.xpose.msra.mxu0 0.0
      %1410 = vmatprep.subr.mxu0 0.0
      %1411 = vmatpush1.xpose.msra.mxu0 0.0
      %1412 = vmatprep.subr.mxu0 0.0
      %1413 = vmatpush1.xpose.msra.mxu0 0.0
      %1414 = vmatprep.subr.mxu0 0.0
      %1415 = vmatpush1.xpose.msra.mxu0 0.0
      %1416 = vmatprep.subr.mxu0 0.0
      %1417 = vmatpush1.xpose.msra.mxu0 0.0
      %1418 = vmatprep.subr.mxu0 0.0
      %1419 = vmatpush1.xpose.msra.mxu0 0.0
      %1420 = vmatprep.subr.mxu0 0.0
      %1421 = vmatpush1.xpose.msra.mxu0 0.0
      %1422 = vmatprep.subr.mxu0 0.0
      %1423 = vmatpush1.xpose.msra.mxu0 0.0
      %1424 = vmatprep.subr.mxu0 0.0
      %1425 = vmatpush1.xpose.msra.mxu0 0.0
      %1426 = vmatprep.subr.mxu0 0.0
      %1427 = vmatpush1.xpose.msra.mxu0 0.0
      %1428 = vmatprep.subr.mxu0 0.0
      %1429 = vmatpush1.xpose.msra.mxu0 0.0
      %1430 = vmatprep.subr.mxu0 0.0
      %1431 = vmatpush1.xpose.msra.mxu0 0.0
      %1432 = vmatprep.subr.mxu0 0.0
      %1433 = vmatpush1.xpose.msra.mxu0 0.0
      %1434 = vmatprep.subr.mxu0 0.0
      %1435 = vmatpush1.xpose.msra.mxu0 0.0
      %1436 = vmatprep.subr.mxu0 0.0
      %1437 = vmatpush1.xpose.msra.mxu0 0.0
      %1438 = vmatprep.subr.mxu0 0.0
      %1439 = vmatpush1.xpose.msra.mxu0 0.0
      %1440 = vmatprep.subr.mxu0 0.0
      %1441 = vmatpush1.xpose.msra.mxu0 0.0
      %1442 = vmatprep.subr.mxu0 0.0
      %1443 = vmatpush1.xpose.msra.mxu0 0.0
      %1444 = vmatprep.subr.mxu0 0.0
      %1445 = vmatpush1.xpose.msra.mxu0 0.0
      %1446 = vmatprep.subr.mxu0 0.0
      %1447 = vmatpush1.xpose.msra.mxu0 0.0
      %1448 = vmatprep.subr.mxu0 0.0
      %1449 = vmatpush1.xpose.msra.mxu0 0.0
      %1450 = vmatprep.subr.mxu0 0.0
      %1451 = vmatpush1.xpose.msra.mxu0 0.0
      %1452 = vmatprep.mubr.f32.mxu0 0.0
      %1453 = vmatmul.mubr.f32.gmra.mrb[0].mxu0 %v1384
      %v1454 = vpop.f32.mrb[0].mxu0
      %v1455 = vadd.f32 %v1150, %v1454
      %v1456 = vpop.f32.mrb[0].mxu0
      %1457 = vdwg.mxu0
      %1458 = vrot.lane.b32.xlu0 %v1122, 96
      %v1459 = vpop.permute.xlu0 %1458
      %v1460 = vsel %vm1155, %v1108, 0
      %v1462 = vsel %vm1155, %v1459, 0
      %1464 = vmatprep.subr.mxu0 0.0
      %1465 = vmatpush1.xpose.msra.mxu0 %v1462
      %1466 = vmatprep.subr.mxu0 0.0
      %1467 = vmatpush1.xpose.msra.mxu0 0.0
      %1468 = vmatprep.subr.mxu0 0.0
      %1469 = vmatpush1.xpose.msra.mxu0 0.0
      %1470 = vmatprep.subr.mxu0 0.0
      %1471 = vmatpush1.xpose.msra.mxu0 0.0
      %1472 = vmatprep.subr.mxu0 0.0
      %1473 = vmatpush1.xpose.msra.mxu0 0.0
      %1474 = vmatprep.subr.mxu0 0.0
      %1475 = vmatpush1.xpose.msra.mxu0 0.0
      %1476 = vmatprep.subr.mxu0 0.0
      %1477 = vmatpush1.xpose.msra.mxu0 0.0
      %1478 = vmatprep.subr.mxu0 0.0
      %1479 = vmatpush1.xpose.msra.mxu0 0.0
      %1480 = vmatprep.subr.mxu0 0.0
      %1481 = vmatpush1.xpose.msra.mxu0 0.0
      %1482 = vmatprep.subr.mxu0 0.0
      %1483 = vmatpush1.xpose.msra.mxu0 0.0
      %1484 = vmatprep.subr.mxu0 0.0
      %1485 = vmatpush1.xpose.msra.mxu0 0.0
      %1486 = vmatprep.subr.mxu0 0.0
      %1487 = vmatpush1.xpose.msra.mxu0 0.0
      %1488 = vmatprep.subr.mxu0 0.0
      %1489 = vmatpush1.xpose.msra.mxu0 0.0
      %1490 = vmatprep.subr.mxu0 0.0
      %1491 = vmatpush1.xpose.msra.mxu0 0.0
      %1492 = vmatprep.subr.mxu0 0.0
      %1493 = vmatpush1.xpose.msra.mxu0 0.0
      %1494 = vmatprep.subr.mxu0 0.0
      %1495 = vmatpush1.xpose.msra.mxu0 0.0
      %1496 = vmatprep.subr.mxu0 0.0
      %1497 = vmatpush1.xpose.msra.mxu0 0.0
      %1498 = vmatprep.subr.mxu0 0.0
      %1499 = vmatpush1.xpose.msra.mxu0 0.0
      %1500 = vmatprep.subr.mxu0 0.0
      %1501 = vmatpush1.xpose.msra.mxu0 0.0
      %1502 = vmatprep.subr.mxu0 0.0
      %1503 = vmatpush1.xpose.msra.mxu0 0.0
      %1504 = vmatprep.subr.mxu0 0.0
      %1505 = vmatpush1.xpose.msra.mxu0 0.0
      %1506 = vmatprep.subr.mxu0 0.0
      %1507 = vmatpush1.xpose.msra.mxu0 0.0
      %1508 = vmatprep.subr.mxu0 0.0
      %1509 = vmatpush1.xpose.msra.mxu0 0.0
      %1510 = vmatprep.subr.mxu0 0.0
      %1511 = vmatpush1.xpose.msra.mxu0 0.0
      %1512 = vmatprep.subr.mxu0 0.0
      %1513 = vmatpush1.xpose.msra.mxu0 0.0
      %1514 = vmatprep.subr.mxu0 0.0
      %1515 = vmatpush1.xpose.msra.mxu0 0.0
      %1516 = vmatprep.subr.mxu0 0.0
      %1517 = vmatpush1.xpose.msra.mxu0 0.0
      %1518 = vmatprep.subr.mxu0 0.0
      %1519 = vmatpush1.xpose.msra.mxu0 0.0
      %1520 = vmatprep.subr.mxu0 0.0
      %1521 = vmatpush1.xpose.msra.mxu0 0.0
      %1522 = vmatprep.subr.mxu0 0.0
      %1523 = vmatpush1.xpose.msra.mxu0 0.0
      %1524 = vmatprep.subr.mxu0 0.0
      %1525 = vmatpush1.xpose.msra.mxu0 0.0
      %1526 = vmatprep.subr.mxu0 0.0
      %1527 = vmatpush1.xpose.msra.mxu0 0.0
      %1528 = vmatprep.mubr.f32.mxu0 0.0
      %1529 = vmatmul.mubr.f32.gmra.mrb[0].mxu0 %v1460
      %v1530 = vpop.f32.mrb[0].mxu0
      %v1531 = vadd.f32 %v1146, %v1530
      %v1532 = vpop.f32.mrb[0].mxu0
      %1533 = vdwg.mxu0
      %1534 = vrot.lane.b32.xlu0 %v1124, 96
      %v1535 = vpop.permute.xlu0 %1534
      %v1536 = vsel %vm1155, %v1110, 0
      %v1538 = vsel %vm1155, %v1535, 0
      %1540 = vmatprep.subr.mxu0 0.0
      %1541 = vmatpush1.xpose.msra.mxu0 %v1538
      %1542 = vmatprep.subr.mxu0 0.0
      %1543 = vmatpush1.xpose.msra.mxu0 0.0
      %1544 = vmatprep.subr.mxu0 0.0
      %1545 = vmatpush1.xpose.msra.mxu0 0.0
      %1546 = vmatprep.subr.mxu0 0.0
      %1547 = vmatpush1.xpose.msra.mxu0 0.0
      %1548 = vmatprep.subr.mxu0 0.0
      %1549 = vmatpush1.xpose.msra.mxu0 0.0
      %1550 = vmatprep.subr.mxu0 0.0
      %1551 = vmatpush1.xpose.msra.mxu0 0.0
      %1552 = vmatprep.subr.mxu0 0.0
      %1553 = vmatpush1.xpose.msra.mxu0 0.0
      %1554 = vmatprep.subr.mxu0 0.0
      %1555 = vmatpush1.xpose.msra.mxu0 0.0
      %1556 = vmatprep.subr.mxu0 0.0
      %1557 = vmatpush1.xpose.msra.mxu0 0.0
      %1558 = vmatprep.subr.mxu0 0.0
      %1559 = vmatpush1.xpose.msra.mxu0 0.0
      %1560 = vmatprep.subr.mxu0 0.0
      %1561 = vmatpush1.xpose.msra.mxu0 0.0
      %1562 = vmatprep.subr.mxu0 0.0
      %1563 = vmatpush1.xpose.msra.mxu0 0.0
      %1564 = vmatprep.subr.mxu0 0.0
      %1565 = vmatpush1.xpose.msra.mxu0 0.0
      %1566 = vmatprep.subr.mxu0 0.0
      %1567 = vmatpush1.xpose.msra.mxu0 0.0
      %1568 = vmatprep.subr.mxu0 0.0
      %1569 = vmatpush1.xpose.msra.mxu0 0.0
      %1570 = vmatprep.subr.mxu0 0.0
      %1571 = vmatpush1.xpose.msra.mxu0 0.0
      %1572 = vmatprep.subr.mxu0 0.0
      %1573 = vmatpush1.xpose.msra.mxu0 0.0
      %1574 = vmatprep.subr.mxu0 0.0
      %1575 = vmatpush1.xpose.msra.mxu0 0.0
      %1576 = vmatprep.subr.mxu0 0.0
      %1577 = vmatpush1.xpose.msra.mxu0 0.0
      %1578 = vmatprep.subr.mxu0 0.0
      %1579 = vmatpush1.xpose.msra.mxu0 0.0
      %1580 = vmatprep.subr.mxu0 0.0
      %1581 = vmatpush1.xpose.msra.mxu0 0.0
      %1582 = vmatprep.subr.mxu0 0.0
      %1583 = vmatpush1.xpose.msra.mxu0 0.0
      %1584 = vmatprep.subr.mxu0 0.0
      %1585 = vmatpush1.xpose.msra.mxu0 0.0
      %1586 = vmatprep.subr.mxu0 0.0
      %1587 = vmatpush1.xpose.msra.mxu0 0.0
      %1588 = vmatprep.subr.mxu0 0.0
      %1589 = vmatpush1.xpose.msra.mxu0 0.0
      %1590 = vmatprep.subr.mxu0 0.0
      %1591 = vmatpush1.xpose.msra.mxu0 0.0
      %1592 = vmatprep.subr.mxu0 0.0
      %1593 = vmatpush1.xpose.msra.mxu0 0.0
      %1594 = vmatprep.subr.mxu0 0.0
      %1595 = vmatpush1.xpose.msra.mxu0 0.0
      %1596 = vmatprep.subr.mxu0 0.0
      %1597 = vmatpush1.xpose.msra.mxu0 0.0
      %1598 = vmatprep.subr.mxu0 0.0
      %1599 = vmatpush1.xpose.msra.mxu0 0.0
      %1600 = vmatprep.subr.mxu0 0.0
      %1601 = vmatpush1.xpose.msra.mxu0 0.0
      %1602 = vmatprep.subr.mxu0 0.0
      %1603 = vmatpush1.xpose.msra.mxu0 0.0
      %1604 = vmatprep.mubr.f32.mxu0 0.0
      %1605 = vmatmul.mubr.f32.gmra.mrb[0].mxu0 %v1536
      %v1606 = vpop.f32.mrb[0].mxu0
      %v1607 = vadd.f32 %v1150, %v1606
      %v1608 = vpop.f32.mrb[0].mxu0
      %1609 = vdwg.mxu0
      %1610 = vrot.lane.b32.xlu0 %v1126, 96
      %v1611 = vpop.permute.xlu0 %1610
      %v1612 = vsel %vm1155, %v1112, 0
      %v1614 = vsel %vm1155, %v1611, 0
      %1616 = vmatprep.subr.mxu0 0.0
      %1617 = vmatpush1.xpose.msra.mxu0 %v1614
      %1618 = vmatprep.subr.mxu0 0.0
      %1619 = vmatpush1.xpose.msra.mxu0 0.0
      %1620 = vmatprep.subr.mxu0 0.0
      %1621 = vmatpush1.xpose.msra.mxu0 0.0
      %1622 = vmatprep.subr.mxu0 0.0
      %1623 = vmatpush1.xpose.msra.mxu0 0.0
      %1624 = vmatprep.subr.mxu0 0.0
      %1625 = vmatpush1.xpose.msra.mxu0 0.0
      %1626 = vmatprep.subr.mxu0 0.0
      %1627 = vmatpush1.xpose.msra.mxu0 0.0
      %1628 = vmatprep.subr.mxu0 0.0
      %1629 = vmatpush1.xpose.msra.mxu0 0.0
      %1630 = vmatprep.subr.mxu0 0.0
      %1631 = vmatpush1.xpose.msra.mxu0 0.0
      %1632 = vmatprep.subr.mxu0 0.0
      %1633 = vmatpush1.xpose.msra.mxu0 0.0
      %1634 = vmatprep.subr.mxu0 0.0
      %1635 = vmatpush1.xpose.msra.mxu0 0.0
      %1636 = vmatprep.subr.mxu0 0.0
      %1637 = vmatpush1.xpose.msra.mxu0 0.0
      %1638 = vmatprep.subr.mxu0 0.0
      %1639 = vmatpush1.xpose.msra.mxu0 0.0
      %1640 = vmatprep.subr.mxu0 0.0
      %1641 = vmatpush1.xpose.msra.mxu0 0.0
      %1642 = vmatprep.subr.mxu0 0.0
      %1643 = vmatpush1.xpose.msra.mxu0 0.0
      %1644 = vmatprep.subr.mxu0 0.0
      %1645 = vmatpush1.xpose.msra.mxu0 0.0
      %1646 = vmatprep.subr.mxu0 0.0
      %1647 = vmatpush1.xpose.msra.mxu0 0.0
      %1648 = vmatprep.subr.mxu0 0.0
      %1649 = vmatpush1.xpose.msra.mxu0 0.0
      %1650 = vmatprep.subr.mxu0 0.0
      %1651 = vmatpush1.xpose.msra.mxu0 0.0
      %1652 = vmatprep.subr.mxu0 0.0
      %1653 = vmatpush1.xpose.msra.mxu0 0.0
      %1654 = vmatprep.subr.mxu0 0.0
      %1655 = vmatpush1.xpose.msra.mxu0 0.0
      %1656 = vmatprep.subr.mxu0 0.0
      %1657 = vmatpush1.xpose.msra.mxu0 0.0
      %1658 = vmatprep.subr.mxu0 0.0
      %1659 = vmatpush1.xpose.msra.mxu0 0.0
      %1660 = vmatprep.subr.mxu0 0.0
      %1661 = vmatpush1.xpose.msra.mxu0 0.0
      %1662 = vmatprep.subr.mxu0 0.0
      %1663 = vmatpush1.xpose.msra.mxu0 0.0
      %1664 = vmatprep.subr.mxu0 0.0
      %1665 = vmatpush1.xpose.msra.mxu0 0.0
      %1666 = vmatprep.subr.mxu0 0.0
      %1667 = vmatpush1.xpose.msra.mxu0 0.0
      %1668 = vmatprep.subr.mxu0 0.0
      %1669 = vmatpush1.xpose.msra.mxu0 0.0
      %1670 = vmatprep.subr.mxu0 0.0
      %1671 = vmatpush1.xpose.msra.mxu0 0.0
      %1672 = vmatprep.subr.mxu0 0.0
      %1673 = vmatpush1.xpose.msra.mxu0 0.0
      %1674 = vmatprep.subr.mxu0 0.0
      %1675 = vmatpush1.xpose.msra.mxu0 0.0
      %1676 = vmatprep.subr.mxu0 0.0
      %1677 = vmatpush1.xpose.msra.mxu0 0.0
      %1678 = vmatprep.subr.mxu0 0.0
      %1679 = vmatpush1.xpose.msra.mxu0 0.0
      %1680 = vmatprep.mubr.f32.mxu0 0.0
      %1681 = vmatmul.mubr.f32.gmra.mrb[0].mxu0 %v1612
      %v1682 = vpop.f32.mrb[0].mxu0
      %v1683 = vadd.f32 %v1146, %v1682
      %v1684 = vpop.f32.mrb[0].mxu0
      %1685 = vdwg.mxu0
      %1686 = vrot.lane.b32.xlu0 %v1128, 96
      %v1687 = vpop.permute.xlu0 %1686
      %v1688 = vsel %vm1155, %v1114, 0
      %v1690 = vsel %vm1155, %v1687, 0
      %1692 = vmatprep.subr.mxu0 0.0
      %1693 = vmatpush1.xpose.msra.mxu0 %v1690
      %1694 = vmatprep.subr.mxu0 0.0
      %1695 = vmatpush1.xpose.msra.mxu0 0.0
      %1696 = vmatprep.subr.mxu0 0.0
      %1697 = vmatpush1.xpose.msra.mxu0 0.0
      %1698 = vmatprep.subr.mxu0 0.0
      %1699 = vmatpush1.xpose.msra.mxu0 0.0
      %1700 = vmatprep.subr.mxu0 0.0
      %1701 = vmatpush1.xpose.msra.mxu0 0.0
      %1702 = vmatprep.subr.mxu0 0.0
      %1703 = vmatpush1.xpose.msra.mxu0 0.0
      %1704 = vmatprep.subr.mxu0 0.0
      %1705 = vmatpush1.xpose.msra.mxu0 0.0
      %1706 = vmatprep.subr.mxu0 0.0
      %1707 = vmatpush1.xpose.msra.mxu0 0.0
      %1708 = vmatprep.subr.mxu0 0.0
      %1709 = vmatpush1.xpose.msra.mxu0 0.0
      %1710 = vmatprep.subr.mxu0 0.0
      %1711 = vmatpush1.xpose.msra.mxu0 0.0
      %1712 = vmatprep.subr.mxu0 0.0
      %1713 = vmatpush1.xpose.msra.mxu0 0.0
      %1714 = vmatprep.subr.mxu0 0.0
      %1715 = vmatpush1.xpose.msra.mxu0 0.0
      %1716 = vmatprep.subr.mxu0 0.0
      %1717 = vmatpush1.xpose.msra.mxu0 0.0
      %1718 = vmatprep.subr.mxu0 0.0
      %1719 = vmatpush1.xpose.msra.mxu0 0.0
      %1720 = vmatprep.subr.mxu0 0.0
      %1721 = vmatpush1.xpose.msra.mxu0 0.0
      %1722 = vmatprep.subr.mxu0 0.0
      %1723 = vmatpush1.xpose.msra.mxu0 0.0
      %1724 = vmatprep.subr.mxu0 0.0
      %1725 = vmatpush1.xpose.msra.mxu0 0.0
      %1726 = vmatprep.subr.mxu0 0.0
      %1727 = vmatpush1.xpose.msra.mxu0 0.0
      %1728 = vmatprep.subr.mxu0 0.0
      %1729 = vmatpush1.xpose.msra.mxu0 0.0
      %1730 = vmatprep.subr.mxu0 0.0
      %1731 = vmatpush1.xpose.msra.mxu0 0.0
      %1732 = vmatprep.subr.mxu0 0.0
      %1733 = vmatpush1.xpose.msra.mxu0 0.0
      %1734 = vmatprep.subr.mxu0 0.0
      %1735 = vmatpush1.xpose.msra.mxu0 0.0
      %1736 = vmatprep.subr.mxu0 0.0
      %1737 = vmatpush1.xpose.msra.mxu0 0.0
      %1738 = vmatprep.subr.mxu0 0.0
      %1739 = vmatpush1.xpose.msra.mxu0 0.0
      %1740 = vmatprep.subr.mxu0 0.0
      %1741 = vmatpush1.xpose.msra.mxu0 0.0
      %1742 = vmatprep.subr.mxu0 0.0
      %1743 = vmatpush1.xpose.msra.mxu0 0.0
      %1744 = vmatprep.subr.mxu0 0.0
      %1745 = vmatpush1.xpose.msra.mxu0 0.0
      %1746 = vmatprep.subr.mxu0 0.0
      %1747 = vmatpush1.xpose.msra.mxu0 0.0
      %1748 = vmatprep.subr.mxu0 0.0
      %1749 = vmatpush1.xpose.msra.mxu0 0.0
      %1750 = vmatprep.subr.mxu0 0.0
      %1751 = vmatpush1.xpose.msra.mxu0 0.0
      %1752 = vmatprep.subr.mxu0 0.0
      %1753 = vmatpush1.xpose.msra.mxu0 0.0
      %1754 = vmatprep.subr.mxu0 0.0
      %1755 = vmatpush1.xpose.msra.mxu0 0.0
      %1756 = vmatprep.mubr.f32.mxu0 0.0
      %1757 = vmatmul.mubr.f32.gmra.mrb[0].mxu0 %v1688
      %v1758 = vpop.f32.mrb[0].mxu0
      %v1759 = vadd.f32 %v1150, %v1758
      %v1760 = vpop.f32.mrb[0].mxu0
      %1761 = vdwg.mxu0
      %v1762 = vsel %vm1155, %v1227, -inf
      %1763 = vmax.xlane.f32.xlu0 %v1762
      %v1764 = vpop.xlane.xlu0 %1763
      %v1765 = vsel %vm1155, %v1303, -inf
      %1766 = vmax.xlane.f32.xlu0 %v1765
      %v1767 = vpop.xlane.xlu0 %1766
      %v1768 = vsel %vm1155, %v1379, -inf
      %1769 = vmax.xlane.f32.xlu0 %v1768
      %v1770 = vpop.xlane.xlu0 %1769
      %v1771 = vsel %vm1155, %v1455, -inf
      %1772 = vmax.xlane.f32.xlu0 %v1771
      %v1773 = vpop.xlane.xlu0 %1772
      %v1774 = vsel %vm1155, %v1531, -inf
      %1775 = vmax.xlane.f32.xlu0 %v1774
      %v1776 = vpop.xlane.xlu0 %1775
      %v1777 = vsel %vm1155, %v1607, -inf
      %1778 = vmax.xlane.f32.xlu0 %v1777
      %v1779 = vpop.xlane.xlu0 %1778
      %v1780 = vsel %vm1155, %v1683, -inf
      %1781 = vmax.xlane.f32.xlu0 %v1780
      %v1782 = vpop.xlane.xlu0 %1781
      %v1783 = vsel %vm1155, %v1759, -inf
      %1784 = vmax.xlane.f32.xlu0 %v1783
      %v1785 = vpop.xlane.xlu0 %1784
      %v1786 = vsub.f32 %v1227, %v1764
      %v1787 = vsub.f32 %v1303, %v1767
      %v1788 = vsub.f32 %v1379, %v1770
      %v1789 = vsub.f32 %v1455, %v1773
      %v1790 = vsub.f32 %v1531, %v1776
      %v1791 = vsub.f32 %v1607, %v1779
      %v1792 = vsub.f32 %v1683, %v1782
      %v1793 = vsub.f32 %v1759, %v1785
      %v1794 = vmul.f32 %v1786, 1.442695
      %v1795 = vpow.pop %v1794
      %v1796 = vmul.f32 %v1787, 1.442695
      %v1797 = vpow.pop %v1796
      %v1798 = vmul.f32 %v1788, 1.442695
      %v1799 = vpow.pop %v1798
      %v1800 = vmul.f32 %v1789, 1.442695
      %v1801 = vpow.pop %v1800
      %v1802 = vmul.f32 %v1790, 1.442695
      %v1803 = vpow.pop %v1802
      %v1804 = vmul.f32 %v1791, 1.442695
      %v1805 = vpow.pop %v1804
      %v1806 = vmul.f32 %v1792, 1.442695
      %v1807 = vpow.pop %v1806
      %v1808 = vmul.f32 %v1793, 1.442695
      %v1809 = vpow.pop %v1808
      %v1810 = vsel %vm1155, %v1795, 0.0
      %1811 = vadd.xlane.f32.xlu0 %v1810
      %v1812 = vpop.xlane.xlu0 %1811
      %v1813 = vsel %vm1155, %v1797, 0.0
      %1814 = vadd.xlane.f32.xlu0 %v1813
      %v1815 = vpop.xlane.xlu0 %1814
      %v1816 = vsel %vm1155, %v1799, 0.0
      %1817 = vadd.xlane.f32.xlu0 %v1816
      %v1818 = vpop.xlane.xlu0 %1817
      %v1819 = vsel %vm1155, %v1801, 0.0
      %1820 = vadd.xlane.f32.xlu0 %v1819
      %v1821 = vpop.xlane.xlu0 %1820
      %v1822 = vsel %vm1155, %v1803, 0.0
      %1823 = vadd.xlane.f32.xlu0 %v1822
      %v1824 = vpop.xlane.xlu0 %1823
      %v1825 = vsel %vm1155, %v1805, 0.0
      %1826 = vadd.xlane.f32.xlu0 %v1825
      %v1827 = vpop.xlane.xlu0 %1826
      %v1828 = vsel %vm1155, %v1807, 0.0
      %1829 = vadd.xlane.f32.xlu0 %v1828
      %v1830 = vpop.xlane.xlu0 %1829
      %v1831 = vsel %vm1155, %v1809, 0.0
      %1832 = vadd.xlane.f32.xlu0 %v1831
      %v1833 = vpop.xlane.xlu0 %1832
      %v1834 = vrcp.pop %v1812
      %v1835 = vrcp.pop %v1815
      %v1836 = vrcp.pop %v1818
      %v1837 = vrcp.pop %v1821
      %v1838 = vrcp.pop %v1824
      %v1839 = vrcp.pop %v1827
      %v1840 = vrcp.pop %v1830
      %v1841 = vrcp.pop %v1833
      %v1842 = vmul.f32 %v1795, %v1834
      %v1843 = vmul.f32 %v1797, %v1835
      %v1844 = vmul.f32 %v1799, %v1836
      %v1845 = vmul.f32 %v1801, %v1837
      %v1846 = vmul.f32 %v1803, %v1838
      %v1847 = vmul.f32 %v1805, %v1839
      %v1848 = vmul.f32 %v1807, %v1840
      %v1849 = vmul.f32 %v1809, %v1841
      %1850 = vrot.lane.b32.xlu0 %v1099, 64
      %v1851 = vpop.permute.xlu0 %1850
      %v1854 = vsel %vm1155, %v1842, 0
      %1856 = vmatprep.subr.mxu0 0.0
      %1857 = vmatpush1.msra.mxu0 %v1851
      %1858 = vmatprep.subr.mxu0 0.0
      %1859 = vmatpush1.msra.mxu0 0.0
      %1860 = vmatprep.subr.mxu0 0.0
      %1861 = vmatpush1.msra.mxu0 0.0
      %1862 = vmatprep.subr.mxu0 0.0
      %1863 = vmatpush1.msra.mxu0 0.0
      %1864 = vmatprep.subr.mxu0 0.0
      %1865 = vmatpush1.msra.mxu0 0.0
      %1866 = vmatprep.subr.mxu0 0.0
      %1867 = vmatpush1.msra.mxu0 0.0
      %1868 = vmatprep.subr.mxu0 0.0
      %1869 = vmatpush1.msra.mxu0 0.0
      %1870 = vmatprep.subr.mxu0 0.0
      %1871 = vmatpush1.msra.mxu0 0.0
      %1872 = vmatprep.subr.mxu0 0.0
      %1873 = vmatpush1.msra.mxu0 0.0
      %1874 = vmatprep.subr.mxu0 0.0
      %1875 = vmatpush1.msra.mxu0 0.0
      %1876 = vmatprep.subr.mxu0 0.0
      %1877 = vmatpush1.msra.mxu0 0.0
      %1878 = vmatprep.subr.mxu0 0.0
      %1879 = vmatpush1.msra.mxu0 0.0
      %1880 = vmatprep.subr.mxu0 0.0
      %1881 = vmatpush1.msra.mxu0 0.0
      %1882 = vmatprep.subr.mxu0 0.0
      %1883 = vmatpush1.msra.mxu0 0.0
      %1884 = vmatprep.subr.mxu0 0.0
      %1885 = vmatpush1.msra.mxu0 0.0
      %1886 = vmatprep.subr.mxu0 0.0
      %1887 = vmatpush1.msra.mxu0 0.0
      %1888 = vmatprep.subr.mxu0 0.0
      %1889 = vmatpush1.msra.mxu0 0.0
      %1890 = vmatprep.subr.mxu0 0.0
      %1891 = vmatpush1.msra.mxu0 0.0
      %1892 = vmatprep.subr.mxu0 0.0
      %1893 = vmatpush1.msra.mxu0 0.0
      %1894 = vmatprep.subr.mxu0 0.0
      %1895 = vmatpush1.msra.mxu0 0.0
      %1896 = vmatprep.subr.mxu0 0.0
      %1897 = vmatpush1.msra.mxu0 0.0
      %1898 = vmatprep.subr.mxu0 0.0
      %1899 = vmatpush1.msra.mxu0 0.0
      %1900 = vmatprep.subr.mxu0 0.0
      %1901 = vmatpush1.msra.mxu0 0.0
      %1902 = vmatprep.subr.mxu0 0.0
      %1903 = vmatpush1.msra.mxu0 0.0
      %1904 = vmatprep.subr.mxu0 0.0
      %1905 = vmatpush1.msra.mxu0 0.0
      %1906 = vmatprep.subr.mxu0 0.0
      %1907 = vmatpush1.msra.mxu0 0.0
      %1908 = vmatprep.subr.mxu0 0.0
      %1909 = vmatpush1.msra.mxu0 0.0
      %1910 = vmatprep.subr.mxu0 0.0
      %1911 = vmatpush1.msra.mxu0 0.0
      %1912 = vmatprep.subr.mxu0 0.0
      %1913 = vmatpush1.msra.mxu0 0.0
      %1914 = vmatprep.subr.mxu0 0.0
      %1915 = vmatpush1.msra.mxu0 0.0
      %1916 = vmatprep.subr.mxu0 0.0
      %1917 = vmatpush1.msra.mxu0 0.0
      %1918 = vmatprep.subr.mxu0 0.0
      %1919 = vmatpush1.msra.mxu0 0.0
      %1920 = vmatprep.mubr.f32.mxu0 0.0
      %1921 = vmatmul.mubr.f32.gmra.mrb[0].mxu0 %v1854
      %v1922 = vpop.f32.mrb[0].mxu0
      %v1923 = vadd.f32 0.0, %v1922
      %v1924 = vpop.f32.mrb[0].mxu0
      %1925 = vdwg.mxu0
      %1926 = vrot.lane.b32.xlu0 %v1100, 64
      %v1927 = vpop.permute.xlu0 %1926
      %v1930 = vsel %vm1155, %v1843, 0
      %1932 = vmatprep.subr.mxu0 0.0
      %1933 = vmatpush1.msra.mxu0 %v1927
      %1934 = vmatprep.subr.mxu0 0.0
      %1935 = vmatpush1.msra.mxu0 0.0
      %1936 = vmatprep.subr.mxu0 0.0
      %1937 = vmatpush1.msra.mxu0 0.0
      %1938 = vmatprep.subr.mxu0 0.0
      %1939 = vmatpush1.msra.mxu0 0.0
      %1940 = vmatprep.subr.mxu0 0.0
      %1941 = vmatpush1.msra.mxu0 0.0
      %1942 = vmatprep.subr.mxu0 0.0
      %1943 = vmatpush1.msra.mxu0 0.0
      %1944 = vmatprep.subr.mxu0 0.0
      %1945 = vmatpush1.msra.mxu0 0.0
      %1946 = vmatprep.subr.mxu0 0.0
      %1947 = vmatpush1.msra.mxu0 0.0
      %1948 = vmatprep.subr.mxu0 0.0
      %1949 = vmatpush1.msra.mxu0 0.0
      %1950 = vmatprep.subr.mxu0 0.0
      %1951 = vmatpush1.msra.mxu0 0.0
      %1952 = vmatprep.subr.mxu0 0.0
      %1953 = vmatpush1.msra.mxu0 0.0
      %1954 = vmatprep.subr.mxu0 0.0
      %1955 = vmatpush1.msra.mxu0 0.0
      %1956 = vmatprep.subr.mxu0 0.0
      %1957 = vmatpush1.msra.mxu0 0.0
      %1958 = vmatprep.subr.mxu0 0.0
      %1959 = vmatpush1.msra.mxu0 0.0
      %1960 = vmatprep.subr.mxu0 0.0
      %1961 = vmatpush1.msra.mxu0 0.0
      %1962 = vmatprep.subr.mxu0 0.0
      %1963 = vmatpush1.msra.mxu0 0.0
      %1964 = vmatprep.subr.mxu0 0.0
      %1965 = vmatpush1.msra.mxu0 0.0
      %1966 = vmatprep.subr.mxu0 0.0
      %1967 = vmatpush1.msra.mxu0 0.0
      %1968 = vmatprep.subr.mxu0 0.0
      %1969 = vmatpush1.msra.mxu0 0.0
      %1970 = vmatprep.subr.mxu0 0.0
      %1971 = vmatpush1.msra.mxu0 0.0
      %1972 = vmatprep.subr.mxu0 0.0
      %1973 = vmatpush1.msra.mxu0 0.0
      %1974 = vmatprep.subr.mxu0 0.0
      %1975 = vmatpush1.msra.mxu0 0.0
      %1976 = vmatprep.subr.mxu0 0.0
      %1977 = vmatpush1.msra.mxu0 0.0
      %1978 = vmatprep.subr.mxu0 0.0
      %1979 = vmatpush1.msra.mxu0 0.0
      %1980 = vmatprep.subr.mxu0 0.0
      %1981 = vmatpush1.msra.mxu0 0.0
      %1982 = vmatprep.subr.mxu0 0.0
      %1983 = vmatpush1.msra.mxu0 0.0
      %1984 = vmatprep.subr.mxu0 0.0
      %1985 = vmatpush1.msra.mxu0 0.0
      %1986 = vmatprep.subr.mxu0 0.0
      %1987 = vmatpush1.msra.mxu0 0.0
      %1988 = vmatprep.subr.mxu0 0.0
      %1989 = vmatpush1.msra.mxu0 0.0
      %1990 = vmatprep.subr.mxu0 0.0
      %1991 = vmatpush1.msra.mxu0 0.0
      %1992 = vmatprep.subr.mxu0 0.0
      %1993 = vmatpush1.msra.mxu0 0.0
      %1994 = vmatprep.subr.mxu0 0.0
      %1995 = vmatpush1.msra.mxu0 0.0
      %1996 = vmatprep.mubr.f32.mxu0 0.0
      %1997 = vmatmul.mubr.f32.gmra.mrb[0].mxu0 %v1930
      %v1998 = vpop.f32.mrb[0].mxu0
      %v1999 = vadd.f32 0.0, %v1998
      %v2000 = vpop.f32.mrb[0].mxu0
      %2001 = vdwg.mxu0
      %2002 = vrot.lane.b32.xlu0 %v1132, 64
      %v2003 = vpop.permute.xlu0 %2002
      %v2006 = vsel %vm1155, %v1844, 0
      %2008 = vmatprep.subr.mxu0 0.0
      %2009 = vmatpush1.msra.mxu0 %v2003
      %2010 = vmatprep.subr.mxu0 0.0
      %2011 = vmatpush1.msra.mxu0 0.0
      %2012 = vmatprep.subr.mxu0 0.0
      %2013 = vmatpush1.msra.mxu0 0.0
      %2014 = vmatprep.subr.mxu0 0.0
      %2015 = vmatpush1.msra.mxu0 0.0
      %2016 = vmatprep.subr.mxu0 0.0
      %2017 = vmatpush1.msra.mxu0 0.0
      %2018 = vmatprep.subr.mxu0 0.0
      %2019 = vmatpush1.msra.mxu0 0.0
      %2020 = vmatprep.subr.mxu0 0.0
      %2021 = vmatpush1.msra.mxu0 0.0
      %2022 = vmatprep.subr.mxu0 0.0
      %2023 = vmatpush1.msra.mxu0 0.0
      %2024 = vmatprep.subr.mxu0 0.0
      %2025 = vmatpush1.msra.mxu0 0.0
      %2026 = vmatprep.subr.mxu0 0.0
      %2027 = vmatpush1.msra.mxu0 0.0
      %2028 = vmatprep.subr.mxu0 0.0
      %2029 = vmatpush1.msra.mxu0 0.0
      %2030 = vmatprep.subr.mxu0 0.0
      %2031 = vmatpush1.msra.mxu0 0.0
      %2032 = vmatprep.subr.mxu0 0.0
      %2033 = vmatpush1.msra.mxu0 0.0
      %2034 = vmatprep.subr.mxu0 0.0
      %2035 = vmatpush1.msra.mxu0 0.0
      %2036 = vmatprep.subr.mxu0 0.0
      %2037 = vmatpush1.msra.mxu0 0.0
      %2038 = vmatprep.subr.mxu0 0.0
      %2039 = vmatpush1.msra.mxu0 0.0
      %2040 = vmatprep.subr.mxu0 0.0
      %2041 = vmatpush1.msra.mxu0 0.0
      %2042 = vmatprep.subr.mxu0 0.0
      %2043 = vmatpush1.msra.mxu0 0.0
      %2044 = vmatprep.subr.mxu0 0.0
      %2045 = vmatpush1.msra.mxu0 0.0
      %2046 = vmatprep.subr.mxu0 0.0
      %2047 = vmatpush1.msra.mxu0 0.0
      %2048 = vmatprep.subr.mxu0 0.0
      %2049 = vmatpush1.msra.mxu0 0.0
      %2050 = vmatprep.subr.mxu0 0.0
      %2051 = vmatpush1.msra.mxu0 0.0
      %2052 = vmatprep.subr.mxu0 0.0
      %2053 = vmatpush1.msra.mxu0 0.0
      %2054 = vmatprep.subr.mxu0 0.0
      %2055 = vmatpush1.msra.mxu0 0.0
      %2056 = vmatprep.subr.mxu0 0.0
      %2057 = vmatpush1.msra.mxu0 0.0
      %2058 = vmatprep.subr.mxu0 0.0
      %2059 = vmatpush1.msra.mxu0 0.0
      %2060 = vmatprep.subr.mxu0 0.0
      %2061 = vmatpush1.msra.mxu0 0.0
      %2062 = vmatprep.subr.mxu0 0.0
      %2063 = vmatpush1.msra.mxu0 0.0
      %2064 = vmatprep.subr.mxu0 0.0
      %2065 = vmatpush1.msra.mxu0 0.0
      %2066 = vmatprep.subr.mxu0 0.0
      %2067 = vmatpush1.msra.mxu0 0.0
      %2068 = vmatprep.subr.mxu0 0.0
      %2069 = vmatpush1.msra.mxu0 0.0
      %2070 = vmatprep.subr.mxu0 0.0
      %2071 = vmatpush1.msra.mxu0 0.0
      %2072 = vmatprep.mubr.f32.mxu0 0.0
      %2073 = vmatmul.mubr.f32.gmra.mrb[0].mxu0 %v2006
      %v2074 = vpop.f32.mrb[0].mxu0
      %v2075 = vadd.f32 0.0, %v2074
      %v2076 = vpop.f32.mrb[0].mxu0
      %2077 = vdwg.mxu0
      %2078 = vrot.lane.b32.xlu0 %v1134, 64
      %v2079 = vpop.permute.xlu0 %2078
      %v2082 = vsel %vm1155, %v1845, 0
      %2084 = vmatprep.subr.mxu0 0.0
      %2085 = vmatpush1.msra.mxu0 %v2079
      %2086 = vmatprep.subr.mxu0 0.0
      %2087 = vmatpush1.msra.mxu0 0.0
      %2088 = vmatprep.subr.mxu0 0.0
      %2089 = vmatpush1.msra.mxu0 0.0
      %2090 = vmatprep.subr.mxu0 0.0
      %2091 = vmatpush1.msra.mxu0 0.0
      %2092 = vmatprep.subr.mxu0 0.0
      %2093 = vmatpush1.msra.mxu0 0.0
      %2094 = vmatprep.subr.mxu0 0.0
      %2095 = vmatpush1.msra.mxu0 0.0
      %2096 = vmatprep.subr.mxu0 0.0
      %2097 = vmatpush1.msra.mxu0 0.0
      %2098 = vmatprep.subr.mxu0 0.0
      %2099 = vmatpush1.msra.mxu0 0.0
      %2100 = vmatprep.subr.mxu0 0.0
      %2101 = vmatpush1.msra.mxu0 0.0
      %2102 = vmatprep.subr.mxu0 0.0
      %2103 = vmatpush1.msra.mxu0 0.0
      %2104 = vmatprep.subr.mxu0 0.0
      %2105 = vmatpush1.msra.mxu0 0.0
      %2106 = vmatprep.subr.mxu0 0.0
      %2107 = vmatpush1.msra.mxu0 0.0
      %2108 = vmatprep.subr.mxu0 0.0
      %2109 = vmatpush1.msra.mxu0 0.0
      %2110 = vmatprep.subr.mxu0 0.0
      %2111 = vmatpush1.msra.mxu0 0.0
      %2112 = vmatprep.subr.mxu0 0.0
      %2113 = vmatpush1.msra.mxu0 0.0
      %2114 = vmatprep.subr.mxu0 0.0
      %2115 = vmatpush1.msra.mxu0 0.0
      %2116 = vmatprep.subr.mxu0 0.0
      %2117 = vmatpush1.msra.mxu0 0.0
      %2118 = vmatprep.subr.mxu0 0.0
      %2119 = vmatpush1.msra.mxu0 0.0
      %2120 = vmatprep.subr.mxu0 0.0
      %2121 = vmatpush1.msra.mxu0 0.0
      %2122 = vmatprep.subr.mxu0 0.0
      %2123 = vmatpush1.msra.mxu0 0.0
      %2124 = vmatprep.subr.mxu0 0.0
      %2125 = vmatpush1.msra.mxu0 0.0
      %2126 = vmatprep.subr.mxu0 0.0
      %2127 = vmatpush1.msra.mxu0 0.0
      %2128 = vmatprep.subr.mxu0 0.0
      %2129 = vmatpush1.msra.mxu0 0.0
      %2130 = vmatprep.subr.mxu0 0.0
      %2131 = vmatpush1.msra.mxu0 0.0
      %2132 = vmatprep.subr.mxu0 0.0
      %2133 = vmatpush1.msra.mxu0 0.0
      %2134 = vmatprep.subr.mxu0 0.0
      %2135 = vmatpush1.msra.mxu0 0.0
      %2136 = vmatprep.subr.mxu0 0.0
      %2137 = vmatpush1.msra.mxu0 0.0
      %2138 = vmatprep.subr.mxu0 0.0
      %2139 = vmatpush1.msra.mxu0 0.0
      %2140 = vmatprep.subr.mxu0 0.0
      %2141 = vmatpush1.msra.mxu0 0.0
      %2142 = vmatprep.subr.mxu0 0.0
      %2143 = vmatpush1.msra.mxu0 0.0
      %2144 = vmatprep.subr.mxu0 0.0
      %2145 = vmatpush1.msra.mxu0 0.0
      %2146 = vmatprep.subr.mxu0 0.0
      %2147 = vmatpush1.msra.mxu0 0.0
      %2148 = vmatprep.mubr.f32.mxu0 0.0
      %2149 = vmatmul.mubr.f32.gmra.mrb[0].mxu0 %v2082
      %v2150 = vpop.f32.mrb[0].mxu0
      %v2151 = vadd.f32 0.0, %v2150
      %v2152 = vpop.f32.mrb[0].mxu0
      %2153 = vdwg.mxu0
      %2154 = vrot.lane.b32.xlu0 %v1136, 64
      %v2155 = vpop.permute.xlu0 %2154
      %v2158 = vsel %vm1155, %v1846, 0
      %2160 = vmatprep.subr.mxu0 0.0
      %2161 = vmatpush1.msra.mxu0 %v2155
      %2162 = vmatprep.subr.mxu0 0.0
      %2163 = vmatpush1.msra.mxu0 0.0
      %2164 = vmatprep.subr.mxu0 0.0
      %2165 = vmatpush1.msra.mxu0 0.0
      %2166 = vmatprep.subr.mxu0 0.0
      %2167 = vmatpush1.msra.mxu0 0.0
      %2168 = vmatprep.subr.mxu0 0.0
      %2169 = vmatpush1.msra.mxu0 0.0
      %2170 = vmatprep.subr.mxu0 0.0
      %2171 = vmatpush1.msra.mxu0 0.0
      %2172 = vmatprep.subr.mxu0 0.0
      %2173 = vmatpush1.msra.mxu0 0.0
      %2174 = vmatprep.subr.mxu0 0.0
      %2175 = vmatpush1.msra.mxu0 0.0
      %2176 = vmatprep.subr.mxu0 0.0
      %2177 = vmatpush1.msra.mxu0 0.0
      %2178 = vmatprep.subr.mxu0 0.0
      %2179 = vmatpush1.msra.mxu0 0.0
      %2180 = vmatprep.subr.mxu0 0.0
      %2181 = vmatpush1.msra.mxu0 0.0
      %2182 = vmatprep.subr.mxu0 0.0
      %2183 = vmatpush1.msra.mxu0 0.0
      %2184 = vmatprep.subr.mxu0 0.0
      %2185 = vmatpush1.msra.mxu0 0.0
      %2186 = vmatprep.subr.mxu0 0.0
      %2187 = vmatpush1.msra.mxu0 0.0
      %2188 = vmatprep.subr.mxu0 0.0
      %2189 = vmatpush1.msra.mxu0 0.0
      %2190 = vmatprep.subr.mxu0 0.0
      %2191 = vmatpush1.msra.mxu0 0.0
      %2192 = vmatprep.subr.mxu0 0.0
      %2193 = vmatpush1.msra.mxu0 0.0
      %2194 = vmatprep.subr.mxu0 0.0
      %2195 = vmatpush1.msra.mxu0 0.0
      %2196 = vmatprep.subr.mxu0 0.0
      %2197 = vmatpush1.msra.mxu0 0.0
      %2198 = vmatprep.subr.mxu0 0.0
      %2199 = vmatpush1.msra.mxu0 0.0
      %2200 = vmatprep.subr.mxu0 0.0
      %2201 = vmatpush1.msra.mxu0 0.0
      %2202 = vmatprep.subr.mxu0 0.0
      %2203 = vmatpush1.msra.mxu0 0.0
      %2204 = vmatprep.subr.mxu0 0.0
      %2205 = vmatpush1.msra.mxu0 0.0
      %2206 = vmatprep.subr.mxu0 0.0
      %2207 = vmatpush1.msra.mxu0 0.0
      %2208 = vmatprep.subr.mxu0 0.0
      %2209 = vmatpush1.msra.mxu0 0.0
      %2210 = vmatprep.subr.mxu0 0.0
      %2211 = vmatpush1.msra.mxu0 0.0
      %2212 = vmatprep.subr.mxu0 0.0
      %2213 = vmatpush1.msra.mxu0 0.0
      %2214 = vmatprep.subr.mxu0 0.0
      %2215 = vmatpush1.msra.mxu0 0.0
      %2216 = vmatprep.subr.mxu0 0.0
      %2217 = vmatpush1.msra.mxu0 0.0
      %2218 = vmatprep.subr.mxu0 0.0
      %2219 = vmatpush1.msra.mxu0 0.0
      %2220 = vmatprep.subr.mxu0 0.0
      %2221 = vmatpush1.msra.mxu0 0.0
      %2222 = vmatprep.subr.mxu0 0.0
      %2223 = vmatpush1.msra.mxu0 0.0
      %2224 = vmatprep.mubr.f32.mxu0 0.0
      %2225 = vmatmul.mubr.f32.gmra.mrb[0].mxu0 %v2158
      %v2226 = vpop.f32.mrb[0].mxu0
      %v2227 = vadd.f32 0.0, %v2226
      %v2228 = vpop.f32.mrb[0].mxu0
      %2229 = vdwg.mxu0
      %2230 = vrot.lane.b32.xlu0 %v1138, 64
      %v2231 = vpop.permute.xlu0 %2230
      %v2234 = vsel %vm1155, %v1847, 0
      %2236 = vmatprep.subr.mxu0 0.0
      %2237 = vmatpush1.msra.mxu0 %v2231
      %2238 = vmatprep.subr.mxu0 0.0
      %2239 = vmatpush1.msra.mxu0 0.0
      %2240 = vmatprep.subr.mxu0 0.0
      %2241 = vmatpush1.msra.mxu0 0.0
      %2242 = vmatprep.subr.mxu0 0.0
      %2243 = vmatpush1.msra.mxu0 0.0
      %2244 = vmatprep.subr.mxu0 0.0
      %2245 = vmatpush1.msra.mxu0 0.0
      %2246 = vmatprep.subr.mxu0 0.0
      %2247 = vmatpush1.msra.mxu0 0.0
      %2248 = vmatprep.subr.mxu0 0.0
      %2249 = vmatpush1.msra.mxu0 0.0
      %2250 = vmatprep.subr.mxu0 0.0
      %2251 = vmatpush1.msra.mxu0 0.0
      %2252 = vmatprep.subr.mxu0 0.0
      %2253 = vmatpush1.msra.mxu0 0.0
      %2254 = vmatprep.subr.mxu0 0.0
      %2255 = vmatpush1.msra.mxu0 0.0
      %2256 = vmatprep.subr.mxu0 0.0
      %2257 = vmatpush1.msra.mxu0 0.0
      %2258 = vmatprep.subr.mxu0 0.0
      %2259 = vmatpush1.msra.mxu0 0.0
      %2260 = vmatprep.subr.mxu0 0.0
      %2261 = vmatpush1.msra.mxu0 0.0
      %2262 = vmatprep.subr.mxu0 0.0
      %2263 = vmatpush1.msra.mxu0 0.0
      %2264 = vmatprep.subr.mxu0 0.0
      %2265 = vmatpush1.msra.mxu0 0.0
      %2266 = vmatprep.subr.mxu0 0.0
      %2267 = vmatpush1.msra.mxu0 0.0
      %2268 = vmatprep.subr.mxu0 0.0
      %2269 = vmatpush1.msra.mxu0 0.0
      %2270 = vmatprep.subr.mxu0 0.0
      %2271 = vmatpush1.msra.mxu0 0.0
      %2272 = vmatprep.subr.mxu0 0.0
      %2273 = vmatpush1.msra.mxu0 0.0
      %2274 = vmatprep.subr.mxu0 0.0
      %2275 = vmatpush1.msra.mxu0 0.0
      %2276 = vmatprep.subr.mxu0 0.0
      %2277 = vmatpush1.msra.mxu0 0.0
      %2278 = vmatprep.subr.mxu0 0.0
      %2279 = vmatpush1.msra.mxu0 0.0
      %2280 = vmatprep.subr.mxu0 0.0
      %2281 = vmatpush1.msra.mxu0 0.0
      %2282 = vmatprep.subr.mxu0 0.0
      %2283 = vmatpush1.msra.mxu0 0.0
      %2284 = vmatprep.subr.mxu0 0.0
      %2285 = vmatpush1.msra.mxu0 0.0
      %2286 = vmatprep.subr.mxu0 0.0
      %2287 = vmatpush1.msra.mxu0 0.0
      %2288 = vmatprep.subr.mxu0 0.0
      %2289 = vmatpush1.msra.mxu0 0.0
      %2290 = vmatprep.subr.mxu0 0.0
      %2291 = vmatpush1.msra.mxu0 0.0
      %2292 = vmatprep.subr.mxu0 0.0
      %2293 = vmatpush1.msra.mxu0 0.0
      %2294 = vmatprep.subr.mxu0 0.0
      %2295 = vmatpush1.msra.mxu0 0.0
      %2296 = vmatprep.subr.mxu0 0.0
      %2297 = vmatpush1.msra.mxu0 0.0
      %2298 = vmatprep.subr.mxu0 0.0
      %2299 = vmatpush1.msra.mxu0 0.0
      %2300 = vmatprep.mubr.f32.mxu0 0.0
      %2301 = vmatmul.mubr.f32.gmra.mrb[0].mxu0 %v2234
      %v2302 = vpop.f32.mrb[0].mxu0
      %v2303 = vadd.f32 0.0, %v2302
      %v2304 = vpop.f32.mrb[0].mxu0
      %2305 = vdwg.mxu0
      %2306 = vrot.lane.b32.xlu0 %v1140, 64
      %v2307 = vpop.permute.xlu0 %2306
      %v2310 = vsel %vm1155, %v1848, 0
      %2312 = vmatprep.subr.mxu0 0.0
      %2313 = vmatpush1.msra.mxu0 %v2307
      %2314 = vmatprep.subr.mxu0 0.0
      %2315 = vmatpush1.msra.mxu0 0.0
      %2316 = vmatprep.subr.mxu0 0.0
      %2317 = vmatpush1.msra.mxu0 0.0
      %2318 = vmatprep.subr.mxu0 0.0
      %2319 = vmatpush1.msra.mxu0 0.0
      %2320 = vmatprep.subr.mxu0 0.0
      %2321 = vmatpush1.msra.mxu0 0.0
      %2322 = vmatprep.subr.mxu0 0.0
      %2323 = vmatpush1.msra.mxu0 0.0
      %2324 = vmatprep.subr.mxu0 0.0
      %2325 = vmatpush1.msra.mxu0 0.0
      %2326 = vmatprep.subr.mxu0 0.0
      %2327 = vmatpush1.msra.mxu0 0.0
      %2328 = vmatprep.subr.mxu0 0.0
      %2329 = vmatpush1.msra.mxu0 0.0
      %2330 = vmatprep.subr.mxu0 0.0
      %2331 = vmatpush1.msra.mxu0 0.0
      %2332 = vmatprep.subr.mxu0 0.0
      %2333 = vmatpush1.msra.mxu0 0.0
      %2334 = vmatprep.subr.mxu0 0.0
      %2335 = vmatpush1.msra.mxu0 0.0
      %2336 = vmatprep.subr.mxu0 0.0
      %2337 = vmatpush1.msra.mxu0 0.0
      %2338 = vmatprep.subr.mxu0 0.0
      %2339 = vmatpush1.msra.mxu0 0.0
      %2340 = vmatprep.subr.mxu0 0.0
      %2341 = vmatpush1.msra.mxu0 0.0
      %2342 = vmatprep.subr.mxu0 0.0
      %2343 = vmatpush1.msra.mxu0 0.0
      %2344 = vmatprep.subr.mxu0 0.0
      %2345 = vmatpush1.msra.mxu0 0.0
      %2346 = vmatprep.subr.mxu0 0.0
      %2347 = vmatpush1.msra.mxu0 0.0
      %2348 = vmatprep.subr.mxu0 0.0
      %2349 = vmatpush1.msra.mxu0 0.0
      %2350 = vmatprep.subr.mxu0 0.0
      %2351 = vmatpush1.msra.mxu0 0.0
      %2352 = vmatprep.subr.mxu0 0.0
      %2353 = vmatpush1.msra.mxu0 0.0
      %2354 = vmatprep.subr.mxu0 0.0
      %2355 = vmatpush1.msra.mxu0 0.0
      %2356 = vmatprep.subr.mxu0 0.0
      %2357 = vmatpush1.msra.mxu0 0.0
      %2358 = vmatprep.subr.mxu0 0.0
      %2359 = vmatpush1.msra.mxu0 0.0
      %2360 = vmatprep.subr.mxu0 0.0
      %2361 = vmatpush1.msra.mxu0 0.0
      %2362 = vmatprep.subr.mxu0 0.0
      %2363 = vmatpush1.msra.mxu0 0.0
      %2364 = vmatprep.subr.mxu0 0.0
      %2365 = vmatpush1.msra.mxu0 0.0
      %2366 = vmatprep.subr.mxu0 0.0
      %2367 = vmatpush1.msra.mxu0 0.0
      %2368 = vmatprep.subr.mxu0 0.0
      %2369 = vmatpush1.msra.mxu0 0.0
      %2370 = vmatprep.subr.mxu0 0.0
      %2371 = vmatpush1.msra.mxu0 0.0
      %2372 = vmatprep.subr.mxu0 0.0
      %2373 = vmatpush1.msra.mxu0 0.0
      %2374 = vmatprep.subr.mxu0 0.0
      %2375 = vmatpush1.msra.mxu0 0.0
      %2376 = vmatprep.mubr.f32.mxu0 0.0
      %2377 = vmatmul.mubr.f32.gmra.mrb[0].mxu0 %v2310
      %v2378 = vpop.f32.mrb[0].mxu0
      %v2379 = vadd.f32 0.0, %v2378
      %v2380 = vpop.f32.mrb[0].mxu0
      %2381 = vdwg.mxu0
      %2382 = vrot.lane.b32.xlu0 %v1142, 64
      %v2383 = vpop.permute.xlu0 %2382
      %v2386 = vsel %vm1155, %v1849, 0
      %2388 = vmatprep.subr.mxu0 0.0
      %2389 = vmatpush1.msra.mxu0 %v2383
      %2390 = vmatprep.subr.mxu0 0.0
      %2391 = vmatpush1.msra.mxu0 0.0
      %2392 = vmatprep.subr.mxu0 0.0
      %2393 = vmatpush1.msra.mxu0 0.0
      %2394 = vmatprep.subr.mxu0 0.0
      %2395 = vmatpush1.msra.mxu0 0.0
      %2396 = vmatprep.subr.mxu0 0.0
      %2397 = vmatpush1.msra.mxu0 0.0
      %2398 = vmatprep.subr.mxu0 0.0
      %2399 = vmatpush1.msra.mxu0 0.0
      %2400 = vmatprep.subr.mxu0 0.0
      %2401 = vmatpush1.msra.mxu0 0.0
      %2402 = vmatprep.subr.mxu0 0.0
      %2403 = vmatpush1.msra.mxu0 0.0
      %2404 = vmatprep.subr.mxu0 0.0
      %2405 = vmatpush1.msra.mxu0 0.0
      %2406 = vmatprep.subr.mxu0 0.0
      %2407 = vmatpush1.msra.mxu0 0.0
      %2408 = vmatprep.subr.mxu0 0.0
      %2409 = vmatpush1.msra.mxu0 0.0
      %2410 = vmatprep.subr.mxu0 0.0
      %2411 = vmatpush1.msra.mxu0 0.0
      %2412 = vmatprep.subr.mxu0 0.0
      %2413 = vmatpush1.msra.mxu0 0.0
      %2414 = vmatprep.subr.mxu0 0.0
      %2415 = vmatpush1.msra.mxu0 0.0
      %2416 = vmatprep.subr.mxu0 0.0
      %2417 = vmatpush1.msra.mxu0 0.0
      %2418 = vmatprep.subr.mxu0 0.0
      %2419 = vmatpush1.msra.mxu0 0.0
      %2420 = vmatprep.subr.mxu0 0.0
      %2421 = vmatpush1.msra.mxu0 0.0
      %2422 = vmatprep.subr.mxu0 0.0
      %2423 = vmatpush1.msra.mxu0 0.0
      %2424 = vmatprep.subr.mxu0 0.0
      %2425 = vmatpush1.msra.mxu0 0.0
      %2426 = vmatprep.subr.mxu0 0.0
      %2427 = vmatpush1.msra.mxu0 0.0
      %2428 = vmatprep.subr.mxu0 0.0
      %2429 = vmatpush1.msra.mxu0 0.0
      %2430 = vmatprep.subr.mxu0 0.0
      %2431 = vmatpush1.msra.mxu0 0.0
      %2432 = vmatprep.subr.mxu0 0.0
      %2433 = vmatpush1.msra.mxu0 0.0
      %2434 = vmatprep.subr.mxu0 0.0
      %2435 = vmatpush1.msra.mxu0 0.0
      %2436 = vmatprep.subr.mxu0 0.0
      %2437 = vmatpush1.msra.mxu0 0.0
      %2438 = vmatprep.subr.mxu0 0.0
      %2439 = vmatpush1.msra.mxu0 0.0
      %2440 = vmatprep.subr.mxu0 0.0
      %2441 = vmatpush1.msra.mxu0 0.0
      %2442 = vmatprep.subr.mxu0 0.0
      %2443 = vmatpush1.msra.mxu0 0.0
      %2444 = vmatprep.subr.mxu0 0.0
      %2445 = vmatpush1.msra.mxu0 0.0
      %2446 = vmatprep.subr.mxu0 0.0
      %2447 = vmatpush1.msra.mxu0 0.0
      %2448 = vmatprep.subr.mxu0 0.0
      %2449 = vmatpush1.msra.mxu0 0.0
      %2450 = vmatprep.subr.mxu0 0.0
      %2451 = vmatpush1.msra.mxu0 0.0
      %2452 = vmatprep.mubr.f32.mxu0 0.0
      %2453 = vmatmul.mubr.f32.gmra.mrb[0].mxu0 %v2386
      %v2454 = vpop.f32.mrb[0].mxu0
      %v2455 = vadd.f32 0.0, %v2454
      %v2456 = vpop.f32.mrb[0].mxu0
      %2457 = vdwg.mxu0
      %2460 = vrot.lane.b32.xlu0 %v2075, 8
      %v2461 = vpop.permute.xlu0 %2460
      %2462 = vrot.lane.b32.xlu0 %v2151, 8
      %v2463 = vpop.permute.xlu0 %2462
      %2468 = vrot.lane.b32.xlu0 %v2227, 16
      %v2469 = vpop.permute.xlu0 %2468
      %2470 = vrot.lane.b32.xlu0 %v2303, 16
      %v2471 = vpop.permute.xlu0 %2470
      %2476 = vrot.lane.b32.xlu0 %v2379, 24
      %v2477 = vpop.permute.xlu0 %2476
      %2478 = vrot.lane.b32.xlu0 %v2455, 24
      %v2479 = vpop.permute.xlu0 %2478
      %v2482 = vsel %vm1155, %v1923, %v2461
      %v2483 = vsel %vm1155, %v1999, %v2463
      %vm2484 = vcmask 130048
      %v2485 = vsel %vm2484, %v2482, %v2469
      %v2486 = vsel %vm2484, %v2483, %v2471
      %vm2487 = vcmask 195584
      %v2488 = vsel %vm2487, %v2485, %v2477
      %v2489 = vsel %vm2487, %v2486, %v2479
      %v2490 = vsel %vm948, %v2488, 0.0
      %2491 = vadd.xlane.f32.xlu0 %v2490
      %v2492 = vpop.xlane.xlu0 %2491
      %v2493 = vsel %vm948, %v2489, 0.0
      %2494 = vadd.xlane.f32.xlu0 %v2493
      %v2495 = vpop.xlane.xlu0 %2494
      %v2496 = vmul.f32 %v2492, %v955
      %v2497 = vmul.f32 %v2495, %v955
      %v2498 = vsub.f32 %v2488, %v2496
      %v2499 = vsub.f32 %v2489, %v2497
      %v2500 = vmul.f32 %v2498, %v2498
      %v2501 = vmul.f32 %v2499, %v2499
      %v2502 = vsel %vm948, %v2500, 0.0
      %2503 = vadd.xlane.f32.xlu0 %v2502
      %v2504 = vpop.xlane.xlu0 %2503
      %v2505 = vsel %vm948, %v2501, 0.0
      %2506 = vadd.xlane.f32.xlu0 %v2505
      %v2507 = vpop.xlane.xlu0 %2506
      %v2508 = vmul.f32 %v2504, %v955
      %v2509 = vmul.f32 %v2507, %v955
      %v2510 = vadd.f32 %v2508, 1e-05
      %v2511 = vadd.f32 %v2509, 1e-05
      %v2512 = vrsqrt.pop %v2510
      %v2513 = vrsqrt.pop %v2511
      %v2514 = vmul.f32 %v2498, %v2512
      %v2515 = vmul.f32 %v2499, %v2513
      %v2516 = vlaneseq
      %v2517 = vshrl.u32 %v2516, 7
      %v2518 = vsub.s32 6, %v2517
      %v2519 = vrot.slane %v945, %v2518
      %v2520 = vmul.f32 %v2514, %v2519
      %v2521 = vmul.f32 %v2515, %v2519
      %v2522 = vlaneseq
      %v2523 = vshrl.u32 %v2522, 7
      %v2524 = vsub.s32 7, %v2523
      %v2525 = vrot.slane %v945, %v2524
      %v2526 = vadd.f32 %v2520, %v2525
      %v2527 = vadd.f32 %v2521, %v2525
      %v2528 = vld [vmem:[%s613] sm:$0xff]
      %v2529 = vld [vmem:[%s613 + $0x8] sm:$0xff]
      %v2530 = vld [vmem:[%s613 + $0x10] sm:$0xff]
      %v2531 = vld [vmem:[%s613 + $0x18] sm:$0xff]
      %v2532 = vlaneseq
      %v2533 = vshrl.u32 %v2532, 7
      %v2534 = vsub.s32 5, %v2533
      %v2535 = vrot.slane %v945, %v2534
      %v2537 = vsel %vm948, %v2526, 0
      %v2540 = vsel %vm948, %v2527, 0
      %2542 = vmatprep.subr.mxu0 0.0
      %2543 = vmatpush1.msra.mxu0 %v2528
      %2544 = vmatprep.subr.mxu0 0.0
      %2545 = vmatpush1.msra.mxu0 %v2529
      %2546 = vmatprep.subr.mxu0 0.0
      %2547 = vmatpush1.msra.mxu0 %v2530
      %2548 = vmatprep.subr.mxu0 0.0
      %2549 = vmatpush1.msra.mxu0 %v2531
      %2550 = vmatprep.subr.mxu0 0.0
      %2551 = vmatpush1.msra.mxu0 0.0
      %2552 = vmatprep.subr.mxu0 0.0
      %2553 = vmatpush1.msra.mxu0 0.0
      %2554 = vmatprep.subr.mxu0 0.0
      %2555 = vmatpush1.msra.mxu0 0.0
      %2556 = vmatprep.subr.mxu0 0.0
      %2557 = vmatpush1.msra.mxu0 0.0
      %2558 = vmatprep.subr.mxu0 0.0
      %2559 = vmatpush1.msra.mxu0 0.0
      %2560 = vmatprep.subr.mxu0 0.0
      %2561 = vmatpush1.msra.mxu0 0.0
      %2562 = vmatprep.subr.mxu0 0.0
      %2563 = vmatpush1.msra.mxu0 0.0
      %2564 = vmatprep.subr.mxu0 0.0
      %2565 = vmatpush1.msra.mxu0 0.0
      %2566 = vmatprep.subr.mxu0 0.0
      %2567 = vmatpush1.msra.mxu0 0.0
      %2568 = vmatprep.subr.mxu0 0.0
      %2569 = vmatpush1.msra.mxu0 0.0
      %2570 = vmatprep.subr.mxu0 0.0
      %2571 = vmatpush1.msra.mxu0 0.0
      %2572 = vmatprep.subr.mxu0 0.0
      %2573 = vmatpush1.msra.mxu0 0.0
      %2574 = vmatprep.subr.mxu0 0.0
      %2575 = vmatpush1.msra.mxu0 0.0
      %2576 = vmatprep.subr.mxu0 0.0
      %2577 = vmatpush1.msra.mxu0 0.0
      %2578 = vmatprep.subr.mxu0 0.0
      %2579 = vmatpush1.msra.mxu0 0.0
      %2580 = vmatprep.subr.mxu0 0.0
      %2581 = vmatpush1.msra.mxu0 0.0
      %2582 = vmatprep.subr.mxu0 0.0
      %2583 = vmatpush1.msra.mxu0 0.0
      %2584 = vmatprep.subr.mxu0 0.0
      %2585 = vmatpush1.msra.mxu0 0.0
      %2586 = vmatprep.subr.mxu0 0.0
      %2587 = vmatpush1.msra.mxu0 0.0
      %2588 = vmatprep.subr.mxu0 0.0
      %2589 = vmatpush1.msra.mxu0 0.0
      %2590 = vmatprep.subr.mxu0 0.0
      %2591 = vmatpush1.msra.mxu0 0.0
      %2592 = vmatprep.subr.mxu0 0.0
      %2593 = vmatpush1.msra.mxu0 0.0
      %2594 = vmatprep.subr.mxu0 0.0
      %2595 = vmatpush1.msra.mxu0 0.0
      %2596 = vmatprep.subr.mxu0 0.0
      %2597 = vmatpush1.msra.mxu0 0.0
      %2598 = vmatprep.subr.mxu0 0.0
      %2599 = vmatpush1.msra.mxu0 0.0
      %2600 = vmatprep.subr.mxu0 0.0
      %2601 = vmatpush1.msra.mxu0 0.0
      %2602 = vmatprep.subr.mxu0 0.0
      %2603 = vmatpush1.msra.mxu0 0.0
      %2604 = vmatprep.subr.mxu0 0.0
      %2605 = vmatpush1.msra.mxu0 0.0
      %2606 = vmatprep.mubr.f32.mxu0 0.0
      %2607 = vmatmul.mubr.f32.gmra.mrb[0].mxu0 %v2537
      %v2608 = vpop.f32.mrb[0].mxu0
      %v2609 = vadd.f32 %v2535, %v2608
      %v2610 = vpop.f32.mrb[0].mxu0
      %2611 = vmatprep.mubr.f32.mxu0 0.0
      %2612 = vmatmul.mubr.f32.gmra.mrb[0].mxu0 %v2540
      %v2613 = vpop.f32.mrb[0].mxu0
      %v2614 = vadd.f32 %v2535, %v2613
      %v2615 = vpop.f32.mrb[0].mxu0
      %2616 = vdwg.mxu0
      %v2617 = vadd.f32 %v919, %v2609
      %v2618 = vadd.f32 %v920, %v2614
      %v2619 = vsel %vm948, %v2617, 0.0
      %2620 = vadd.xlane.f32.xlu0 %v2619
      %v2621 = vpop.xlane.xlu0 %2620
      %v2622 = vsel %vm948, %v2618, 0.0
      %2623 = vadd.xlane.f32.xlu0 %v2622
      %v2624 = vpop.xlane.xlu0 %2623
      %v2625 = vmul.f32 %v2621, %v955
      %v2626 = vmul.f32 %v2624, %v955
      %v2627 = vsub.f32 %v2617, %v2625
      %v2628 = vsub.f32 %v2618, %v2626
      %v2629 = vmul.f32 %v2627, %v2627
      %v2630 = vmul.f32 %v2628, %v2628
      %v2631 = vsel %vm948, %v2629, 0.0
      %2632 = vadd.xlane.f32.xlu0 %v2631
      %v2633 = vpop.xlane.xlu0 %2632
      %v2634 = vsel %vm948, %v2630, 0.0
      %2635 = vadd.xlane.f32.xlu0 %v2634
      %v2636 = vpop.xlane.xlu0 %2635
      %v2637 = vmul.f32 %v2633, %v955
      %v2638 = vmul.f32 %v2636, %v955
      %v2639 = vadd.f32 %v2637, 1e-05
      %v2640 = vadd.f32 %v2638, 1e-05
      %v2641 = vrsqrt.pop %v2639
      %v2642 = vrsqrt.pop %v2640
      %v2643 = vmul.f32 %v2627, %v2641
      %v2644 = vmul.f32 %v2628, %v2642
      %v2645 = vlaneseq
      %v2646 = vshrl.u32 %v2645, 7
      %v2647 = vsub.s32 0, %v2646
      %v2648 = vrot.slane %v946, %v2647
      %v2649 = vmul.f32 %v2643, %v2648
      %v2650 = vmul.f32 %v2644, %v2648
      %v2651 = vlaneseq
      %v2652 = vshrl.u32 %v2651, 7
      %v2653 = vsub.s32 1, %v2652
      %v2654 = vrot.slane %v946, %v2653
      %v2655 = vadd.f32 %v2649, %v2654
      %v2656 = vadd.f32 %v2650, %v2654
      %v2657 = vld [vmem:[%s628] sm:$0xff]
      %v2658 = vld [vmem:[%s628 + $0x8] sm:$0xff]
      %v2659 = vld [vmem:[%s628 + $0x10] sm:$0xff]
      %v2660 = vld [vmem:[%s628 + $0x18] sm:$0xff]
      %v2661 = vlaneseq
      %v2662 = vshrl.u32 %v2661, 7
      %v2663 = vsub.s32 0, %v2662
      %v2664 = vrot.slane %v947, %v2663
      %v2666 = vsel %vm948, %v2655, 0
      %v2669 = vsel %vm948, %v2656, 0
      %2671 = vmatprep.subr.mxu0 0.0
      %2672 = vmatpush1.msra.mxu0 %v2657
      %2673 = vmatprep.subr.mxu0 0.0
      %2674 = vmatpush1.msra.mxu0 %v2658
      %2675 = vmatprep.subr.mxu0 0.0
      %2676 = vmatpush1.msra.mxu0 %v2659
      %2677 = vmatprep.subr.mxu0 0.0
      %2678 = vmatpush1.msra.mxu0 %v2660
      %2679 = vmatprep.subr.mxu0 0.0
      %2680 = vmatpush1.msra.mxu0 0.0
      %2681 = vmatprep.subr.mxu0 0.0
      %2682 = vmatpush1.msra.mxu0 0.0
      %2683 = vmatprep.subr.mxu0 0.0
      %2684 = vmatpush1.msra.mxu0 0.0
      %2685 = vmatprep.subr.mxu0 0.0
      %2686 = vmatpush1.msra.mxu0 0.0
      %2687 = vmatprep.subr.mxu0 0.0
      %2688 = vmatpush1.msra.mxu0 0.0
      %2689 = vmatprep.subr.mxu0 0.0
      %2690 = vmatpush1.msra.mxu0 0.0
      %2691 = vmatprep.subr.mxu0 0.0
      %2692 = vmatpush1.msra.mxu0 0.0
      %2693 = vmatprep.subr.mxu0 0.0
      %2694 = vmatpush1.msra.mxu0 0.0
      %2695 = vmatprep.subr.mxu0 0.0
      %2696 = vmatpush1.msra.mxu0 0.0
      %2697 = vmatprep.subr.mxu0 0.0
      %2698 = vmatpush1.msra.mxu0 0.0
      %2699 = vmatprep.subr.mxu0 0.0
      %2700 = vmatpush1.msra.mxu0 0.0
      %2701 = vmatprep.subr.mxu0 0.0
      %2702 = vmatpush1.msra.mxu0 0.0
      %2703 = vmatprep.subr.mxu0 0.0
      %2704 = vmatpush1.msra.mxu0 0.0
      %2705 = vmatprep.subr.mxu0 0.0
      %2706 = vmatpush1.msra.mxu0 0.0
      %2707 = vmatprep.subr.mxu0 0.0
      %2708 = vmatpush1.msra.mxu0 0.0
      %2709 = vmatprep.subr.mxu0 0.0
      %2710 = vmatpush1.msra.mxu0 0.0
      %2711 = vmatprep.subr.mxu0 0.0
      %2712 = vmatpush1.msra.mxu0 0.0
      %2713 = vmatprep.subr.mxu0 0.0
      %2714 = vmatpush1.msra.mxu0 0.0
      %2715 = vmatprep.subr.mxu0 0.0
      %2716 = vmatpush1.msra.mxu0 0.0
      %2717 = vmatprep.subr.mxu0 0.0
      %2718 = vmatpush1.msra.mxu0 0.0
      %2719 = vmatprep.subr.mxu0 0.0
      %2720 = vmatpush1.msra.mxu0 0.0
      %2721 = vmatprep.subr.mxu0 0.0
      %2722 = vmatpush1.msra.mxu0 0.0
      %2723 = vmatprep.subr.mxu0 0.0
      %2724 = vmatpush1.msra.mxu0 0.0
      %2725 = vmatprep.subr.mxu0 0.0
      %2726 = vmatpush1.msra.mxu0 0.0
      %2727 = vmatprep.subr.mxu0 0.0
      %2728 = vmatpush1.msra.mxu0 0.0
      %2729 = vmatprep.subr.mxu0 0.0
      %2730 = vmatpush1.msra.mxu0 0.0
      %2731 = vmatprep.subr.mxu0 0.0
      %2732 = vmatpush1.msra.mxu0 0.0
      %2733 = vmatprep.subr.mxu0 0.0
      %2734 = vmatpush1.msra.mxu0 0.0
      %2735 = vmatprep.mubr.f32.mxu0 0.0
      %2736 = vmatmul.mubr.f32.gmra.mrb[0].mxu0 %v2666
      %v2737 = vpop.f32.mrb[0].mxu0
      %v2738 = vadd.f32 %v2664, %v2737
      %v2739 = vpop.f32.mrb[0].mxu0
      %2740 = vmatprep.mubr.f32.mxu0 0.0
      %2741 = vmatmul.mubr.f32.gmra.mrb[0].mxu0 %v2669
      %v2742 = vpop.f32.mrb[0].mxu0
      %v2743 = vadd.f32 %v2664, %v2742
      %v2744 = vpop.f32.mrb[0].mxu0
      %2745 = vdwg.mxu0
      %v2746 = vmul.f32 %v2738, 0.5
      %v2747 = vmul.f32 %v2743, 0.5
      %v2748 = vmul.f32 %v2738, 0.70710677
      %v2749 = vmul.f32 %v2743, 0.70710677
      %v2750 = vand.u32 2147483647, %v2748
      %v2751 = vand.u32 2147483647, %v2749
      %v2752 = vmul.f32 %v2750, 0.3275911
      %v2753 = vmul.f32 %v2751, 0.3275911
      %v2754 = vadd.f32 %v2752, 1.0
      %v2755 = vadd.f32 %v2753, 1.0
      %v2756 = vrcp.pop %v2754
      %v2757 = vmul.f32 1.0, %v2756
      %v2758 = vrcp.pop %v2755
      %v2759 = vmul.f32 1.0, %v2758
      %v2760 = vmul.f32 %v2757, 1.0614054
      %v2761 = vmul.f32 %v2759, 1.0614054
      %v2762 = vadd.f32 %v2760, -1.4531521
      %v2763 = vadd.f32 %v2761, -1.4531521
      %v2764 = vmul.f32 %v2762, %v2757
      %v2765 = vmul.f32 %v2763, %v2759
      %v2766 = vadd.f32 %v2764, 1.4214138
      %v2767 = vadd.f32 %v2765, 1.4214138
      %v2768 = vmul.f32 %v2766, %v2757
      %v2769 = vmul.f32 %v2767, %v2759
      %v2770 = vadd.f32 %v2768, -0.28449672
      %v2771 = vadd.f32 %v2769, -0.28449672
      %v2772 = vmul.f32 %v2770, %v2757
      %v2773 = vmul.f32 %v2771, %v2759
      %v2774 = vadd.f32 %v2772, 0.2548296
      %v2775 = vadd.f32 %v2773, 0.2548296
      %v2776 = vmul.f32 %v2774, %v2757
      %v2777 = vmul.f32 %v2775, %v2759
      %v2778 = vmul.f32 %v2750, %v2750
      %v2779 = vmul.f32 %v2751, %v2751
      %v2780 = vsub.f32 0.0, %v2778
      %v2781 = vsub.f32 0.0, %v2779
      %v2782 = vmul.f32 %v2780, 1.442695
      %v2783 = vpow.pop %v2782
      %v2784 = vmul.f32 %v2781, 1.442695
      %v2785 = vpow.pop %v2784
      %v2786 = vmul.f32 %v2776, %v2783
      %v2787 = vmul.f32 %v2777, %v2785
      %v2788 = vsub.f32 1.0, %v2786
      %v2789 = vsub.f32 1.0, %v2787
      %vm2790 = vcmp.ge.f32.partialorder %v2748, 0.0
      %vm2791 = vcmp.ge.f32.partialorder %v2749, 0.0
      %v2792 = vsub.f32 0.0, %v2788
      %v2793 = vsub.f32 0.0, %v2789
      %v2794 = vsel %vm2790, %v2788, %v2792
      %v2795 = vsel %vm2791, %v2789, %v2793
      %v2796 = vadd.f32 %v2794, 1.0
      %v2797 = vadd.f32 %v2795, 1.0
      %v2798 = vmul.f32 %v2746, %v2796
      %v2799 = vmul.f32 %v2747, %v2797
      %vm2800 = vcmask 523264
      %v2801 = vsel %vm2800, %v2798, 0.0
      %2802 = vadd.xlane.f32.xlu0 %v2801
      %v2803 = vpop.xlane.xlu0 %2802
      %v2804 = vsel %vm2800, %v2799, 0.0
      %2805 = vadd.xlane.f32.xlu0 %v2804
      %v2806 = vpop.xlane.xlu0 %2805
      %v2807 = vrcp.pop 64.0
      %v2808 = vmul.f32 %v2803, %v2807
      %v2809 = vmul.f32 %v2806, %v2807
      %v2810 = vsub.f32 %v2798, %v2808
      %v2811 = vsub.f32 %v2799, %v2809
      %v2812 = vmul.f32 %v2810, %v2810
      %v2813 = vmul.f32 %v2811, %v2811
      %v2814 = vsel %vm2800, %v2812, 0.0
      %2815 = vadd.xlane.f32.xlu0 %v2814
      %v2816 = vpop.xlane.xlu0 %2815
      %v2817 = vsel %vm2800, %v2813, 0.0
      %2818 = vadd.xlane.f32.xlu0 %v2817
      %v2819 = vpop.xlane.xlu0 %2818
      %v2820 = vmul.f32 %v2816, %v2807
      %v2821 = vmul.f32 %v2819, %v2807
      %v2822 = vadd.f32 %v2820, 1e-05
      %v2823 = vadd.f32 %v2821, 1e-05
      %v2824 = vrsqrt.pop %v2822
      %v2825 = vrsqrt.pop %v2823
      %v2826 = vmul.f32 %v2810, %v2824
      %v2827 = vmul.f32 %v2811, %v2825
      %v2828 = vlaneseq
      %v2829 = vshrl.u32 %v2828, 7
      %v2830 = vsub.s32 1, %v2829
      %v2831 = vrot.slane %v947, %v2830
      %v2832 = vmul.f32 %v2826, %v2831
      %v2833 = vmul.f32 %v2827, %v2831
      %v2834 = vlaneseq
      %v2835 = vshrl.u32 %v2834, 7
      %v2836 = vsub.s32 2, %v2835
      %v2837 = vrot.slane %v947, %v2836
      %v2838 = vadd.f32 %v2832, %v2837
      %v2839 = vadd.f32 %v2833, %v2837
      %v2840 = vld [vmem:[%s633] sm:$0xff]
      %v2841 = vld [vmem:[%s633 + $0x8] sm:$0xff]
      %v2842 = vld [vmem:[%s633 + $0x10] sm:$0xff]
      %v2843 = vld [vmem:[%s633 + $0x18] sm:$0xff]
      %v2844 = vld [vmem:[%s633 + $0x20] sm:$0xff]
      %v2845 = vld [vmem:[%s633 + $0x28] sm:$0xff]
      %v2846 = vld [vmem:[%s633 + $0x30] sm:$0xff]
      %v2847 = vld [vmem:[%s633 + $0x38] sm:$0xff]
      %v2848 = vlaneseq
      %v2849 = vshrl.u32 %v2848, 7
      %v2850 = vsub.s32 2, %v2849
      %v2851 = vrot.slane %v946, %v2850
      %v2853 = vsel %vm2800, %v2838, 0
      %v2856 = vsel %vm2800, %v2839, 0
      %2858 = vmatprep.subr.mxu0 0.0
      %2859 = vmatpush1.msra.mxu0 %v2840
      %2860 = vmatprep.subr.mxu0 0.0
      %2861 = vmatpush1.msra.mxu0 %v2841
      %2862 = vmatprep.subr.mxu0 0.0
      %2863 = vmatpush1.msra.mxu0 %v2842
      %2864 = vmatprep.subr.mxu0 0.0
      %2865 = vmatpush1.msra.mxu0 %v2843
      %2866 = vmatprep.subr.mxu0 0.0
      %2867 = vmatpush1.msra.mxu0 %v2844
      %2868 = vmatprep.subr.mxu0 0.0
      %2869 = vmatpush1.msra.mxu0 %v2845
      %2870 = vmatprep.subr.mxu0 0.0
      %2871 = vmatpush1.msra.mxu0 %v2846
      %2872 = vmatprep.subr.mxu0 0.0
      %2873 = vmatpush1.msra.mxu0 %v2847
      %2874 = vmatprep.subr.mxu0 0.0
      %2875 = vmatpush1.msra.mxu0 0.0
      %2876 = vmatprep.subr.mxu0 0.0
      %2877 = vmatpush1.msra.mxu0 0.0
      %2878 = vmatprep.subr.mxu0 0.0
      %2879 = vmatpush1.msra.mxu0 0.0
      %2880 = vmatprep.subr.mxu0 0.0
      %2881 = vmatpush1.msra.mxu0 0.0
      %2882 = vmatprep.subr.mxu0 0.0
      %2883 = vmatpush1.msra.mxu0 0.0
      %2884 = vmatprep.subr.mxu0 0.0
      %2885 = vmatpush1.msra.mxu0 0.0
      %2886 = vmatprep.subr.mxu0 0.0
      %2887 = vmatpush1.msra.mxu0 0.0
      %2888 = vmatprep.subr.mxu0 0.0
      %2889 = vmatpush1.msra.mxu0 0.0
      %2890 = vmatprep.subr.mxu0 0.0
      %2891 = vmatpush1.msra.mxu0 0.0
      %2892 = vmatprep.subr.mxu0 0.0
      %2893 = vmatpush1.msra.mxu0 0.0
      %2894 = vmatprep.subr.mxu0 0.0
      %2895 = vmatpush1.msra.mxu0 0.0
      %2896 = vmatprep.subr.mxu0 0.0
      %2897 = vmatpush1.msra.mxu0 0.0
      %2898 = vmatprep.subr.mxu0 0.0
      %2899 = vmatpush1.msra.mxu0 0.0
      %2900 = vmatprep.subr.mxu0 0.0
      %2901 = vmatpush1.msra.mxu0 0.0
      %2902 = vmatprep.subr.mxu0 0.0
      %2903 = vmatpush1.msra.mxu0 0.0
      %2904 = vmatprep.subr.mxu0 0.0
      %2905 = vmatpush1.msra.mxu0 0.0
      %2906 = vmatprep.subr.mxu0 0.0
      %2907 = vmatpush1.msra.mxu0 0.0
      %2908 = vmatprep.subr.mxu0 0.0
      %2909 = vmatpush1.msra.mxu0 0.0
      %2910 = vmatprep.subr.mxu0 0.0
      %2911 = vmatpush1.msra.mxu0 0.0
      %2912 = vmatprep.subr.mxu0 0.0
      %2913 = vmatpush1.msra.mxu0 0.0
      %2914 = vmatprep.subr.mxu0 0.0
      %2915 = vmatpush1.msra.mxu0 0.0
      %2916 = vmatprep.subr.mxu0 0.0
      %2917 = vmatpush1.msra.mxu0 0.0
      %2918 = vmatprep.subr.mxu0 0.0
      %2919 = vmatpush1.msra.mxu0 0.0
      %2920 = vmatprep.subr.mxu0 0.0
      %2921 = vmatpush1.msra.mxu0 0.0
      %2922 = vmatprep.mubr.f32.mxu0 0.0
      %2923 = vmatmul.mubr.f32.gmra.mrb[0].mxu0 %v2853
      %v2924 = vpop.f32.mrb[0].mxu0
      %v2925 = vadd.f32 %v2851, %v2924
      %v2926 = vpop.f32.mrb[0].mxu0
      %2927 = vmatprep.mubr.f32.mxu0 0.0
      %2928 = vmatmul.mubr.f32.gmra.mrb[0].mxu0 %v2856
      %v2929 = vpop.f32.mrb[0].mxu0
      %v2930 = vadd.f32 %v2851, %v2929
      %v2931 = vpop.f32.mrb[0].mxu0
      %2932 = vdwg.mxu0
      %v2933 = vadd.f32 %v2617, %v2925
      %v2934 = vadd.f32 %v2618, %v2930
      %s2935 = scalar_lea.vmem %s618, 16
      %v2936 = vld [vmem:[%s2935] sm:$0xff]
      %v2937 = vld [vmem:[%s2935 + $0x8] sm:$0x7]
      %s2938 = scalar_lea.vmem %s623, 4
      %v2939 = vld [vmem:[%s2938] sm:$0x7]
      %v2940 = vsel %vm948, %v2933, 0.0
      %2941 = vadd.xlane.f32.xlu0 %v2940
      %v2942 = vpop.xlane.xlu0 %2941
      %v2943 = vsel %vm948, %v2934, 0.0
      %2944 = vadd.xlane.f32.xlu0 %v2943
      %v2945 = vpop.xlane.xlu0 %2944
      %v2946 = vmul.f32 %v2942, %v955
      %v2947 = vmul.f32 %v2945, %v955
      %v2948 = vsub.f32 %v2933, %v2946
      %v2949 = vsub.f32 %v2934, %v2947
      %v2950 = vmul.f32 %v2948, %v2948
      %v2951 = vmul.f32 %v2949, %v2949
      %v2952 = vsel %vm948, %v2950, 0.0
      %2953 = vadd.xlane.f32.xlu0 %v2952
      %v2954 = vpop.xlane.xlu0 %2953
      %v2955 = vsel %vm948, %v2951, 0.0
      %2956 = vadd.xlane.f32.xlu0 %v2955
      %v2957 = vpop.xlane.xlu0 %2956
      %v2958 = vmul.f32 %v2954, %v955
      %v2959 = vmul.f32 %v2957, %v955
      %v2960 = vadd.f32 %v2958, 1e-05
      %v2961 = vadd.f32 %v2959, 1e-05
      %v2962 = vrsqrt.pop %v2960
      %v2963 = vrsqrt.pop %v2961
      %v2964 = vmul.f32 %v2948, %v2962
      %v2965 = vmul.f32 %v2949, %v2963
      %v2966 = vlaneseq
      %v2967 = vshrl.u32 %v2966, 7
      %v2968 = vsub.s32 0, %v2967
      %v2969 = vrot.slane %v2936, %v2968
      %v2970 = vmul.f32 %v2964, %v2969
      %v2971 = vmul.f32 %v2965, %v2969
      %v2972 = vlaneseq
      %v2973 = vshrl.u32 %v2972, 7
      %v2974 = vsub.s32 1, %v2973
      %v2975 = vrot.slane %v2936, %v2974
      %v2976 = vadd.f32 %v2970, %v2975
      %v2977 = vadd.f32 %v2971, %v2975
      %s2978 = scalar_lea.vmem %s608, 32
      %v2979 = vld [vmem:[%s2978] sm:$0xff]
      %v2980 = vld [vmem:[%s2978 + $0x8] sm:$0xff]
      %v2981 = vld [vmem:[%s2978 + $0x10] sm:$0xff]
      %v2982 = vld [vmem:[%s2978 + $0x18] sm:$0xff]
      %v2984 = vsel %vm948, %v2976, 0
      %v2987 = vsel %vm948, %v2977, 0
      %2989 = vmatprep.subr.mxu0 0.0
      %2990 = vmatpush1.msra.mxu0 %v2979
      %2991 = vmatprep.subr.mxu0 0.0
      %2992 = vmatpush1.msra.mxu0 %v2980
      %2993 = vmatprep.subr.mxu0 0.0
      %2994 = vmatpush1.msra.mxu0 %v2981
      %2995 = vmatprep.subr.mxu0 0.0
      %2996 = vmatpush1.msra.mxu0 %v2982
      %2997 = vmatprep.subr.mxu0 0.0
      %2998 = vmatpush1.msra.mxu0 0.0
      %2999 = vmatprep.subr.mxu0 0.0
      %3000 = vmatpush1.msra.mxu0 0.0
      %3001 = vmatprep.subr.mxu0 0.0
      %3002 = vmatpush1.msra.mxu0 0.0
      %3003 = vmatprep.subr.mxu0 0.0
      %3004 = vmatpush1.msra.mxu0 0.0
      %3005 = vmatprep.subr.mxu0 0.0
      %3006 = vmatpush1.msra.mxu0 0.0
      %3007 = vmatprep.subr.mxu0 0.0
      %3008 = vmatpush1.msra.mxu0 0.0
      %3009 = vmatprep.subr.mxu0 0.0
      %3010 = vmatpush1.msra.mxu0 0.0
      %3011 = vmatprep.subr.mxu0 0.0
      %3012 = vmatpush1.msra.mxu0 0.0
      %3013 = vmatprep.subr.mxu0 0.0
      %3014 = vmatpush1.msra.mxu0 0.0
      %3015 = vmatprep.subr.mxu0 0.0
      %3016 = vmatpush1.msra.mxu0 0.0
      %3017 = vmatprep.subr.mxu0 0.0
      %3018 = vmatpush1.msra.mxu0 0.0
      %3019 = vmatprep.subr.mxu0 0.0
      %3020 = vmatpush1.msra.mxu0 0.0
      %3021 = vmatprep.subr.mxu0 0.0
      %3022 = vmatpush1.msra.mxu0 0.0
      %3023 = vmatprep.subr.mxu0 0.0
      %3024 = vmatpush1.msra.mxu0 0.0
      %3025 = vmatprep.subr.mxu0 0.0
      %3026 = vmatpush1.msra.mxu0 0.0
      %3027 = vmatprep.subr.mxu0 0.0
      %3028 = vmatpush1.msra.mxu0 0.0
      %3029 = vmatprep.subr.mxu0 0.0
      %3030 = vmatpush1.msra.mxu0 0.0
      %3031 = vmatprep.subr.mxu0 0.0
      %3032 = vmatpush1.msra.mxu0 0.0
      %3033 = vmatprep.subr.mxu0 0.0
      %3034 = vmatpush1.msra.mxu0 0.0
      %3035 = vmatprep.subr.mxu0 0.0
      %3036 = vmatpush1.msra.mxu0 0.0
      %3037 = vmatprep.subr.mxu0 0.0
      %3038 = vmatpush1.msra.mxu0 0.0
      %3039 = vmatprep.subr.mxu0 0.0
      %3040 = vmatpush1.msra.mxu0 0.0
      %3041 = vmatprep.subr.mxu0 0.0
      %3042 = vmatpush1.msra.mxu0 0.0
      %3043 = vmatprep.subr.mxu0 0.0
      %3044 = vmatpush1.msra.mxu0 0.0
      %3045 = vmatprep.subr.mxu0 0.0
      %3046 = vmatpush1.msra.mxu0 0.0
      %3047 = vmatprep.subr.mxu0 0.0
      %3048 = vmatpush1.msra.mxu0 0.0
      %3049 = vmatprep.subr.mxu0 0.0
      %3050 = vmatpush1.msra.mxu0 0.0
      %3051 = vmatprep.subr.mxu0 0.0
      %3052 = vmatpush1.msra.mxu0 0.0
      %3053 = vmatprep.mubr.f32.mxu0 0.0
      %3054 = vmatmul.mubr.f32.gmra.mrb[0].mxu0 %v2984
      %v3055 = vpop.f32.mrb[0].mxu0
      %v3056 = vadd.f32 0.0, %v3055
      %v3057 = vpop.f32.mrb[0].mxu0
      %3058 = vmatprep.mubr.f32.mxu0 0.0
      %3059 = vmatmul.mubr.f32.gmra.mrb[0].mxu0 %v2987
      %v3060 = vpop.f32.mrb[0].mxu0
      %v3061 = vadd.f32 0.0, %v3060
      %v3062 = vpop.f32.mrb[0].mxu0
      %3063 = vdwg.mxu0
      %v3064 = vlaneseq
      %v3065 = vshrl.u32 %v3064, 7
      %v3066 = vsub.s32 2, %v3065
      %v3067 = vrot.slane %v2936, %v3066
      %v3068 = vadd.f32 %v3056, %v3067
      %v3069 = vadd.f32 %v3061, %v3067
      %v3070 = vmul.f32 %v3068, 0.35355338
      %v3071 = vmul.f32 %v3069, 0.35355338
      %v3072 = vlaneseq
      %v3073 = vshrl.u32 %v3072, 7
      %v3074 = vsub.s32 3, %v3073
      %v3075 = vrot.slane %v2936, %v3074
      %3077 = vrot.lane.b32.xlu0 %v3075, 32
      %v3078 = vpop.permute.xlu0 %3077
      %v3080 = vadd.f32 %v3056, %v3078
      %v3081 = vadd.f32 %v3061, %v3078
      %v3082 = vlaneseq
      %v3083 = vshrl.u32 %v3082, 7
      %v3084 = vsub.s32 4, %v3083
      %v3085 = vrot.slane %v2936, %v3084
      %3087 = vrot.lane.b32.xlu0 %v3085, 64
      %v3088 = vpop.permute.xlu0 %3087
      %v3090 = vadd.f32 %v3056, %v3088
      %v3091 = vadd.f32 %v3061, %v3088
      %3094 = vrot.lane.b32.xlu0 %v3070, 120
      %v3095 = vpop.permute.xlu0 %3094
      %3096 = vrot.lane.b32.xlu0 %v3071, 120
      %v3097 = vpop.permute.xlu0 %3096
      %3098 = vrot.lane.b32.xlu0 %v3070, 112
      %v3099 = vpop.permute.xlu0 %3098
      %3100 = vrot.lane.b32.xlu0 %v3071, 112
      %v3101 = vpop.permute.xlu0 %3100
      %3102 = vrot.lane.b32.xlu0 %v3070, 104
      %v3103 = vpop.permute.xlu0 %3102
      %3104 = vrot.lane.b32.xlu0 %v3071, 104
      %v3105 = vpop.permute.xlu0 %3104
      %3108 = vrot.lane.b32.xlu0 %v3080, 120
      %v3109 = vpop.permute.xlu0 %3108
      %3110 = vrot.lane.b32.xlu0 %v3081, 120
      %v3111 = vpop.permute.xlu0 %3110
      %3112 = vrot.lane.b32.xlu0 %v3080, 112
      %v3113 = vpop.permute.xlu0 %3112
      %3114 = vrot.lane.b32.xlu0 %v3081, 112
      %v3115 = vpop.permute.xlu0 %3114
      %3116 = vrot.lane.b32.xlu0 %v3080, 104
      %v3117 = vpop.permute.xlu0 %3116
      %3118 = vrot.lane.b32.xlu0 %v3081, 104
      %v3119 = vpop.permute.xlu0 %3118
      %3122 = vrot.lane.b32.xlu0 %v3090, 120
      %v3123 = vpop.permute.xlu0 %3122
      %3124 = vrot.lane.b32.xlu0 %v3091, 120
      %v3125 = vpop.permute.xlu0 %3124
      %3126 = vrot.lane.b32.xlu0 %v3090, 112
      %v3127 = vpop.permute.xlu0 %3126
      %3128 = vrot.lane.b32.xlu0 %v3091, 112
      %v3129 = vpop.permute.xlu0 %3128
      %3130 = vrot.lane.b32.xlu0 %v3090, 104
      %v3131 = vpop.permute.xlu0 %3130
      %3132 = vrot.lane.b32.xlu0 %v3091, 104
      %v3133 = vpop.permute.xlu0 %3132
      %3134 = vrot.lane.b32.xlu0 %v3080, 96
      %v3135 = vpop.permute.xlu0 %3134
      %v3136 = vsel %vm1155, %v3070, 0
      %v3138 = vsel %vm1155, %v3135, 0
      %3140 = vmatprep.subr.mxu0 0.0
      %3141 = vmatpush1.xpose.msra.mxu0 %v3138
      %3142 = vmatprep.subr.mxu0 0.0
      %3143 = vmatpush1.xpose.msra.mxu0 0.0
      %3144 = vmatprep.subr.mxu0 0.0
      %3145 = vmatpush1.xpose.msra.mxu0 0.0
      %3146 = vmatprep.subr.mxu0 0.0
      %3147 = vmatpush1.xpose.msra.mxu0 0.0
      %3148 = vmatprep.subr.mxu0 0.0
      %3149 = vmatpush1.xpose.msra.mxu0 0.0
      %3150 = vmatprep.subr.mxu0 0.0
      %3151 = vmatpush1.xpose.msra.mxu0 0.0
      %3152 = vmatprep.subr.mxu0 0.0
      %3153 = vmatpush1.xpose.msra.mxu0 0.0
      %3154 = vmatprep.subr.mxu0 0.0
      %3155 = vmatpush1.xpose.msra.mxu0 0.0
      %3156 = vmatprep.subr.mxu0 0.0
      %3157 = vmatpush1.xpose.msra.mxu0 0.0
      %3158 = vmatprep.subr.mxu0 0.0
      %3159 = vmatpush1.xpose.msra.mxu0 0.0
      %3160 = vmatprep.subr.mxu0 0.0
      %3161 = vmatpush1.xpose.msra.mxu0 0.0
      %3162 = vmatprep.subr.mxu0 0.0
      %3163 = vmatpush1.xpose.msra.mxu0 0.0
      %3164 = vmatprep.subr.mxu0 0.0
      %3165 = vmatpush1.xpose.msra.mxu0 0.0
      %3166 = vmatprep.subr.mxu0 0.0
      %3167 = vmatpush1.xpose.msra.mxu0 0.0
      %3168 = vmatprep.subr.mxu0 0.0
      %3169 = vmatpush1.xpose.msra.mxu0 0.0
      %3170 = vmatprep.subr.mxu0 0.0
      %3171 = vmatpush1.xpose.msra.mxu0 0.0
      %3172 = vmatprep.subr.mxu0 0.0
      %3173 = vmatpush1.xpose.msra.mxu0 0.0
      %3174 = vmatprep.subr.mxu0 0.0
      %3175 = vmatpush1.xpose.msra.mxu0 0.0
      %3176 = vmatprep.subr.mxu0 0.0
      %3177 = vmatpush1.xpose.msra.mxu0 0.0
      %3178 = vmatprep.subr.mxu0 0.0
      %3179 = vmatpush1.xpose.msra.mxu0 0.0
      %3180 = vmatprep.subr.mxu0 0.0
      %3181 = vmatpush1.xpose.msra.mxu0 0.0
      %3182 = vmatprep.subr.mxu0 0.0
      %3183 = vmatpush1.xpose.msra.mxu0 0.0
      %3184 = vmatprep.subr.mxu0 0.0
      %3185 = vmatpush1.xpose.msra.mxu0 0.0
      %3186 = vmatprep.subr.mxu0 0.0
      %3187 = vmatpush1.xpose.msra.mxu0 0.0
      %3188 = vmatprep.subr.mxu0 0.0
      %3189 = vmatpush1.xpose.msra.mxu0 0.0
      %3190 = vmatprep.subr.mxu0 0.0
      %3191 = vmatpush1.xpose.msra.mxu0 0.0
      %3192 = vmatprep.subr.mxu0 0.0
      %3193 = vmatpush1.xpose.msra.mxu0 0.0
      %3194 = vmatprep.subr.mxu0 0.0
      %3195 = vmatpush1.xpose.msra.mxu0 0.0
      %3196 = vmatprep.subr.mxu0 0.0
      %3197 = vmatpush1.xpose.msra.mxu0 0.0
      %3198 = vmatprep.subr.mxu0 0.0
      %3199 = vmatpush1.xpose.msra.mxu0 0.0
      %3200 = vmatprep.subr.mxu0 0.0
      %3201 = vmatpush1.xpose.msra.mxu0 0.0
      %3202 = vmatprep.subr.mxu0 0.0
      %3203 = vmatpush1.xpose.msra.mxu0 0.0
      %3204 = vmatprep.mubr.f32.mxu0 0.0
      %3205 = vmatmul.mubr.f32.gmra.mrb[0].mxu0 %v3136
      %v3206 = vpop.f32.mrb[0].mxu0
      %v3207 = vadd.f32 %v1146, %v3206
      %v3208 = vpop.f32.mrb[0].mxu0
      %3209 = vdwg.mxu0
      %3210 = vrot.lane.b32.xlu0 %v3081, 96
      %v3211 = vpop.permute.xlu0 %3210
      %v3212 = vsel %vm1155, %v3071, 0
      %v3214 = vsel %vm1155, %v3211, 0
      %3216 = vmatprep.subr.mxu0 0.0
      %3217 = vmatpush1.xpose.msra.mxu0 %v3214
      %3218 = vmatprep.subr.mxu0 0.0
      %3219 = vmatpush1.xpose.msra.mxu0 0.0
      %3220 = vmatprep.subr.mxu0 0.0
      %3221 = vmatpush1.xpose.msra.mxu0 0.0
      %3222 = vmatprep.subr.mxu0 0.0
      %3223 = vmatpush1.xpose.msra.mxu0 0.0
      %3224 = vmatprep.subr.mxu0 0.0
      %3225 = vmatpush1.xpose.msra.mxu0 0.0
      %3226 = vmatprep.subr.mxu0 0.0
      %3227 = vmatpush1.xpose.msra.mxu0 0.0
      %3228 = vmatprep.subr.mxu0 0.0
      %3229 = vmatpush1.xpose.msra.mxu0 0.0
      %3230 = vmatprep.subr.mxu0 0.0
      %3231 = vmatpush1.xpose.msra.mxu0 0.0
      %3232 = vmatprep.subr.mxu0 0.0
      %3233 = vmatpush1.xpose.msra.mxu0 0.0
      %3234 = vmatprep.subr.mxu0 0.0
      %3235 = vmatpush1.xpose.msra.mxu0 0.0
      %3236 = vmatprep.subr.mxu0 0.0
      %3237 = vmatpush1.xpose.msra.mxu0 0.0
      %3238 = vmatprep.subr.mxu0 0.0
      %3239 = vmatpush1.xpose.msra.mxu0 0.0
      %3240 = vmatprep.subr.mxu0 0.0
      %3241 = vmatpush1.xpose.msra.mxu0 0.0
      %3242 = vmatprep.subr.mxu0 0.0
      %3243 = vmatpush1.xpose.msra.mxu0 0.0
      %3244 = vmatprep.subr.mxu0 0.0
      %3245 = vmatpush1.xpose.msra.mxu0 0.0
      %3246 = vmatprep.subr.mxu0 0.0
      %3247 = vmatpush1.xpose.msra.mxu0 0.0
      %3248 = vmatprep.subr.mxu0 0.0
      %3249 = vmatpush1.xpose.msra.mxu0 0.0
      %3250 = vmatprep.subr.mxu0 0.0
      %3251 = vmatpush1.xpose.msra.mxu0 0.0
      %3252 = vmatprep.subr.mxu0 0.0
      %3253 = vmatpush1.xpose.msra.mxu0 0.0
      %3254 = vmatprep.subr.mxu0 0.0
      %3255 = vmatpush1.xpose.msra.mxu0 0.0
      %3256 = vmatprep.subr.mxu0 0.0
      %3257 = vmatpush1.xpose.msra.mxu0 0.0
      %3258 = vmatprep.subr.mxu0 0.0
      %3259 = vmatpush1.xpose.msra.mxu0 0.0
      %3260 = vmatprep.subr.mxu0 0.0
      %3261 = vmatpush1.xpose.msra.mxu0 0.0
      %3262 = vmatprep.subr.mxu0 0.0
      %3263 = vmatpush1.xpose.msra.mxu0 0.0
      %3264 = vmatprep.subr.mxu0 0.0
      %3265 = vmatpush1.xpose.msra.mxu0 0.0
      %3266 = vmatprep.subr.mxu0 0.0
      %3267 = vmatpush1.xpose.msra.mxu0 0.0
      %3268 = vmatprep.subr.mxu0 0.0
      %3269 = vmatpush1.xpose.msra.mxu0 0.0
      %3270 = vmatprep.subr.mxu0 0.0
      %3271 = vmatpush1.xpose.msra.mxu0 0.0
      %3272 = vmatprep.subr.mxu0 0.0
      %3273 = vmatpush1.xpose.msra.mxu0 0.0
      %3274 = vmatprep.subr.mxu0 0.0
      %3275 = vmatpush1.xpose.msra.mxu0 0.0
      %3276 = vmatprep.subr.mxu0 0.0
      %3277 = vmatpush1.xpose.msra.mxu0 0.0
      %3278 = vmatprep.subr.mxu0 0.0
      %3279 = vmatpush1.xpose.msra.mxu0 0.0
      %3280 = vmatprep.mubr.f32.mxu0 0.0
      %3281 = vmatmul.mubr.f32.gmra.mrb[0].mxu0 %v3212
      %v3282 = vpop.f32.mrb[0].mxu0
      %v3283 = vadd.f32 %v1150, %v3282
      %v3284 = vpop.f32.mrb[0].mxu0
      %3285 = vdwg.mxu0
      %3286 = vrot.lane.b32.xlu0 %v3109, 96
      %v3287 = vpop.permute.xlu0 %3286
      %v3288 = vsel %vm1155, %v3095, 0
      %v3290 = vsel %vm1155, %v3287, 0
      %3292 = vmatprep.subr.mxu0 0.0
      %3293 = vmatpush1.xpose.msra.mxu0 %v3290
      %3294 = vmatprep.subr.mxu0 0.0
      %3295 = vmatpush1.xpose.msra.mxu0 0.0
      %3296 = vmatprep.subr.mxu0 0.0
      %3297 = vmatpush1.xpose.msra.mxu0 0.0
      %3298 = vmatprep.subr.mxu0 0.0
      %3299 = vmatpush1.xpose.msra.mxu0 0.0
      %3300 = vmatprep.subr.mxu0 0.0
      %3301 = vmatpush1.xpose.msra.mxu0 0.0
      %3302 = vmatprep.subr.mxu0 0.0
      %3303 = vmatpush1.xpose.msra.mxu0 0.0
      %3304 = vmatprep.subr.mxu0 0.0
      %3305 = vmatpush1.xpose.msra.mxu0 0.0
      %3306 = vmatprep.subr.mxu0 0.0
      %3307 = vmatpush1.xpose.msra.mxu0 0.0
      %3308 = vmatprep.subr.mxu0 0.0
      %3309 = vmatpush1.xpose.msra.mxu0 0.0
      %3310 = vmatprep.subr.mxu0 0.0
      %3311 = vmatpush1.xpose.msra.mxu0 0.0
      %3312 = vmatprep.subr.mxu0 0.0
      %3313 = vmatpush1.xpose.msra.mxu0 0.0
      %3314 = vmatprep.subr.mxu0 0.0
      %3315 = vmatpush1.xpose.msra.mxu0 0.0
      %3316 = vmatprep.subr.mxu0 0.0
      %3317 = vmatpush1.xpose.msra.mxu0 0.0
      %3318 = vmatprep.subr.mxu0 0.0
      %3319 = vmatpush1.xpose.msra.mxu0 0.0
      %3320 = vmatprep.subr.mxu0 0.0
      %3321 = vmatpush1.xpose.msra.mxu0 0.0
      %3322 = vmatprep.subr.mxu0 0.0
      %3323 = vmatpush1.xpose.msra.mxu0 0.0
      %3324 = vmatprep.subr.mxu0 0.0
      %3325 = vmatpush1.xpose.msra.mxu0 0.0
      %3326 = vmatprep.subr.mxu0 0.0
      %3327 = vmatpush1.xpose.msra.mxu0 0.0
      %3328 = vmatprep.subr.mxu0 0.0
      %3329 = vmatpush1.xpose.msra.mxu0 0.0
      %3330 = vmatprep.subr.mxu0 0.0
      %3331 = vmatpush1.xpose.msra.mxu0 0.0
      %3332 = vmatprep.subr.mxu0 0.0
      %3333 = vmatpush1.xpose.msra.mxu0 0.0
      %3334 = vmatprep.subr.mxu0 0.0
      %3335 = vmatpush1.xpose.msra.mxu0 0.0
      %3336 = vmatprep.subr.mxu0 0.0
      %3337 = vmatpush1.xpose.msra.mxu0 0.0
      %3338 = vmatprep.subr.mxu0 0.0
      %3339 = vmatpush1.xpose.msra.mxu0 0.0
      %3340 = vmatprep.subr.mxu0 0.0
      %3341 = vmatpush1.xpose.msra.mxu0 0.0
      %3342 = vmatprep.subr.mxu0 0.0
      %3343 = vmatpush1.xpose.msra.mxu0 0.0
      %3344 = vmatprep.subr.mxu0 0.0
      %3345 = vmatpush1.xpose.msra.mxu0 0.0
      %3346 = vmatprep.subr.mxu0 0.0
      %3347 = vmatpush1.xpose.msra.mxu0 0.0
      %3348 = vmatprep.subr.mxu0 0.0
      %3349 = vmatpush1.xpose.msra.mxu0 0.0
      %3350 = vmatprep.subr.mxu0 0.0
      %3351 = vmatpush1.xpose.msra.mxu0 0.0
      %3352 = vmatprep.subr.mxu0 0.0
      %3353 = vmatpush1.xpose.msra.mxu0 0.0
      %3354 = vmatprep.subr.mxu0 0.0
      %3355 = vmatpush1.xpose.msra.mxu0 0.0
      %3356 = vmatprep.mubr.f32.mxu0 0.0
      %3357 = vmatmul.mubr.f32.gmra.mrb[0].mxu0 %v3288
      %v3358 = vpop.f32.mrb[0].mxu0
      %v3359 = vadd.f32 %v1146, %v3358
      %v3360 = vpop.f32.mrb[0].mxu0
      %3361 = vdwg.mxu0
      %3362 = vrot.lane.b32.xlu0 %v3111, 96
      %v3363 = vpop.permute.xlu0 %3362
      %v3364 = vsel %vm1155, %v3097, 0
      %v3366 = vsel %vm1155, %v3363, 0
      %3368 = vmatprep.subr.mxu0 0.0
      %3369 = vmatpush1.xpose.msra.mxu0 %v3366
      %3370 = vmatprep.subr.mxu0 0.0
      %3371 = vmatpush1.xpose.msra.mxu0 0.0
      %3372 = vmatprep.subr.mxu0 0.0
      %3373 = vmatpush1.xpose.msra.mxu0 0.0
      %3374 = vmatprep.subr.mxu0 0.0
      %3375 = vmatpush1.xpose.msra.mxu0 0.0
      %3376 = vmatprep.subr.mxu0 0.0
      %3377 = vmatpush1.xpose.msra.mxu0 0.0
      %3378 = vmatprep.subr.mxu0 0.0
      %3379 = vmatpush1.xpose.msra.mxu0 0.0
      %3380 = vmatprep.subr.mxu0 0.0
      %3381 = vmatpush1.xpose.msra.mxu0 0.0
      %3382 = vmatprep.subr.mxu0 0.0
      %3383 = vmatpush1.xpose.msra.mxu0 0.0
      %3384 = vmatprep.subr.mxu0 0.0
      %3385 = vmatpush1.xpose.msra.mxu0 0.0
      %3386 = vmatprep.subr.mxu0 0.0
      %3387 = vmatpush1.xpose.msra.mxu0 0.0
      %3388 = vmatprep.subr.mxu0 0.0
      %3389 = vmatpush1.xpose.msra.mxu0 0.0
      %3390 = vmatprep.subr.mxu0 0.0
      %3391 = vmatpush1.xpose.msra.mxu0 0.0
      %3392 = vmatprep.subr.mxu0 0.0
      %3393 = vmatpush1.xpose.msra.mxu0 0.0
      %3394 = vmatprep.subr.mxu0 0.0
      %3395 = vmatpush1.xpose.msra.mxu0 0.0
      %3396 = vmatprep.subr.mxu0 0.0
      %3397 = vmatpush1.xpose.msra.mxu0 0.0
      %3398 = vmatprep.subr.mxu0 0.0
      %3399 = vmatpush1.xpose.msra.mxu0 0.0
      %3400 = vmatprep.subr.mxu0 0.0
      %3401 = vmatpush1.xpose.msra.mxu0 0.0
      %3402 = vmatprep.subr.mxu0 0.0
      %3403 = vmatpush1.xpose.msra.mxu0 0.0
      %3404 = vmatprep.subr.mxu0 0.0
      %3405 = vmatpush1.xpose.msra.mxu0 0.0
      %3406 = vmatprep.subr.mxu0 0.0
      %3407 = vmatpush1.xpose.msra.mxu0 0.0
      %3408 = vmatprep.subr.mxu0 0.0
      %3409 = vmatpush1.xpose.msra.mxu0 0.0
      %3410 = vmatprep.subr.mxu0 0.0
      %3411 = vmatpush1.xpose.msra.mxu0 0.0
      %3412 = vmatprep.subr.mxu0 0.0
      %3413 = vmatpush1.xpose.msra.mxu0 0.0
      %3414 = vmatprep.subr.mxu0 0.0
      %3415 = vmatpush1.xpose.msra.mxu0 0.0
      %3416 = vmatprep.subr.mxu0 0.0
      %3417 = vmatpush1.xpose.msra.mxu0 0.0
      %3418 = vmatprep.subr.mxu0 0.0
      %3419 = vmatpush1.xpose.msra.mxu0 0.0
      %3420 = vmatprep.subr.mxu0 0.0
      %3421 = vmatpush1.xpose.msra.mxu0 0.0
      %3422 = vmatprep.subr.mxu0 0.0
      %3423 = vmatpush1.xpose.msra.mxu0 0.0
      %3424 = vmatprep.subr.mxu0 0.0
      %3425 = vmatpush1.xpose.msra.mxu0 0.0
      %3426 = vmatprep.subr.mxu0 0.0
      %3427 = vmatpush1.xpose.msra.mxu0 0.0
      %3428 = vmatprep.subr.mxu0 0.0
      %3429 = vmatpush1.xpose.msra.mxu0 0.0
      %3430 = vmatprep.subr.mxu0 0.0
      %3431 = vmatpush1.xpose.msra.mxu0 0.0
      %3432 = vmatprep.mubr.f32.mxu0 0.0
      %3433 = vmatmul.mubr.f32.gmra.mrb[0].mxu0 %v3364
      %v3434 = vpop.f32.mrb[0].mxu0
      %v3435 = vadd.f32 %v1150, %v3434
      %v3436 = vpop.f32.mrb[0].mxu0
      %3437 = vdwg.mxu0
      %3438 = vrot.lane.b32.xlu0 %v3113, 96
      %v3439 = vpop.permute.xlu0 %3438
      %v3440 = vsel %vm1155, %v3099, 0
      %v3442 = vsel %vm1155, %v3439, 0
      %3444 = vmatprep.subr.mxu0 0.0
      %3445 = vmatpush1.xpose.msra.mxu0 %v3442
      %3446 = vmatprep.subr.mxu0 0.0
      %3447 = vmatpush1.xpose.msra.mxu0 0.0
      %3448 = vmatprep.subr.mxu0 0.0
      %3449 = vmatpush1.xpose.msra.mxu0 0.0
      %3450 = vmatprep.subr.mxu0 0.0
      %3451 = vmatpush1.xpose.msra.mxu0 0.0
      %3452 = vmatprep.subr.mxu0 0.0
      %3453 = vmatpush1.xpose.msra.mxu0 0.0
      %3454 = vmatprep.subr.mxu0 0.0
      %3455 = vmatpush1.xpose.msra.mxu0 0.0
      %3456 = vmatprep.subr.mxu0 0.0
      %3457 = vmatpush1.xpose.msra.mxu0 0.0
      %3458 = vmatprep.subr.mxu0 0.0
      %3459 = vmatpush1.xpose.msra.mxu0 0.0
      %3460 = vmatprep.subr.mxu0 0.0
      %3461 = vmatpush1.xpose.msra.mxu0 0.0
      %3462 = vmatprep.subr.mxu0 0.0
      %3463 = vmatpush1.xpose.msra.mxu0 0.0
      %3464 = vmatprep.subr.mxu0 0.0
      %3465 = vmatpush1.xpose.msra.mxu0 0.0
      %3466 = vmatprep.subr.mxu0 0.0
      %3467 = vmatpush1.xpose.msra.mxu0 0.0
      %3468 = vmatprep.subr.mxu0 0.0
      %3469 = vmatpush1.xpose.msra.mxu0 0.0
      %3470 = vmatprep.subr.mxu0 0.0
      %3471 = vmatpush1.xpose.msra.mxu0 0.0
      %3472 = vmatprep.subr.mxu0 0.0
      %3473 = vmatpush1.xpose.msra.mxu0 0.0
      %3474 = vmatprep.subr.mxu0 0.0
      %3475 = vmatpush1.xpose.msra.mxu0 0.0
      %3476 = vmatprep.subr.mxu0 0.0
      %3477 = vmatpush1.xpose.msra.mxu0 0.0
      %3478 = vmatprep.subr.mxu0 0.0
      %3479 = vmatpush1.xpose.msra.mxu0 0.0
      %3480 = vmatprep.subr.mxu0 0.0
      %3481 = vmatpush1.xpose.msra.mxu0 0.0
      %3482 = vmatprep.subr.mxu0 0.0
      %3483 = vmatpush1.xpose.msra.mxu0 0.0
      %3484 = vmatprep.subr.mxu0 0.0
      %3485 = vmatpush1.xpose.msra.mxu0 0.0
      %3486 = vmatprep.subr.mxu0 0.0
      %3487 = vmatpush1.xpose.msra.mxu0 0.0
      %3488 = vmatprep.subr.mxu0 0.0
      %3489 = vmatpush1.xpose.msra.mxu0 0.0
      %3490 = vmatprep.subr.mxu0 0.0
      %3491 = vmatpush1.xpose.msra.mxu0 0.0
      %3492 = vmatprep.subr.mxu0 0.0
      %3493 = vmatpush1.xpose.msra.mxu0 0.0
      %3494 = vmatprep.subr.mxu0 0.0
      %3495 = vmatpush1.xpose.msra.mxu0 0.0
      %3496 = vmatprep.subr.mxu0 0.0
      %3497 = vmatpush1.xpose.msra.mxu0 0.0
      %3498 = vmatprep.subr.mxu0 0.0
      %3499 = vmatpush1.xpose.msra.mxu0 0.0
      %3500 = vmatprep.subr.mxu0 0.0
      %3501 = vmatpush1.xpose.msra.mxu0 0.0
      %3502 = vmatprep.subr.mxu0 0.0
      %3503 = vmatpush1.xpose.msra.mxu0 0.0
      %3504 = vmatprep.subr.mxu0 0.0
      %3505 = vmatpush1.xpose.msra.mxu0 0.0
      %3506 = vmatprep.subr.mxu0 0.0
      %3507 = vmatpush1.xpose.msra.mxu0 0.0
      %3508 = vmatprep.mubr.f32.mxu0 0.0
      %3509 = vmatmul.mubr.f32.gmra.mrb[0].mxu0 %v3440
      %v3510 = vpop.f32.mrb[0].mxu0
      %v3511 = vadd.f32 %v1146, %v3510
      %v3512 = vpop.f32.mrb[0].mxu0
      %3513 = vdwg.mxu0
      %3514 = vrot.lane.b32.xlu0 %v3115, 96
      %v3515 = vpop.permute.xlu0 %3514
      %v3516 = vsel %vm1155, %v3101, 0
      %v3518 = vsel %vm1155, %v3515, 0
      %3520 = vmatprep.subr.mxu0 0.0
      %3521 = vmatpush1.xpose.msra.mxu0 %v3518
      %3522 = vmatprep.subr.mxu0 0.0
      %3523 = vmatpush1.xpose.msra.mxu0 0.0
      %3524 = vmatprep.subr.mxu0 0.0
      %3525 = vmatpush1.xpose.msra.mxu0 0.0
      %3526 = vmatprep.subr.mxu0 0.0
      %3527 = vmatpush1.xpose.msra.mxu0 0.0
      %3528 = vmatprep.subr.mxu0 0.0
      %3529 = vmatpush1.xpose.msra.mxu0 0.0
      %3530 = vmatprep.subr.mxu0 0.0
      %3531 = vmatpush1.xpose.msra.mxu0 0.0
      %3532 = vmatprep.subr.mxu0 0.0
      %3533 = vmatpush1.xpose.msra.mxu0 0.0
      %3534 = vmatprep.subr.mxu0 0.0
      %3535 = vmatpush1.xpose.msra.mxu0 0.0
      %3536 = vmatprep.subr.mxu0 0.0
      %3537 = vmatpush1.xpose.msra.mxu0 0.0
      %3538 = vmatprep.subr.mxu0 0.0
      %3539 = vmatpush1.xpose.msra.mxu0 0.0
      %3540 = vmatprep.subr.mxu0 0.0
      %3541 = vmatpush1.xpose.msra.mxu0 0.0
      %3542 = vmatprep.subr.mxu0 0.0
      %3543 = vmatpush1.xpose.msra.mxu0 0.0
      %3544 = vmatprep.subr.mxu0 0.0
      %3545 = vmatpush1.xpose.msra.mxu0 0.0
      %3546 = vmatprep.subr.mxu0 0.0
      %3547 = vmatpush1.xpose.msra.mxu0 0.0
      %3548 = vmatprep.subr.mxu0 0.0
      %3549 = vmatpush1.xpose.msra.mxu0 0.0
      %3550 = vmatprep.subr.mxu0 0.0
      %3551 = vmatpush1.xpose.msra.mxu0 0.0
      %3552 = vmatprep.subr.mxu0 0.0
      %3553 = vmatpush1.xpose.msra.mxu0 0.0
      %3554 = vmatprep.subr.mxu0 0.0
      %3555 = vmatpush1.xpose.msra.mxu0 0.0
      %3556 = vmatprep.subr.mxu0 0.0
      %3557 = vmatpush1.xpose.msra.mxu0 0.0
      %3558 = vmatprep.subr.mxu0 0.0
      %3559 = vmatpush1.xpose.msra.mxu0 0.0
      %3560 = vmatprep.subr.mxu0 0.0
      %3561 = vmatpush1.xpose.msra.mxu0 0.0
      %3562 = vmatprep.subr.mxu0 0.0
      %3563 = vmatpush1.xpose.msra.mxu0 0.0
      %3564 = vmatprep.subr.mxu0 0.0
      %3565 = vmatpush1.xpose.msra.mxu0 0.0
      %3566 = vmatprep.subr.mxu0 0.0
      %3567 = vmatpush1.xpose.msra.mxu0 0.0
      %3568 = vmatprep.subr.mxu0 0.0
      %3569 = vmatpush1.xpose.msra.mxu0 0.0
      %3570 = vmatprep.subr.mxu0 0.0
      %3571 = vmatpush1.xpose.msra.mxu0 0.0
      %3572 = vmatprep.subr.mxu0 0.0
      %3573 = vmatpush1.xpose.msra.mxu0 0.0
      %3574 = vmatprep.subr.mxu0 0.0
      %3575 = vmatpush1.xpose.msra.mxu0 0.0
      %3576 = vmatprep.subr.mxu0 0.0
      %3577 = vmatpush1.xpose.msra.mxu0 0.0
      %3578 = vmatprep.subr.mxu0 0.0
      %3579 = vmatpush1.xpose.msra.mxu0 0.0
      %3580 = vmatprep.subr.mxu0 0.0
      %3581 = vmatpush1.xpose.msra.mxu0 0.0
      %3582 = vmatprep.subr.mxu0 0.0
      %3583 = vmatpush1.xpose.msra.mxu0 0.0
      %3584 = vmatprep.mubr.f32.mxu0 0.0
      %3585 = vmatmul.mubr.f32.gmra.mrb[0].mxu0 %v3516
      %v3586 = vpop.f32.mrb[0].mxu0
      %v3587 = vadd.f32 %v1150, %v3586
      %v3588 = vpop.f32.mrb[0].mxu0
      %3589 = vdwg.mxu0
      %3590 = vrot.lane.b32.xlu0 %v3117, 96
      %v3591 = vpop.permute.xlu0 %3590
      %v3592 = vsel %vm1155, %v3103, 0
      %v3594 = vsel %vm1155, %v3591, 0
      %3596 = vmatprep.subr.mxu0 0.0
      %3597 = vmatpush1.xpose.msra.mxu0 %v3594
      %3598 = vmatprep.subr.mxu0 0.0
      %3599 = vmatpush1.xpose.msra.mxu0 0.0
      %3600 = vmatprep.subr.mxu0 0.0
      %3601 = vmatpush1.xpose.msra.mxu0 0.0
      %3602 = vmatprep.subr.mxu0 0.0
      %3603 = vmatpush1.xpose.msra.mxu0 0.0
      %3604 = vmatprep.subr.mxu0 0.0
      %3605 = vmatpush1.xpose.msra.mxu0 0.0
      %3606 = vmatprep.subr.mxu0 0.0
      %3607 = vmatpush1.xpose.msra.mxu0 0.0
      %3608 = vmatprep.subr.mxu0 0.0
      %3609 = vmatpush1.xpose.msra.mxu0 0.0
      %3610 = vmatprep.subr.mxu0 0.0
      %3611 = vmatpush1.xpose.msra.mxu0 0.0
      %3612 = vmatprep.subr.mxu0 0.0
      %3613 = vmatpush1.xpose.msra.mxu0 0.0
      %3614 = vmatprep.subr.mxu0 0.0
      %3615 = vmatpush1.xpose.msra.mxu0 0.0
      %3616 = vmatprep.subr.mxu0 0.0
      %3617 = vmatpush1.xpose.msra.mxu0 0.0
      %3618 = vmatprep.subr.mxu0 0.0
      %3619 = vmatpush1.xpose.msra.mxu0 0.0
      %3620 = vmatprep.subr.mxu0 0.0
      %3621 = vmatpush1.xpose.msra.mxu0 0.0
      %3622 = vmatprep.subr.mxu0 0.0
      %3623 = vmatpush1.xpose.msra.mxu0 0.0
      %3624 = vmatprep.subr.mxu0 0.0
      %3625 = vmatpush1.xpose.msra.mxu0 0.0
      %3626 = vmatprep.subr.mxu0 0.0
      %3627 = vmatpush1.xpose.msra.mxu0 0.0
      %3628 = vmatprep.subr.mxu0 0.0
      %3629 = vmatpush1.xpose.msra.mxu0 0.0
      %3630 = vmatprep.subr.mxu0 0.0
      %3631 = vmatpush1.xpose.msra.mxu0 0.0
      %3632 = vmatprep.subr.mxu0 0.0
      %3633 = vmatpush1.xpose.msra.mxu0 0.0
      %3634 = vmatprep.subr.mxu0 0.0
      %3635 = vmatpush1.xpose.msra.mxu0 0.0
      %3636 = vmatprep.subr.mxu0 0.0
      %3637 = vmatpush1.xpose.msra.mxu0 0.0
      %3638 = vmatprep.subr.mxu0 0.0
      %3639 = vmatpush1.xpose.msra.mxu0 0.0
      %3640 = vmatprep.subr.mxu0 0.0
      %3641 = vmatpush1.xpose.msra.mxu0 0.0
      %3642 = vmatprep.subr.mxu0 0.0
      %3643 = vmatpush1.xpose.msra.mxu0 0.0
      %3644 = vmatprep.subr.mxu0 0.0
      %3645 = vmatpush1.xpose.msra.mxu0 0.0
      %3646 = vmatprep.subr.mxu0 0.0
      %3647 = vmatpush1.xpose.msra.mxu0 0.0
      %3648 = vmatprep.subr.mxu0 0.0
      %3649 = vmatpush1.xpose.msra.mxu0 0.0
      %3650 = vmatprep.subr.mxu0 0.0
      %3651 = vmatpush1.xpose.msra.mxu0 0.0
      %3652 = vmatprep.subr.mxu0 0.0
      %3653 = vmatpush1.xpose.msra.mxu0 0.0
      %3654 = vmatprep.subr.mxu0 0.0
      %3655 = vmatpush1.xpose.msra.mxu0 0.0
      %3656 = vmatprep.subr.mxu0 0.0
      %3657 = vmatpush1.xpose.msra.mxu0 0.0
      %3658 = vmatprep.subr.mxu0 0.0
      %3659 = vmatpush1.xpose.msra.mxu0 0.0
      %3660 = vmatprep.mubr.f32.mxu0 0.0
      %3661 = vmatmul.mubr.f32.gmra.mrb[0].mxu0 %v3592
      %v3662 = vpop.f32.mrb[0].mxu0
      %v3663 = vadd.f32 %v1146, %v3662
      %v3664 = vpop.f32.mrb[0].mxu0
      %3665 = vdwg.mxu0
      %3666 = vrot.lane.b32.xlu0 %v3119, 96
      %v3667 = vpop.permute.xlu0 %3666
      %v3668 = vsel %vm1155, %v3105, 0
      %v3670 = vsel %vm1155, %v3667, 0
      %3672 = vmatprep.subr.mxu0 0.0
      %3673 = vmatpush1.xpose.msra.mxu0 %v3670
      %3674 = vmatprep.subr.mxu0 0.0
      %3675 = vmatpush1.xpose.msra.mxu0 0.0
      %3676 = vmatprep.subr.mxu0 0.0
      %3677 = vmatpush1.xpose.msra.mxu0 0.0
      %3678 = vmatprep.subr.mxu0 0.0
      %3679 = vmatpush1.xpose.msra.mxu0 0.0
      %3680 = vmatprep.subr.mxu0 0.0
      %3681 = vmatpush1.xpose.msra.mxu0 0.0
      %3682 = vmatprep.subr.mxu0 0.0
      %3683 = vmatpush1.xpose.msra.mxu0 0.0
      %3684 = vmatprep.subr.mxu0 0.0
      %3685 = vmatpush1.xpose.msra.mxu0 0.0
      %3686 = vmatprep.subr.mxu0 0.0
      %3687 = vmatpush1.xpose.msra.mxu0 0.0
      %3688 = vmatprep.subr.mxu0 0.0
      %3689 = vmatpush1.xpose.msra.mxu0 0.0
      %3690 = vmatprep.subr.mxu0 0.0
      %3691 = vmatpush1.xpose.msra.mxu0 0.0
      %3692 = vmatprep.subr.mxu0 0.0
      %3693 = vmatpush1.xpose.msra.mxu0 0.0
      %3694 = vmatprep.subr.mxu0 0.0
      %3695 = vmatpush1.xpose.msra.mxu0 0.0
      %3696 = vmatprep.subr.mxu0 0.0
      %3697 = vmatpush1.xpose.msra.mxu0 0.0
      %3698 = vmatprep.subr.mxu0 0.0
      %3699 = vmatpush1.xpose.msra.mxu0 0.0
      %3700 = vmatprep.subr.mxu0 0.0
      %3701 = vmatpush1.xpose.msra.mxu0 0.0
      %3702 = vmatprep.subr.mxu0 0.0
      %3703 = vmatpush1.xpose.msra.mxu0 0.0
      %3704 = vmatprep.subr.mxu0 0.0
      %3705 = vmatpush1.xpose.msra.mxu0 0.0
      %3706 = vmatprep.subr.mxu0 0.0
      %3707 = vmatpush1.xpose.msra.mxu0 0.0
      %3708 = vmatprep.subr.mxu0 0.0
      %3709 = vmatpush1.xpose.msra.mxu0 0.0
      %3710 = vmatprep.subr.mxu0 0.0
      %3711 = vmatpush1.xpose.msra.mxu0 0.0
      %3712 = vmatprep.subr.mxu0 0.0
      %3713 = vmatpush1.xpose.msra.mxu0 0.0
      %3714 = vmatprep.subr.mxu0 0.0
      %3715 = vmatpush1.xpose.msra.mxu0 0.0
      %3716 = vmatprep.subr.mxu0 0.0
      %3717 = vmatpush1.xpose.msra.mxu0 0.0
      %3718 = vmatprep.subr.mxu0 0.0
      %3719 = vmatpush1.xpose.msra.mxu0 0.0
      %3720 = vmatprep.subr.mxu0 0.0
      %3721 = vmatpush1.xpose.msra.mxu0 0.0
      %3722 = vmatprep.subr.mxu0 0.0
      %3723 = vmatpush1.xpose.msra.mxu0 0.0
      %3724 = vmatprep.subr.mxu0 0.0
      %3725 = vmatpush1.xpose.msra.mxu0 0.0
      %3726 = vmatprep.subr.mxu0 0.0
      %3727 = vmatpush1.xpose.msra.mxu0 0.0
      %3728 = vmatprep.subr.mxu0 0.0
      %3729 = vmatpush1.xpose.msra.mxu0 0.0
      %3730 = vmatprep.subr.mxu0 0.0
      %3731 = vmatpush1.xpose.msra.mxu0 0.0
      %3732 = vmatprep.subr.mxu0 0.0
      %3733 = vmatpush1.xpose.msra.mxu0 0.0
      %3734 = vmatprep.subr.mxu0 0.0
      %3735 = vmatpush1.xpose.msra.mxu0 0.0
      %3736 = vmatprep.mubr.f32.mxu0 0.0
      %3737 = vmatmul.mubr.f32.gmra.mrb[0].mxu0 %v3668
      %v3738 = vpop.f32.mrb[0].mxu0
      %v3739 = vadd.f32 %v1150, %v3738
      %v3740 = vpop.f32.mrb[0].mxu0
      %3741 = vdwg.mxu0
      %v3742 = vsel %vm1155, %v3207, -inf
      %3743 = vmax.xlane.f32.xlu0 %v3742
      %v3744 = vpop.xlane.xlu0 %3743
      %v3745 = vsel %vm1155, %v3283, -inf
      %3746 = vmax.xlane.f32.xlu0 %v3745
      %v3747 = vpop.xlane.xlu0 %3746
      %v3748 = vsel %vm1155, %v3359, -inf
      %3749 = vmax.xlane.f32.xlu0 %v3748
      %v3750 = vpop.xlane.xlu0 %3749
      %v3751 = vsel %vm1155, %v3435, -inf
      %3752 = vmax.xlane.f32.xlu0 %v3751
      %v3753 = vpop.xlane.xlu0 %3752
      %v3754 = vsel %vm1155, %v3511, -inf
      %3755 = vmax.xlane.f32.xlu0 %v3754
      %v3756 = vpop.xlane.xlu0 %3755
      %v3757 = vsel %vm1155, %v3587, -inf
      %3758 = vmax.xlane.f32.xlu0 %v3757
      %v3759 = vpop.xlane.xlu0 %3758
      %v3760 = vsel %vm1155, %v3663, -inf
      %3761 = vmax.xlane.f32.xlu0 %v3760
      %v3762 = vpop.xlane.xlu0 %3761
      %v3763 = vsel %vm1155, %v3739, -inf
      %3764 = vmax.xlane.f32.xlu0 %v3763
      %v3765 = vpop.xlane.xlu0 %3764
      %v3766 = vsub.f32 %v3207, %v3744
      %v3767 = vsub.f32 %v3283, %v3747
      %v3768 = vsub.f32 %v3359, %v3750
      %v3769 = vsub.f32 %v3435, %v3753
      %v3770 = vsub.f32 %v3511, %v3756
      %v3771 = vsub.f32 %v3587, %v3759
      %v3772 = vsub.f32 %v3663, %v3762
      %v3773 = vsub.f32 %v3739, %v3765
      %v3774 = vmul.f32 %v3766, 1.442695
      %v3775 = vpow.pop %v3774
      %v3776 = vmul.f32 %v3767, 1.442695
      %v3777 = vpow.pop %v3776
      %v3778 = vmul.f32 %v3768, 1.442695
      %v3779 = vpow.pop %v3778
      %v3780 = vmul.f32 %v3769, 1.442695
      %v3781 = vpow.pop %v3780
      %v3782 = vmul.f32 %v3770, 1.442695
      %v3783 = vpow.pop %v3782
      %v3784 = vmul.f32 %v3771, 1.442695
      %v3785 = vpow.pop %v3784
      %v3786 = vmul.f32 %v3772, 1.442695
      %v3787 = vpow.pop %v3786
      %v3788 = vmul.f32 %v3773, 1.442695
      %v3789 = vpow.pop %v3788
      %v3790 = vsel %vm1155, %v3775, 0.0
      %3791 = vadd.xlane.f32.xlu0 %v3790
      %v3792 = vpop.xlane.xlu0 %3791
      %v3793 = vsel %vm1155, %v3777, 0.0
      %3794 = vadd.xlane.f32.xlu0 %v3793
      %v3795 = vpop.xlane.xlu0 %3794
      %v3796 = vsel %vm1155, %v3779, 0.0
      %3797 = vadd.xlane.f32.xlu0 %v3796
      %v3798 = vpop.xlane.xlu0 %3797
      %v3799 = vsel %vm1155, %v3781, 0.0
      %3800 = vadd.xlane.f32.xlu0 %v3799
      %v3801 = vpop.xlane.xlu0 %3800
      %v3802 = vsel %vm1155, %v3783, 0.0
      %3803 = vadd.xlane.f32.xlu0 %v3802
      %v3804 = vpop.xlane.xlu0 %3803
      %v3805 = vsel %vm1155, %v3785, 0.0
      %3806 = vadd.xlane.f32.xlu0 %v3805
      %v3807 = vpop.xlane.xlu0 %3806
      %v3808 = vsel %vm1155, %v3787, 0.0
      %3809 = vadd.xlane.f32.xlu0 %v3808
      %v3810 = vpop.xlane.xlu0 %3809
      %v3811 = vsel %vm1155, %v3789, 0.0
      %3812 = vadd.xlane.f32.xlu0 %v3811
      %v3813 = vpop.xlane.xlu0 %3812
      %v3814 = vrcp.pop %v3792
      %v3815 = vrcp.pop %v3795
      %v3816 = vrcp.pop %v3798
      %v3817 = vrcp.pop %v3801
      %v3818 = vrcp.pop %v3804
      %v3819 = vrcp.pop %v3807
      %v3820 = vrcp.pop %v3810
      %v3821 = vrcp.pop %v3813
      %v3822 = vmul.f32 %v3775, %v3814
      %v3823 = vmul.f32 %v3777, %v3815
      %v3824 = vmul.f32 %v3779, %v3816
      %v3825 = vmul.f32 %v3781, %v3817
      %v3826 = vmul.f32 %v3783, %v3818
      %v3827 = vmul.f32 %v3785, %v3819
      %v3828 = vmul.f32 %v3787, %v3820
      %v3829 = vmul.f32 %v3789, %v3821
      %3830 = vrot.lane.b32.xlu0 %v3090, 64
      %v3831 = vpop.permute.xlu0 %3830
      %v3834 = vsel %vm1155, %v3822, 0
      %3836 = vmatprep.subr.mxu0 0.0
      %3837 = vmatpush1.msra.mxu0 %v3831
      %3838 = vmatprep.subr.mxu0 0.0
      %3839 = vmatpush1.msra.mxu0 0.0
      %3840 = vmatprep.subr.mxu0 0.0
      %3841 = vmatpush1.msra.mxu0 0.0
      %3842 = vmatprep.subr.mxu0 0.0
      %3843 = vmatpush1.msra.mxu0 0.0
      %3844 = vmatprep.subr.mxu0 0.0
      %3845 = vmatpush1.msra.mxu0 0.0
      %3846 = vmatprep.subr.mxu0 0.0
      %3847 = vmatpush1.msra.mxu0 0.0
      %3848 = vmatprep.subr.mxu0 0.0
      %3849 = vmatpush1.msra.mxu0 0.0
      %3850 = vmatprep.subr.mxu0 0.0
      %3851 = vmatpush1.msra.mxu0 0.0
      %3852 = vmatprep.subr.mxu0 0.0
      %3853 = vmatpush1.msra.mxu0 0.0
      %3854 = vmatprep.subr.mxu0 0.0
      %3855 = vmatpush1.msra.mxu0 0.0
      %3856 = vmatprep.subr.mxu0 0.0
      %3857 = vmatpush1.msra.mxu0 0.0
      %3858 = vmatprep.subr.mxu0 0.0
      %3859 = vmatpush1.msra.mxu0 0.0
      %3860 = vmatprep.subr.mxu0 0.0
      %3861 = vmatpush1.msra.mxu0 0.0
      %3862 = vmatprep.subr.mxu0 0.0
      %3863 = vmatpush1.msra.mxu0 0.0
      %3864 = vmatprep.subr.mxu0 0.0
      %3865 = vmatpush1.msra.mxu0 0.0
      %3866 = vmatprep.subr.mxu0 0.0
      %3867 = vmatpush1.msra.mxu0 0.0
      %3868 = vmatprep.subr.mxu0 0.0
      %3869 = vmatpush1.msra.mxu0 0.0
      %3870 = vmatprep.subr.mxu0 0.0
      %3871 = vmatpush1.msra.mxu0 0.0
      %3872 = vmatprep.subr.mxu0 0.0
      %3873 = vmatpush1.msra.mxu0 0.0
      %3874 = vmatprep.subr.mxu0 0.0
      %3875 = vmatpush1.msra.mxu0 0.0
      %3876 = vmatprep.subr.mxu0 0.0
      %3877 = vmatpush1.msra.mxu0 0.0
      %3878 = vmatprep.subr.mxu0 0.0
      %3879 = vmatpush1.msra.mxu0 0.0
      %3880 = vmatprep.subr.mxu0 0.0
      %3881 = vmatpush1.msra.mxu0 0.0
      %3882 = vmatprep.subr.mxu0 0.0
      %3883 = vmatpush1.msra.mxu0 0.0
      %3884 = vmatprep.subr.mxu0 0.0
      %3885 = vmatpush1.msra.mxu0 0.0
      %3886 = vmatprep.subr.mxu0 0.0
      %3887 = vmatpush1.msra.mxu0 0.0
      %3888 = vmatprep.subr.mxu0 0.0
      %3889 = vmatpush1.msra.mxu0 0.0
      %3890 = vmatprep.subr.mxu0 0.0
      %3891 = vmatpush1.msra.mxu0 0.0
      %3892 = vmatprep.subr.mxu0 0.0
      %3893 = vmatpush1.msra.mxu0 0.0
      %3894 = vmatprep.subr.mxu0 0.0
      %3895 = vmatpush1.msra.mxu0 0.0
      %3896 = vmatprep.subr.mxu0 0.0
      %3897 = vmatpush1.msra.mxu0 0.0
      %3898 = vmatprep.subr.mxu0 0.0
      %3899 = vmatpush1.msra.mxu0 0.0
      %3900 = vmatprep.mubr.f32.mxu0 0.0
      %3901 = vmatmul.mubr.f32.gmra.mrb[0].mxu0 %v3834
      %v3902 = vpop.f32.mrb[0].mxu0
      %v3903 = vadd.f32 0.0, %v3902
      %v3904 = vpop.f32.mrb[0].mxu0
      %3905 = vdwg.mxu0
      %3906 = vrot.lane.b32.xlu0 %v3091, 64
      %v3907 = vpop.permute.xlu0 %3906
      %v3910 = vsel %vm1155, %v3823, 0
      %3912 = vmatprep.subr.mxu0 0.0
      %3913 = vmatpush1.msra.mxu0 %v3907
      %3914 = vmatprep.subr.mxu0 0.0
      %3915 = vmatpush1.msra.mxu0 0.0
      %3916 = vmatprep.subr.mxu0 0.0
      %3917 = vmatpush1.msra.mxu0 0.0
      %3918 = vmatprep.subr.mxu0 0.0
      %3919 = vmatpush1.msra.mxu0 0.0
      %3920 = vmatprep.subr.mxu0 0.0
      %3921 = vmatpush1.msra.mxu0 0.0
      %3922 = vmatprep.subr.mxu0 0.0
      %3923 = vmatpush1.msra.mxu0 0.0
      %3924 = vmatprep.subr.mxu0 0.0
      %3925 = vmatpush1.msra.mxu0 0.0
      %3926 = vmatprep.subr.mxu0 0.0
      %3927 = vmatpush1.msra.mxu0 0.0
      %3928 = vmatprep.subr.mxu0 0.0
      %3929 = vmatpush1.msra.mxu0 0.0
      %3930 = vmatprep.subr.mxu0 0.0
      %3931 = vmatpush1.msra.mxu0 0.0
      %3932 = vmatprep.subr.mxu0 0.0
      %3933 = vmatpush1.msra.mxu0 0.0
      %3934 = vmatprep.subr.mxu0 0.0
      %3935 = vmatpush1.msra.mxu0 0.0
      %3936 = vmatprep.subr.mxu0 0.0
      %3937 = vmatpush1.msra.mxu0 0.0
      %3938 = vmatprep.subr.mxu0 0.0
      %3939 = vmatpush1.msra.mxu0 0.0
      %3940 = vmatprep.subr.mxu0 0.0
      %3941 = vmatpush1.msra.mxu0 0.0
      %3942 = vmatprep.subr.mxu0 0.0
      %3943 = vmatpush1.msra.mxu0 0.0
      %3944 = vmatprep.subr.mxu0 0.0
      %3945 = vmatpush1.msra.mxu0 0.0
      %3946 = vmatprep.subr.mxu0 0.0
      %3947 = vmatpush1.msra.mxu0 0.0
      %3948 = vmatprep.subr.mxu0 0.0
      %3949 = vmatpush1.msra.mxu0 0.0
      %3950 = vmatprep.subr.mxu0 0.0
      %3951 = vmatpush1.msra.mxu0 0.0
      %3952 = vmatprep.subr.mxu0 0.0
      %3953 = vmatpush1.msra.mxu0 0.0
      %3954 = vmatprep.subr.mxu0 0.0
      %3955 = vmatpush1.msra.mxu0 0.0
      %3956 = vmatprep.subr.mxu0 0.0
      %3957 = vmatpush1.msra.mxu0 0.0
      %3958 = vmatprep.subr.mxu0 0.0
      %3959 = vmatpush1.msra.mxu0 0.0
      %3960 = vmatprep.subr.mxu0 0.0
      %3961 = vmatpush1.msra.mxu0 0.0
      %3962 = vmatprep.subr.mxu0 0.0
      %3963 = vmatpush1.msra.mxu0 0.0
      %3964 = vmatprep.subr.mxu0 0.0
      %3965 = vmatpush1.msra.mxu0 0.0
      %3966 = vmatprep.subr.mxu0 0.0
      %3967 = vmatpush1.msra.mxu0 0.0
      %3968 = vmatprep.subr.mxu0 0.0
      %3969 = vmatpush1.msra.mxu0 0.0
      %3970 = vmatprep.subr.mxu0 0.0
      %3971 = vmatpush1.msra.mxu0 0.0
      %3972 = vmatprep.subr.mxu0 0.0
      %3973 = vmatpush1.msra.mxu0 0.0
      %3974 = vmatprep.subr.mxu0 0.0
      %3975 = vmatpush1.msra.mxu0 0.0
      %3976 = vmatprep.mubr.f32.mxu0 0.0
      %3977 = vmatmul.mubr.f32.gmra.mrb[0].mxu0 %v3910
      %v3978 = vpop.f32.mrb[0].mxu0
      %v3979 = vadd.f32 0.0, %v3978
      %v3980 = vpop.f32.mrb[0].mxu0
      %3981 = vdwg.mxu0
      %3982 = vrot.lane.b32.xlu0 %v3123, 64
      %v3983 = vpop.permute.xlu0 %3982
      %v3986 = vsel %vm1155, %v3824, 0
      %3988 = vmatprep.subr.mxu0 0.0
      %3989 = vmatpush1.msra.mxu0 %v3983
      %3990 = vmatprep.subr.mxu0 0.0
      %3991 = vmatpush1.msra.mxu0 0.0
      %3992 = vmatprep.subr.mxu0 0.0
      %3993 = vmatpush1.msra.mxu0 0.0
      %3994 = vmatprep.subr.mxu0 0.0
      %3995 = vmatpush1.msra.mxu0 0.0
      %3996 = vmatprep.subr.mxu0 0.0
      %3997 = vmatpush1.msra.mxu0 0.0
      %3998 = vmatprep.subr.mxu0 0.0
      %3999 = vmatpush1.msra.mxu0 0.0
      %4000 = vmatprep.subr.mxu0 0.0
      %4001 = vmatpush1.msra.mxu0 0.0
      %4002 = vmatprep.subr.mxu0 0.0
      %4003 = vmatpush1.msra.mxu0 0.0
      %4004 = vmatprep.subr.mxu0 0.0
      %4005 = vmatpush1.msra.mxu0 0.0
      %4006 = vmatprep.subr.mxu0 0.0
      %4007 = vmatpush1.msra.mxu0 0.0
      %4008 = vmatprep.subr.mxu0 0.0
      %4009 = vmatpush1.msra.mxu0 0.0
      %4010 = vmatprep.subr.mxu0 0.0
      %4011 = vmatpush1.msra.mxu0 0.0
      %4012 = vmatprep.subr.mxu0 0.0
      %4013 = vmatpush1.msra.mxu0 0.0
      %4014 = vmatprep.subr.mxu0 0.0
      %4015 = vmatpush1.msra.mxu0 0.0
      %4016 = vmatprep.subr.mxu0 0.0
      %4017 = vmatpush1.msra.mxu0 0.0
      %4018 = vmatprep.subr.mxu0 0.0
      %4019 = vmatpush1.msra.mxu0 0.0
      %4020 = vmatprep.subr.mxu0 0.0
      %4021 = vmatpush1.msra.mxu0 0.0
      %4022 = vmatprep.subr.mxu0 0.0
      %4023 = vmatpush1.msra.mxu0 0.0
      %4024 = vmatprep.subr.mxu0 0.0
      %4025 = vmatpush1.msra.mxu0 0.0
      %4026 = vmatprep.subr.mxu0 0.0
      %4027 = vmatpush1.msra.mxu0 0.0
      %4028 = vmatprep.subr.mxu0 0.0
      %4029 = vmatpush1.msra.mxu0 0.0
      %4030 = vmatprep.subr.mxu0 0.0
      %4031 = vmatpush1.msra.mxu0 0.0
      %4032 = vmatprep.subr.mxu0 0.0
      %4033 = vmatpush1.msra.mxu0 0.0
      %4034 = vmatprep.subr.mxu0 0.0
      %4035 = vmatpush1.msra.mxu0 0.0
      %4036 = vmatprep.subr.mxu0 0.0
      %4037 = vmatpush1.msra.mxu0 0.0
      %4038 = vmatprep.subr.mxu0 0.0
      %4039 = vmatpush1.msra.mxu0 0.0
      %4040 = vmatprep.subr.mxu0 0.0
      %4041 = vmatpush1.msra.mxu0 0.0
      %4042 = vmatprep.subr.mxu0 0.0
      %4043 = vmatpush1.msra.mxu0 0.0
      %4044 = vmatprep.subr.mxu0 0.0
      %4045 = vmatpush1.msra.mxu0 0.0
      %4046 = vmatprep.subr.mxu0 0.0
      %4047 = vmatpush1.msra.mxu0 0.0
      %4048 = vmatprep.subr.mxu0 0.0
      %4049 = vmatpush1.msra.mxu0 0.0
      %4050 = vmatprep.subr.mxu0 0.0
      %4051 = vmatpush1.msra.mxu0 0.0
      %4052 = vmatprep.mubr.f32.mxu0 0.0
      %4053 = vmatmul.mubr.f32.gmra.mrb[0].mxu0 %v3986
      %v4054 = vpop.f32.mrb[0].mxu0
      %v4055 = vadd.f32 0.0, %v4054
      %v4056 = vpop.f32.mrb[0].mxu0
      %4057 = vdwg.mxu0
      %4058 = vrot.lane.b32.xlu0 %v3125, 64
      %v4059 = vpop.permute.xlu0 %4058
      %v4062 = vsel %vm1155, %v3825, 0
      %4064 = vmatprep.subr.mxu0 0.0
      %4065 = vmatpush1.msra.mxu0 %v4059
      %4066 = vmatprep.subr.mxu0 0.0
      %4067 = vmatpush1.msra.mxu0 0.0
      %4068 = vmatprep.subr.mxu0 0.0
      %4069 = vmatpush1.msra.mxu0 0.0
      %4070 = vmatprep.subr.mxu0 0.0
      %4071 = vmatpush1.msra.mxu0 0.0
      %4072 = vmatprep.subr.mxu0 0.0
      %4073 = vmatpush1.msra.mxu0 0.0
      %4074 = vmatprep.subr.mxu0 0.0
      %4075 = vmatpush1.msra.mxu0 0.0
      %4076 = vmatprep.subr.mxu0 0.0
      %4077 = vmatpush1.msra.mxu0 0.0
      %4078 = vmatprep.subr.mxu0 0.0
      %4079 = vmatpush1.msra.mxu0 0.0
      %4080 = vmatprep.subr.mxu0 0.0
      %4081 = vmatpush1.msra.mxu0 0.0
      %4082 = vmatprep.subr.mxu0 0.0
      %4083 = vmatpush1.msra.mxu0 0.0
      %4084 = vmatprep.subr.mxu0 0.0
      %4085 = vmatpush1.msra.mxu0 0.0
      %4086 = vmatprep.subr.mxu0 0.0
      %4087 = vmatpush1.msra.mxu0 0.0
      %4088 = vmatprep.subr.mxu0 0.0
      %4089 = vmatpush1.msra.mxu0 0.0
      %4090 = vmatprep.subr.mxu0 0.0
      %4091 = vmatpush1.msra.mxu0 0.0
      %4092 = vmatprep.subr.mxu0 0.0
      %4093 = vmatpush1.msra.mxu0 0.0
      %4094 = vmatprep.subr.mxu0 0.0
      %4095 = vmatpush1.msra.mxu0 0.0
      %4096 = vmatprep.subr.mxu0 0.0
      %4097 = vmatpush1.msra.mxu0 0.0
      %4098 = vmatprep.subr.mxu0 0.0
      %4099 = vmatpush1.msra.mxu0 0.0
      %4100 = vmatprep.subr.mxu0 0.0
      %4101 = vmatpush1.msra.mxu0 0.0
      %4102 = vmatprep.subr.mxu0 0.0
      %4103 = vmatpush1.msra.mxu0 0.0
      %4104 = vmatprep.subr.mxu0 0.0
      %4105 = vmatpush1.msra.mxu0 0.0
      %4106 = vmatprep.subr.mxu0 0.0
      %4107 = vmatpush1.msra.mxu0 0.0
      %4108 = vmatprep.subr.mxu0 0.0
      %4109 = vmatpush1.msra.mxu0 0.0
      %4110 = vmatprep.subr.mxu0 0.0
      %4111 = vmatpush1.msra.mxu0 0.0
      %4112 = vmatprep.subr.mxu0 0.0
      %4113 = vmatpush1.msra.mxu0 0.0
      %4114 = vmatprep.subr.mxu0 0.0
      %4115 = vmatpush1.msra.mxu0 0.0
      %4116 = vmatprep.subr.mxu0 0.0
      %4117 = vmatpush1.msra.mxu0 0.0
      %4118 = vmatprep.subr.mxu0 0.0
      %4119 = vmatpush1.msra.mxu0 0.0
      %4120 = vmatprep.subr.mxu0 0.0
      %4121 = vmatpush1.msra.mxu0 0.0
      %4122 = vmatprep.subr.mxu0 0.0
      %4123 = vmatpush1.msra.mxu0 0.0
      %4124 = vmatprep.subr.mxu0 0.0
      %4125 = vmatpush1.msra.mxu0 0.0
      %4126 = vmatprep.subr.mxu0 0.0
      %4127 = vmatpush1.msra.mxu0 0.0
      %4128 = vmatprep.mubr.f32.mxu0 0.0
      %4129 = vmatmul.mubr.f32.gmra.mrb[0].mxu0 %v4062
      %v4130 = vpop.f32.mrb[0].mxu0
      %v4131 = vadd.f32 0.0, %v4130
      %v4132 = vpop.f32.mrb[0].mxu0
      %4133 = vdwg.mxu0
      %4134 = vrot.lane.b32.xlu0 %v3127, 64
      %v4135 = vpop.permute.xlu0 %4134
      %v4138 = vsel %vm1155, %v3826, 0
      %4140 = vmatprep.subr.mxu0 0.0
      %4141 = vmatpush1.msra.mxu0 %v4135
      %4142 = vmatprep.subr.mxu0 0.0
      %4143 = vmatpush1.msra.mxu0 0.0
      %4144 = vmatprep.subr.mxu0 0.0
      %4145 = vmatpush1.msra.mxu0 0.0
      %4146 = vmatprep.subr.mxu0 0.0
      %4147 = vmatpush1.msra.mxu0 0.0
      %4148 = vmatprep.subr.mxu0 0.0
      %4149 = vmatpush1.msra.mxu0 0.0
      %4150 = vmatprep.subr.mxu0 0.0
      %4151 = vmatpush1.msra.mxu0 0.0
      %4152 = vmatprep.subr.mxu0 0.0
      %4153 = vmatpush1.msra.mxu0 0.0
      %4154 = vmatprep.subr.mxu0 0.0
      %4155 = vmatpush1.msra.mxu0 0.0
      %4156 = vmatprep.subr.mxu0 0.0
      %4157 = vmatpush1.msra.mxu0 0.0
      %4158 = vmatprep.subr.mxu0 0.0
      %4159 = vmatpush1.msra.mxu0 0.0
      %4160 = vmatprep.subr.mxu0 0.0
      %4161 = vmatpush1.msra.mxu0 0.0
      %4162 = vmatprep.subr.mxu0 0.0
      %4163 = vmatpush1.msra.mxu0 0.0
      %4164 = vmatprep.subr.mxu0 0.0
      %4165 = vmatpush1.msra.mxu0 0.0
      %4166 = vmatprep.subr.mxu0 0.0
      %4167 = vmatpush1.msra.mxu0 0.0
      %4168 = vmatprep.subr.mxu0 0.0
      %4169 = vmatpush1.msra.mxu0 0.0
      %4170 = vmatprep.subr.mxu0 0.0
      %4171 = vmatpush1.msra.mxu0 0.0
      %4172 = vmatprep.subr.mxu0 0.0
      %4173 = vmatpush1.msra.mxu0 0.0
      %4174 = vmatprep.subr.mxu0 0.0
      %4175 = vmatpush1.msra.mxu0 0.0
      %4176 = vmatprep.subr.mxu0 0.0
      %4177 = vmatpush1.msra.mxu0 0.0
      %4178 = vmatprep.subr.mxu0 0.0
      %4179 = vmatpush1.msra.mxu0 0.0
      %4180 = vmatprep.subr.mxu0 0.0
      %4181 = vmatpush1.msra.mxu0 0.0
      %4182 = vmatprep.subr.mxu0 0.0
      %4183 = vmatpush1.msra.mxu0 0.0
      %4184 = vmatprep.subr.mxu0 0.0
      %4185 = vmatpush1.msra.mxu0 0.0
      %4186 = vmatprep.subr.mxu0 0.0
      %4187 = vmatpush1.msra.mxu0 0.0
      %4188 = vmatprep.subr.mxu0 0.0
      %4189 = vmatpush1.msra.mxu0 0.0
      %4190 = vmatprep.subr.mxu0 0.0
      %4191 = vmatpush1.msra.mxu0 0.0
      %4192 = vmatprep.subr.mxu0 0.0
      %4193 = vmatpush1.msra.mxu0 0.0
      %4194 = vmatprep.subr.mxu0 0.0
      %4195 = vmatpush1.msra.mxu0 0.0
      %4196 = vmatprep.subr.mxu0 0.0
      %4197 = vmatpush1.msra.mxu0 0.0
      %4198 = vmatprep.subr.mxu0 0.0
      %4199 = vmatpush1.msra.mxu0 0.0
      %4200 = vmatprep.subr.mxu0 0.0
      %4201 = vmatpush1.msra.mxu0 0.0
      %4202 = vmatprep.subr.mxu0 0.0
      %4203 = vmatpush1.msra.mxu0 0.0
      %4204 = vmatprep.mubr.f32.mxu0 0.0
      %4205 = vmatmul.mubr.f32.gmra.mrb[0].mxu0 %v4138
      %v4206 = vpop.f32.mrb[0].mxu0
      %v4207 = vadd.f32 0.0, %v4206
      %v4208 = vpop.f32.mrb[0].mxu0
      %4209 = vdwg.mxu0
      %4210 = vrot.lane.b32.xlu0 %v3129, 64
      %v4211 = vpop.permute.xlu0 %4210
      %v4214 = vsel %vm1155, %v3827, 0
      %4216 = vmatprep.subr.mxu0 0.0
      %4217 = vmatpush1.msra.mxu0 %v4211
      %4218 = vmatprep.subr.mxu0 0.0
      %4219 = vmatpush1.msra.mxu0 0.0
      %4220 = vmatprep.subr.mxu0 0.0
      %4221 = vmatpush1.msra.mxu0 0.0
      %4222 = vmatprep.subr.mxu0 0.0
      %4223 = vmatpush1.msra.mxu0 0.0
      %4224 = vmatprep.subr.mxu0 0.0
      %4225 = vmatpush1.msra.mxu0 0.0
      %4226 = vmatprep.subr.mxu0 0.0
      %4227 = vmatpush1.msra.mxu0 0.0
      %4228 = vmatprep.subr.mxu0 0.0
      %4229 = vmatpush1.msra.mxu0 0.0
      %4230 = vmatprep.subr.mxu0 0.0
      %4231 = vmatpush1.msra.mxu0 0.0
      %4232 = vmatprep.subr.mxu0 0.0
      %4233 = vmatpush1.msra.mxu0 0.0
      %4234 = vmatprep.subr.mxu0 0.0
      %4235 = vmatpush1.msra.mxu0 0.0
      %4236 = vmatprep.subr.mxu0 0.0
      %4237 = vmatpush1.msra.mxu0 0.0
      %4238 = vmatprep.subr.mxu0 0.0
      %4239 = vmatpush1.msra.mxu0 0.0
      %4240 = vmatprep.subr.mxu0 0.0
      %4241 = vmatpush1.msra.mxu0 0.0
      %4242 = vmatprep.subr.mxu0 0.0
      %4243 = vmatpush1.msra.mxu0 0.0
      %4244 = vmatprep.subr.mxu0 0.0
      %4245 = vmatpush1.msra.mxu0 0.0
      %4246 = vmatprep.subr.mxu0 0.0
      %4247 = vmatpush1.msra.mxu0 0.0
      %4248 = vmatprep.subr.mxu0 0.0
      %4249 = vmatpush1.msra.mxu0 0.0
      %4250 = vmatprep.subr.mxu0 0.0
      %4251 = vmatpush1.msra.mxu0 0.0
      %4252 = vmatprep.subr.mxu0 0.0
      %4253 = vmatpush1.msra.mxu0 0.0
      %4254 = vmatprep.subr.mxu0 0.0
      %4255 = vmatpush1.msra.mxu0 0.0
      %4256 = vmatprep.subr.mxu0 0.0
      %4257 = vmatpush1.msra.mxu0 0.0
      %4258 = vmatprep.subr.mxu0 0.0
      %4259 = vmatpush1.msra.mxu0 0.0
      %4260 = vmatprep.subr.mxu0 0.0
      %4261 = vmatpush1.msra.mxu0 0.0
      %4262 = vmatprep.subr.mxu0 0.0
      %4263 = vmatpush1.msra.mxu0 0.0
      %4264 = vmatprep.subr.mxu0 0.0
      %4265 = vmatpush1.msra.mxu0 0.0
      %4266 = vmatprep.subr.mxu0 0.0
      %4267 = vmatpush1.msra.mxu0 0.0
      %4268 = vmatprep.subr.mxu0 0.0
      %4269 = vmatpush1.msra.mxu0 0.0
      %4270 = vmatprep.subr.mxu0 0.0
      %4271 = vmatpush1.msra.mxu0 0.0
      %4272 = vmatprep.subr.mxu0 0.0
      %4273 = vmatpush1.msra.mxu0 0.0
      %4274 = vmatprep.subr.mxu0 0.0
      %4275 = vmatpush1.msra.mxu0 0.0
      %4276 = vmatprep.subr.mxu0 0.0
      %4277 = vmatpush1.msra.mxu0 0.0
      %4278 = vmatprep.subr.mxu0 0.0
      %4279 = vmatpush1.msra.mxu0 0.0
      %4280 = vmatprep.mubr.f32.mxu0 0.0
      %4281 = vmatmul.mubr.f32.gmra.mrb[0].mxu0 %v4214
      %v4282 = vpop.f32.mrb[0].mxu0
      %v4283 = vadd.f32 0.0, %v4282
      %v4284 = vpop.f32.mrb[0].mxu0
      %4285 = vdwg.mxu0
      %4286 = vrot.lane.b32.xlu0 %v3131, 64
      %v4287 = vpop.permute.xlu0 %4286
      %v4290 = vsel %vm1155, %v3828, 0
      %4292 = vmatprep.subr.mxu0 0.0
      %4293 = vmatpush1.msra.mxu0 %v4287
      %4294 = vmatprep.subr.mxu0 0.0
      %4295 = vmatpush1.msra.mxu0 0.0
      %4296 = vmatprep.subr.mxu0 0.0
      %4297 = vmatpush1.msra.mxu0 0.0
      %4298 = vmatprep.subr.mxu0 0.0
      %4299 = vmatpush1.msra.mxu0 0.0
      %4300 = vmatprep.subr.mxu0 0.0
      %4301 = vmatpush1.msra.mxu0 0.0
      %4302 = vmatprep.subr.mxu0 0.0
      %4303 = vmatpush1.msra.mxu0 0.0
      %4304 = vmatprep.subr.mxu0 0.0
      %4305 = vmatpush1.msra.mxu0 0.0
      %4306 = vmatprep.subr.mxu0 0.0
      %4307 = vmatpush1.msra.mxu0 0.0
      %4308 = vmatprep.subr.mxu0 0.0
      %4309 = vmatpush1.msra.mxu0 0.0
      %4310 = vmatprep.subr.mxu0 0.0
      %4311 = vmatpush1.msra.mxu0 0.0
      %4312 = vmatprep.subr.mxu0 0.0
      %4313 = vmatpush1.msra.mxu0 0.0
      %4314 = vmatprep.subr.mxu0 0.0
      %4315 = vmatpush1.msra.mxu0 0.0
      %4316 = vmatprep.subr.mxu0 0.0
      %4317 = vmatpush1.msra.mxu0 0.0
      %4318 = vmatprep.subr.mxu0 0.0
      %4319 = vmatpush1.msra.mxu0 0.0
      %4320 = vmatprep.subr.mxu0 0.0
      %4321 = vmatpush1.msra.mxu0 0.0
      %4322 = vmatprep.subr.mxu0 0.0
      %4323 = vmatpush1.msra.mxu0 0.0
      %4324 = vmatprep.subr.mxu0 0.0
      %4325 = vmatpush1.msra.mxu0 0.0
      %4326 = vmatprep.subr.mxu0 0.0
      %4327 = vmatpush1.msra.mxu0 0.0
      %4328 = vmatprep.subr.mxu0 0.0
      %4329 = vmatpush1.msra.mxu0 0.0
      %4330 = vmatprep.subr.mxu0 0.0
      %4331 = vmatpush1.msra.mxu0 0.0
      %4332 = vmatprep.subr.mxu0 0.0
      %4333 = vmatpush1.msra.mxu0 0.0
      %4334 = vmatprep.subr.mxu0 0.0
      %4335 = vmatpush1.msra.mxu0 0.0
      %4336 = vmatprep.subr.mxu0 0.0
      %4337 = vmatpush1.msra.mxu0 0.0
      %4338 = vmatprep.subr.mxu0 0.0
      %4339 = vmatpush1.msra.mxu0 0.0
      %4340 = vmatprep.subr.mxu0 0.0
      %4341 = vmatpush1.msra.mxu0 0.0
      %4342 = vmatprep.subr.mxu0 0.0
      %4343 = vmatpush1.msra.mxu0 0.0
      %4344 = vmatprep.subr.mxu0 0.0
      %4345 = vmatpush1.msra.mxu0 0.0
      %4346 = vmatprep.subr.mxu0 0.0
      %4347 = vmatpush1.msra.mxu0 0.0
      %4348 = vmatprep.subr.mxu0 0.0
      %4349 = vmatpush1.msra.mxu0 0.0
      %4350 = vmatprep.subr.mxu0 0.0
      %4351 = vmatpush1.msra.mxu0 0.0
      %4352 = vmatprep.subr.mxu0 0.0
      %4353 = vmatpush1.msra.mxu0 0.0
      %4354 = vmatprep.subr.mxu0 0.0
      %4355 = vmatpush1.msra.mxu0 0.0
      %4356 = vmatprep.mubr.f32.mxu0 0.0
      %4357 = vmatmul.mubr.f32.gmra.mrb[0].mxu0 %v4290
      %v4358 = vpop.f32.mrb[0].mxu0
      %v4359 = vadd.f32 0.0, %v4358
      %v4360 = vpop.f32.mrb[0].mxu0
      %4361 = vdwg.mxu0
      %4362 = vrot.lane.b32.xlu0 %v3133, 64
      %v4363 = vpop.permute.xlu0 %4362
      %v4366 = vsel %vm1155, %v3829, 0
      %4368 = vmatprep.subr.mxu0 0.0
      %4369 = vmatpush1.msra.mxu0 %v4363
      %4370 = vmatprep.subr.mxu0 0.0
      %4371 = vmatpush1.msra.mxu0 0.0
      %4372 = vmatprep.subr.mxu0 0.0
      %4373 = vmatpush1.msra.mxu0 0.0
      %4374 = vmatprep.subr.mxu0 0.0
      %4375 = vmatpush1.msra.mxu0 0.0
      %4376 = vmatprep.subr.mxu0 0.0
      %4377 = vmatpush1.msra.mxu0 0.0
      %4378 = vmatprep.subr.mxu0 0.0
      %4379 = vmatpush1.msra.mxu0 0.0
      %4380 = vmatprep.subr.mxu0 0.0
      %4381 = vmatpush1.msra.mxu0 0.0
      %4382 = vmatprep.subr.mxu0 0.0
      %4383 = vmatpush1.msra.mxu0 0.0
      %4384 = vmatprep.subr.mxu0 0.0
      %4385 = vmatpush1.msra.mxu0 0.0
      %4386 = vmatprep.subr.mxu0 0.0
      %4387 = vmatpush1.msra.mxu0 0.0
      %4388 = vmatprep.subr.mxu0 0.0
      %4389 = vmatpush1.msra.mxu0 0.0
      %4390 = vmatprep.subr.mxu0 0.0
      %4391 = vmatpush1.msra.mxu0 0.0
      %4392 = vmatprep.subr.mxu0 0.0
      %4393 = vmatpush1.msra.mxu0 0.0
      %4394 = vmatprep.subr.mxu0 0.0
      %4395 = vmatpush1.msra.mxu0 0.0
      %4396 = vmatprep.subr.mxu0 0.0
      %4397 = vmatpush1.msra.mxu0 0.0
      %4398 = vmatprep.subr.mxu0 0.0
      %4399 = vmatpush1.msra.mxu0 0.0
      %4400 = vmatprep.subr.mxu0 0.0
      %4401 = vmatpush1.msra.mxu0 0.0
      %4402 = vmatprep.subr.mxu0 0.0
      %4403 = vmatpush1.msra.mxu0 0.0
      %4404 = vmatprep.subr.mxu0 0.0
      %4405 = vmatpush1.msra.mxu0 0.0
      %4406 = vmatprep.subr.mxu0 0.0
      %4407 = vmatpush1.msra.mxu0 0.0
      %4408 = vmatprep.subr.mxu0 0.0
      %4409 = vmatpush1.msra.mxu0 0.0
      %4410 = vmatprep.subr.mxu0 0.0
      %4411 = vmatpush1.msra.mxu0 0.0
      %4412 = vmatprep.subr.mxu0 0.0
      %4413 = vmatpush1.msra.mxu0 0.0
      %4414 = vmatprep.subr.mxu0 0.0
      %4415 = vmatpush1.msra.mxu0 0.0
      %4416 = vmatprep.subr.mxu0 0.0
      %4417 = vmatpush1.msra.mxu0 0.0
      %4418 = vmatprep.subr.mxu0 0.0
      %4419 = vmatpush1.msra.mxu0 0.0
      %4420 = vmatprep.subr.mxu0 0.0
      %4421 = vmatpush1.msra.mxu0 0.0
      %4422 = vmatprep.subr.mxu0 0.0
      %4423 = vmatpush1.msra.mxu0 0.0
      %4424 = vmatprep.subr.mxu0 0.0
      %4425 = vmatpush1.msra.mxu0 0.0
      %4426 = vmatprep.subr.mxu0 0.0
      %4427 = vmatpush1.msra.mxu0 0.0
      %4428 = vmatprep.subr.mxu0 0.0
      %4429 = vmatpush1.msra.mxu0 0.0
      %4430 = vmatprep.subr.mxu0 0.0
      %4431 = vmatpush1.msra.mxu0 0.0
      %4432 = vmatprep.mubr.f32.mxu0 0.0
      %4433 = vmatmul.mubr.f32.gmra.mrb[0].mxu0 %v4366
      %v4434 = vpop.f32.mrb[0].mxu0
      %v4435 = vadd.f32 0.0, %v4434
      %v4436 = vpop.f32.mrb[0].mxu0
      %4437 = vdwg.mxu0
      %4440 = vrot.lane.b32.xlu0 %v4055, 8
      %v4441 = vpop.permute.xlu0 %4440
      %4442 = vrot.lane.b32.xlu0 %v4131, 8
      %v4443 = vpop.permute.xlu0 %4442
      %4448 = vrot.lane.b32.xlu0 %v4207, 16
      %v4449 = vpop.permute.xlu0 %4448
      %4450 = vrot.lane.b32.xlu0 %v4283, 16
      %v4451 = vpop.permute.xlu0 %4450
      %4456 = vrot.lane.b32.xlu0 %v4359, 24
      %v4457 = vpop.permute.xlu0 %4456
      %4458 = vrot.lane.b32.xlu0 %v4435, 24
      %v4459 = vpop.permute.xlu0 %4458
      %v4462 = vsel %vm1155, %v3903, %v4441
      %v4463 = vsel %vm1155, %v3979, %v4443
      %v4464 = vsel %vm2484, %v4462, %v4449
      %v4465 = vsel %vm2484, %v4463, %v4451
      %v4466 = vsel %vm2487, %v4464, %v4457
      %v4467 = vsel %vm2487, %v4465, %v4459
      %v4468 = vsel %vm948, %v4466, 0.0
      %4469 = vadd.xlane.f32.xlu0 %v4468
      %v4470 = vpop.xlane.xlu0 %4469
      %v4471 = vsel %vm948, %v4467, 0.0
      %4472 = vadd.xlane.f32.xlu0 %v4471
      %v4473 = vpop.xlane.xlu0 %4472
      %v4474 = vmul.f32 %v4470, %v955
      %v4475 = vmul.f32 %v4473, %v955
      %v4476 = vsub.f32 %v4466, %v4474
      %v4477 = vsub.f32 %v4467, %v4475
      %v4478 = vmul.f32 %v4476, %v4476
      %v4479 = vmul.f32 %v4477, %v4477
      %v4480 = vsel %vm948, %v4478, 0.0
      %4481 = vadd.xlane.f32.xlu0 %v4480
      %v4482 = vpop.xlane.xlu0 %4481
      %v4483 = vsel %vm948, %v4479, 0.0
      %4484 = vadd.xlane.f32.xlu0 %v4483
      %v4485 = vpop.xlane.xlu0 %4484
      %v4486 = vmul.f32 %v4482, %v955
      %v4487 = vmul.f32 %v4485, %v955
      %v4488 = vadd.f32 %v4486, 1e-05
      %v4489 = vadd.f32 %v4487, 1e-05
      %v4490 = vrsqrt.pop %v4488
      %v4491 = vrsqrt.pop %v4489
      %v4492 = vmul.f32 %v4476, %v4490
      %v4493 = vmul.f32 %v4477, %v4491
      %v4494 = vlaneseq
      %v4495 = vshrl.u32 %v4494, 7
      %v4496 = vsub.s32 6, %v4495
      %v4497 = vrot.slane %v2936, %v4496
      %v4498 = vmul.f32 %v4492, %v4497
      %v4499 = vmul.f32 %v4493, %v4497
      %v4500 = vlaneseq
      %v4501 = vshrl.u32 %v4500, 7
      %v4502 = vsub.s32 7, %v4501
      %v4503 = vrot.slane %v2936, %v4502
      %v4504 = vadd.f32 %v4498, %v4503
      %v4505 = vadd.f32 %v4499, %v4503
      %s4506 = scalar_lea.vmem %s613, 32
      %v4507 = vld [vmem:[%s4506] sm:$0xff]
      %v4508 = vld [vmem:[%s4506 + $0x8] sm:$0xff]
      %v4509 = vld [vmem:[%s4506 + $0x10] sm:$0xff]
      %v4510 = vld [vmem:[%s4506 + $0x18] sm:$0xff]
      %v4511 = vlaneseq
      %v4512 = vshrl.u32 %v4511, 7
      %v4513 = vsub.s32 5, %v4512
      %v4514 = vrot.slane %v2936, %v4513
      %v4516 = vsel %vm948, %v4504, 0
      %v4519 = vsel %vm948, %v4505, 0
      %4521 = vmatprep.subr.mxu0 0.0
      %4522 = vmatpush1.msra.mxu0 %v4507
      %4523 = vmatprep.subr.mxu0 0.0
      %4524 = vmatpush1.msra.mxu0 %v4508
      %4525 = vmatprep.subr.mxu0 0.0
      %4526 = vmatpush1.msra.mxu0 %v4509
      %4527 = vmatprep.subr.mxu0 0.0
      %4528 = vmatpush1.msra.mxu0 %v4510
      %4529 = vmatprep.subr.mxu0 0.0
      %4530 = vmatpush1.msra.mxu0 0.0
      %4531 = vmatprep.subr.mxu0 0.0
      %4532 = vmatpush1.msra.mxu0 0.0
      %4533 = vmatprep.subr.mxu0 0.0
      %4534 = vmatpush1.msra.mxu0 0.0
      %4535 = vmatprep.subr.mxu0 0.0
      %4536 = vmatpush1.msra.mxu0 0.0
      %4537 = vmatprep.subr.mxu0 0.0
      %4538 = vmatpush1.msra.mxu0 0.0
      %4539 = vmatprep.subr.mxu0 0.0
      %4540 = vmatpush1.msra.mxu0 0.0
      %4541 = vmatprep.subr.mxu0 0.0
      %4542 = vmatpush1.msra.mxu0 0.0
      %4543 = vmatprep.subr.mxu0 0.0
      %4544 = vmatpush1.msra.mxu0 0.0
      %4545 = vmatprep.subr.mxu0 0.0
      %4546 = vmatpush1.msra.mxu0 0.0
      %4547 = vmatprep.subr.mxu0 0.0
      %4548 = vmatpush1.msra.mxu0 0.0
      %4549 = vmatprep.subr.mxu0 0.0
      %4550 = vmatpush1.msra.mxu0 0.0
      %4551 = vmatprep.subr.mxu0 0.0
      %4552 = vmatpush1.msra.mxu0 0.0
      %4553 = vmatprep.subr.mxu0 0.0
      %4554 = vmatpush1.msra.mxu0 0.0
      %4555 = vmatprep.subr.mxu0 0.0
      %4556 = vmatpush1.msra.mxu0 0.0
      %4557 = vmatprep.subr.mxu0 0.0
      %4558 = vmatpush1.msra.mxu0 0.0
      %4559 = vmatprep.subr.mxu0 0.0
      %4560 = vmatpush1.msra.mxu0 0.0
      %4561 = vmatprep.subr.mxu0 0.0
      %4562 = vmatpush1.msra.mxu0 0.0
      %4563 = vmatprep.subr.mxu0 0.0
      %4564 = vmatpush1.msra.mxu0 0.0
      %4565 = vmatprep.subr.mxu0 0.0
      %4566 = vmatpush1.msra.mxu0 0.0
      %4567 = vmatprep.subr.mxu0 0.0
      %4568 = vmatpush1.msra.mxu0 0.0
      %4569 = vmatprep.subr.mxu0 0.0
      %4570 = vmatpush1.msra.mxu0 0.0
      %4571 = vmatprep.subr.mxu0 0.0
      %4572 = vmatpush1.msra.mxu0 0.0
      %4573 = vmatprep.subr.mxu0 0.0
      %4574 = vmatpush1.msra.mxu0 0.0
      %4575 = vmatprep.subr.mxu0 0.0
      %4576 = vmatpush1.msra.mxu0 0.0
      %4577 = vmatprep.subr.mxu0 0.0
      %4578 = vmatpush1.msra.mxu0 0.0
      %4579 = vmatprep.subr.mxu0 0.0
      %4580 = vmatpush1.msra.mxu0 0.0
      %4581 = vmatprep.subr.mxu0 0.0
      %4582 = vmatpush1.msra.mxu0 0.0
      %4583 = vmatprep.subr.mxu0 0.0
      %4584 = vmatpush1.msra.mxu0 0.0
      %4585 = vmatprep.mubr.f32.mxu0 0.0
      %4586 = vmatmul.mubr.f32.gmra.mrb[0].mxu0 %v4516
      %v4587 = vpop.f32.mrb[0].mxu0
      %v4588 = vadd.f32 %v4514, %v4587
      %v4589 = vpop.f32.mrb[0].mxu0
      %4590 = vmatprep.mubr.f32.mxu0 0.0
      %4591 = vmatmul.mubr.f32.gmra.mrb[0].mxu0 %v4519
      %v4592 = vpop.f32.mrb[0].mxu0
      %v4593 = vadd.f32 %v4514, %v4592
      %v4594 = vpop.f32.mrb[0].mxu0
      %4595 = vdwg.mxu0
      %v4596 = vadd.f32 %v2933, %v4588
      %v4597 = vadd.f32 %v2934, %v4593
      %v4598 = vsel %vm948, %v4596, 0.0
      %4599 = vadd.xlane.f32.xlu0 %v4598
      %v4600 = vpop.xlane.xlu0 %4599
      %v4601 = vsel %vm948, %v4597, 0.0
      %4602 = vadd.xlane.f32.xlu0 %v4601
      %v4603 = vpop.xlane.xlu0 %4602
      %v4604 = vmul.f32 %v4600, %v955
      %v4605 = vmul.f32 %v4603, %v955
      %v4606 = vsub.f32 %v4596, %v4604
      %v4607 = vsub.f32 %v4597, %v4605
      %v4608 = vmul.f32 %v4606, %v4606
      %v4609 = vmul.f32 %v4607, %v4607
      %v4610 = vsel %vm948, %v4608, 0.0
      %4611 = vadd.xlane.f32.xlu0 %v4610
      %v4612 = vpop.xlane.xlu0 %4611
      %v4613 = vsel %vm948, %v4609, 0.0
      %4614 = vadd.xlane.f32.xlu0 %v4613
      %v4615 = vpop.xlane.xlu0 %4614
      %v4616 = vmul.f32 %v4612, %v955
      %v4617 = vmul.f32 %v4615, %v955
      %v4618 = vadd.f32 %v4616, 1e-05
      %v4619 = vadd.f32 %v4617, 1e-05
      %v4620 = vrsqrt.pop %v4618
      %v4621 = vrsqrt.pop %v4619
      %v4622 = vmul.f32 %v4606, %v4620
      %v4623 = vmul.f32 %v4607, %v4621
      %v4624 = vlaneseq
      %v4625 = vshrl.u32 %v4624, 7
      %v4626 = vsub.s32 0, %v4625
      %v4627 = vrot.slane %v2937, %v4626
      %v4628 = vmul.f32 %v4622, %v4627
      %v4629 = vmul.f32 %v4623, %v4627
      %v4630 = vlaneseq
      %v4631 = vshrl.u32 %v4630, 7
      %v4632 = vsub.s32 1, %v4631
      %v4633 = vrot.slane %v2937, %v4632
      %v4634 = vadd.f32 %v4628, %v4633
      %v4635 = vadd.f32 %v4629, %v4633
      %s4636 = scalar_lea.vmem %s628, 32
      %v4637 = vld [vmem:[%s4636] sm:$0xff]
      %v4638 = vld [vmem:[%s4636 + $0x8] sm:$0xff]
      %v4639 = vld [vmem:[%s4636 + $0x10] sm:$0xff]
      %v4640 = vld [vmem:[%s4636 + $0x18] sm:$0xff]
      %v4641 = vlaneseq
      %v4642 = vshrl.u32 %v4641, 7
      %v4643 = vsub.s32 0, %v4642
      %v4644 = vrot.slane %v2939, %v4643
      %v4646 = vsel %vm948, %v4634, 0
      %v4649 = vsel %vm948, %v4635, 0
      %4651 = vmatprep.subr.mxu0 0.0
      %4652 = vmatpush1.msra.mxu0 %v4637
      %4653 = vmatprep.subr.mxu0 0.0
      %4654 = vmatpush1.msra.mxu0 %v4638
      %4655 = vmatprep.subr.mxu0 0.0
      %4656 = vmatpush1.msra.mxu0 %v4639
      %4657 = vmatprep.subr.mxu0 0.0
      %4658 = vmatpush1.msra.mxu0 %v4640
      %4659 = vmatprep.subr.mxu0 0.0
      %4660 = vmatpush1.msra.mxu0 0.0
      %4661 = vmatprep.subr.mxu0 0.0
      %4662 = vmatpush1.msra.mxu0 0.0
      %4663 = vmatprep.subr.mxu0 0.0
      %4664 = vmatpush1.msra.mxu0 0.0
      %4665 = vmatprep.subr.mxu0 0.0
      %4666 = vmatpush1.msra.mxu0 0.0
      %4667 = vmatprep.subr.mxu0 0.0
      %4668 = vmatpush1.msra.mxu0 0.0
      %4669 = vmatprep.subr.mxu0 0.0
      %4670 = vmatpush1.msra.mxu0 0.0
      %4671 = vmatprep.subr.mxu0 0.0
      %4672 = vmatpush1.msra.mxu0 0.0
      %4673 = vmatprep.subr.mxu0 0.0
      %4674 = vmatpush1.msra.mxu0 0.0
      %4675 = vmatprep.subr.mxu0 0.0
      %4676 = vmatpush1.msra.mxu0 0.0
      %4677 = vmatprep.subr.mxu0 0.0
      %4678 = vmatpush1.msra.mxu0 0.0
      %4679 = vmatprep.subr.mxu0 0.0
      %4680 = vmatpush1.msra.mxu0 0.0
      %4681 = vmatprep.subr.mxu0 0.0
      %4682 = vmatpush1.msra.mxu0 0.0
      %4683 = vmatprep.subr.mxu0 0.0
      %4684 = vmatpush1.msra.mxu0 0.0
      %4685 = vmatprep.subr.mxu0 0.0
      %4686 = vmatpush1.msra.mxu0 0.0
      %4687 = vmatprep.subr.mxu0 0.0
      %4688 = vmatpush1.msra.mxu0 0.0
      %4689 = vmatprep.subr.mxu0 0.0
      %4690 = vmatpush1.msra.mxu0 0.0
      %4691 = vmatprep.subr.mxu0 0.0
      %4692 = vmatpush1.msra.mxu0 0.0
      %4693 = vmatprep.subr.mxu0 0.0
      %4694 = vmatpush1.msra.mxu0 0.0
      %4695 = vmatprep.subr.mxu0 0.0
      %4696 = vmatpush1.msra.mxu0 0.0
      %4697 = vmatprep.subr.mxu0 0.0
      %4698 = vmatpush1.msra.mxu0 0.0
      %4699 = vmatprep.subr.mxu0 0.0
      %4700 = vmatpush1.msra.mxu0 0.0
      %4701 = vmatprep.subr.mxu0 0.0
      %4702 = vmatpush1.msra.mxu0 0.0
      %4703 = vmatprep.subr.mxu0 0.0
      %4704 = vmatpush1.msra.mxu0 0.0
      %4705 = vmatprep.subr.mxu0 0.0
      %4706 = vmatpush1.msra.mxu0 0.0
      %4707 = vmatprep.subr.mxu0 0.0
      %4708 = vmatpush1.msra.mxu0 0.0
      %4709 = vmatprep.subr.mxu0 0.0
      %4710 = vmatpush1.msra.mxu0 0.0
      %4711 = vmatprep.subr.mxu0 0.0
      %4712 = vmatpush1.msra.mxu0 0.0
      %4713 = vmatprep.subr.mxu0 0.0
      %4714 = vmatpush1.msra.mxu0 0.0
      %4715 = vmatprep.mubr.f32.mxu0 0.0
      %4716 = vmatmul.mubr.f32.gmra.mrb[0].mxu0 %v4646
      %v4717 = vpop.f32.mrb[0].mxu0
      %v4718 = vadd.f32 %v4644, %v4717
      %v4719 = vpop.f32.mrb[0].mxu0
      %4720 = vmatprep.mubr.f32.mxu0 0.0
      %4721 = vmatmul.mubr.f32.gmra.mrb[0].mxu0 %v4649
      %v4722 = vpop.f32.mrb[0].mxu0
      %v4723 = vadd.f32 %v4644, %v4722
      %v4724 = vpop.f32.mrb[0].mxu0
      %4725 = vdwg.mxu0
      %v4726 = vmul.f32 %v4718, 0.5
      %v4727 = vmul.f32 %v4723, 0.5
      %v4728 = vmul.f32 %v4718, 0.70710677
      %v4729 = vmul.f32 %v4723, 0.70710677
      %v4730 = vand.u32 2147483647, %v4728
      %v4731 = vand.u32 2147483647, %v4729
      %v4732 = vmul.f32 %v4730, 0.3275911
      %v4733 = vmul.f32 %v4731, 0.3275911
      %v4734 = vadd.f32 %v4732, 1.0
      %v4735 = vadd.f32 %v4733, 1.0
      %v4736 = vrcp.pop %v4734
      %v4737 = vmul.f32 1.0, %v4736
      %v4738 = vrcp.pop %v4735
      %v4739 = vmul.f32 1.0, %v4738
      %v4740 = vmul.f32 %v4737, 1.0614054
      %v4741 = vmul.f32 %v4739, 1.0614054
      %v4742 = vadd.f32 %v4740, -1.4531521
      %v4743 = vadd.f32 %v4741, -1.4531521
      %v4744 = vmul.f32 %v4742, %v4737
      %v4745 = vmul.f32 %v4743, %v4739
      %v4746 = vadd.f32 %v4744, 1.4214138
      %v4747 = vadd.f32 %v4745, 1.4214138
      %v4748 = vmul.f32 %v4746, %v4737
      %v4749 = vmul.f32 %v4747, %v4739
      %v4750 = vadd.f32 %v4748, -0.28449672
      %v4751 = vadd.f32 %v4749, -0.28449672
      %v4752 = vmul.f32 %v4750, %v4737
      %v4753 = vmul.f32 %v4751, %v4739
      %v4754 = vadd.f32 %v4752, 0.2548296
      %v4755 = vadd.f32 %v4753, 0.2548296
      %v4756 = vmul.f32 %v4754, %v4737
      %v4757 = vmul.f32 %v4755, %v4739
      %v4758 = vmul.f32 %v4730, %v4730
      %v4759 = vmul.f32 %v4731, %v4731
      %v4760 = vsub.f32 0.0, %v4758
      %v4761 = vsub.f32 0.0, %v4759
      %v4762 = vmul.f32 %v4760, 1.442695
      %v4763 = vpow.pop %v4762
      %v4764 = vmul.f32 %v4761, 1.442695
      %v4765 = vpow.pop %v4764
      %v4766 = vmul.f32 %v4756, %v4763
      %v4767 = vmul.f32 %v4757, %v4765
      %v4768 = vsub.f32 1.0, %v4766
      %v4769 = vsub.f32 1.0, %v4767
      %vm4770 = vcmp.ge.f32.partialorder %v4728, 0.0
      %vm4771 = vcmp.ge.f32.partialorder %v4729, 0.0
      %v4772 = vsub.f32 0.0, %v4768
      %v4773 = vsub.f32 0.0, %v4769
      %v4774 = vsel %vm4770, %v4768, %v4772
      %v4775 = vsel %vm4771, %v4769, %v4773
      %v4776 = vadd.f32 %v4774, 1.0
      %v4777 = vadd.f32 %v4775, 1.0
      %v4778 = vmul.f32 %v4726, %v4776
      %v4779 = vmul.f32 %v4727, %v4777
      %v4780 = vsel %vm2800, %v4778, 0.0
      %4781 = vadd.xlane.f32.xlu0 %v4780
      %v4782 = vpop.xlane.xlu0 %4781
      %v4783 = vsel %vm2800, %v4779, 0.0
      %4784 = vadd.xlane.f32.xlu0 %v4783
      %v4785 = vpop.xlane.xlu0 %4784
      %v4786 = vmul.f32 %v4782, %v2807
      %v4787 = vmul.f32 %v4785, %v2807
      %v4788 = vsub.f32 %v4778, %v4786
      %v4789 = vsub.f32 %v4779, %v4787
      %v4790 = vmul.f32 %v4788, %v4788
      %v4791 = vmul.f32 %v4789, %v4789
      %v4792 = vsel %vm2800, %v4790, 0.0
      %4793 = vadd.xlane.f32.xlu0 %v4792
      %v4794 = vpop.xlane.xlu0 %4793
      %v4795 = vsel %vm2800, %v4791, 0.0
      %4796 = vadd.xlane.f32.xlu0 %v4795
      %v4797 = vpop.xlane.xlu0 %4796
      %v4798 = vmul.f32 %v4794, %v2807
      %v4799 = vmul.f32 %v4797, %v2807
      %v4800 = vadd.f32 %v4798, 1e-05
      %v4801 = vadd.f32 %v4799, 1e-05
      %v4802 = vrsqrt.pop %v4800
      %v4803 = vrsqrt.pop %v4801
      %v4804 = vmul.f32 %v4788, %v4802
      %v4805 = vmul.f32 %v4789, %v4803
      %v4806 = vlaneseq
      %v4807 = vshrl.u32 %v4806, 7
      %v4808 = vsub.s32 1, %v4807
      %v4809 = vrot.slane %v2939, %v4808
      %v4810 = vmul.f32 %v4804, %v4809
      %v4811 = vmul.f32 %v4805, %v4809
      %v4812 = vlaneseq
      %v4813 = vshrl.u32 %v4812, 7
      %v4814 = vsub.s32 2, %v4813
      %v4815 = vrot.slane %v2939, %v4814
      %v4816 = vadd.f32 %v4810, %v4815
      %v4817 = vadd.f32 %v4811, %v4815
      %s4818 = scalar_lea.vmem %s633, 64
      %v4819 = vld [vmem:[%s4818] sm:$0xff]
      %v4820 = vld [vmem:[%s4818 + $0x8] sm:$0xff]
      %v4821 = vld [vmem:[%s4818 + $0x10] sm:$0xff]
      %v4822 = vld [vmem:[%s4818 + $0x18] sm:$0xff]
      %v4823 = vld [vmem:[%s4818 + $0x20] sm:$0xff]
      %v4824 = vld [vmem:[%s4818 + $0x28] sm:$0xff]
      %v4825 = vld [vmem:[%s4818 + $0x30] sm:$0xff]
      %v4826 = vld [vmem:[%s4818 + $0x38] sm:$0xff]
      %v4827 = vlaneseq
      %v4828 = vshrl.u32 %v4827, 7
      %v4829 = vsub.s32 2, %v4828
      %v4830 = vrot.slane %v2937, %v4829
      %v4832 = vsel %vm2800, %v4816, 0
      %v4835 = vsel %vm2800, %v4817, 0
      %4837 = vmatprep.subr.mxu0 0.0
      %4838 = vmatpush1.msra.mxu0 %v4819
      %4839 = vmatprep.subr.mxu0 0.0
      %4840 = vmatpush1.msra.mxu0 %v4820
      %4841 = vmatprep.subr.mxu0 0.0
      %4842 = vmatpush1.msra.mxu0 %v4821
      %4843 = vmatprep.subr.mxu0 0.0
      %4844 = vmatpush1.msra.mxu0 %v4822
      %4845 = vmatprep.subr.mxu0 0.0
      %4846 = vmatpush1.msra.mxu0 %v4823
      %4847 = vmatprep.subr.mxu0 0.0
      %4848 = vmatpush1.msra.mxu0 %v4824
      %4849 = vmatprep.subr.mxu0 0.0
      %4850 = vmatpush1.msra.mxu0 %v4825
      %4851 = vmatprep.subr.mxu0 0.0
      %4852 = vmatpush1.msra.mxu0 %v4826
      %4853 = vmatprep.subr.mxu0 0.0
      %4854 = vmatpush1.msra.mxu0 0.0
      %4855 = vmatprep.subr.mxu0 0.0
      %4856 = vmatpush1.msra.mxu0 0.0
      %4857 = vmatprep.subr.mxu0 0.0
      %4858 = vmatpush1.msra.mxu0 0.0
      %4859 = vmatprep.subr.mxu0 0.0
      %4860 = vmatpush1.msra.mxu0 0.0
      %4861 = vmatprep.subr.mxu0 0.0
      %4862 = vmatpush1.msra.mxu0 0.0
      %4863 = vmatprep.subr.mxu0 0.0
      %4864 = vmatpush1.msra.mxu0 0.0
      %4865 = vmatprep.subr.mxu0 0.0
      %4866 = vmatpush1.msra.mxu0 0.0
      %4867 = vmatprep.subr.mxu0 0.0
      %4868 = vmatpush1.msra.mxu0 0.0
      %4869 = vmatprep.subr.mxu0 0.0
      %4870 = vmatpush1.msra.mxu0 0.0
      %4871 = vmatprep.subr.mxu0 0.0
      %4872 = vmatpush1.msra.mxu0 0.0
      %4873 = vmatprep.subr.mxu0 0.0
      %4874 = vmatpush1.msra.mxu0 0.0
      %4875 = vmatprep.subr.mxu0 0.0
      %4876 = vmatpush1.msra.mxu0 0.0
      %4877 = vmatprep.subr.mxu0 0.0
      %4878 = vmatpush1.msra.mxu0 0.0
      %4879 = vmatprep.subr.mxu0 0.0
      %4880 = vmatpush1.msra.mxu0 0.0
      %4881 = vmatprep.subr.mxu0 0.0
      %4882 = vmatpush1.msra.mxu0 0.0
      %4883 = vmatprep.subr.mxu0 0.0
      %4884 = vmatpush1.msra.mxu0 0.0
      %4885 = vmatprep.subr.mxu0 0.0
      %4886 = vmatpush1.msra.mxu0 0.0
      %4887 = vmatprep.subr.mxu0 0.0
      %4888 = vmatpush1.msra.mxu0 0.0
      %4889 = vmatprep.subr.mxu0 0.0
      %4890 = vmatpush1.msra.mxu0 0.0
      %4891 = vmatprep.subr.mxu0 0.0
      %4892 = vmatpush1.msra.mxu0 0.0
      %4893 = vmatprep.subr.mxu0 0.0
      %4894 = vmatpush1.msra.mxu0 0.0
      %4895 = vmatprep.subr.mxu0 0.0
      %4896 = vmatpush1.msra.mxu0 0.0
      %4897 = vmatprep.subr.mxu0 0.0
      %4898 = vmatpush1.msra.mxu0 0.0
      %4899 = vmatprep.subr.mxu0 0.0
      %4900 = vmatpush1.msra.mxu0 0.0
      %4901 = vmatprep.mubr.f32.mxu0 0.0
      %4902 = vmatmul.mubr.f32.gmra.mrb[0].mxu0 %v4832
      %v4903 = vpop.f32.mrb[0].mxu0
      %v4904 = vadd.f32 %v4830, %v4903
      %v4905 = vpop.f32.mrb[0].mxu0
      %4906 = vmatprep.mubr.f32.mxu0 0.0
      %4907 = vmatmul.mubr.f32.gmra.mrb[0].mxu0 %v4835
      %v4908 = vpop.f32.mrb[0].mxu0
      %v4909 = vadd.f32 %v4830, %v4908
      %v4910 = vpop.f32.mrb[0].mxu0
      %4911 = vdwg.mxu0
      %v4912 = vadd.f32 %v4596, %v4904
      %v4913 = vadd.f32 %v4597, %v4909
      %v4914 = vld [vmem:[%s637] sm:$0x3]
      %v4915 = vsel %vm948, %v4912, 0.0
      %4916 = vadd.xlane.f32.xlu0 %v4915
      %v4917 = vpop.xlane.xlu0 %4916
      %v4918 = vsel %vm948, %v4913, 0.0
      %4919 = vadd.xlane.f32.xlu0 %v4918
      %v4920 = vpop.xlane.xlu0 %4919
      %v4921 = vmul.f32 %v4917, %v955
      %v4922 = vmul.f32 %v4920, %v955
      %v4923 = vsub.f32 %v4912, %v4921
      %v4924 = vsub.f32 %v4913, %v4922
      %v4925 = vmul.f32 %v4923, %v4923
      %v4926 = vmul.f32 %v4924, %v4924
      %v4927 = vsel %vm948, %v4925, 0.0
      %4928 = vadd.xlane.f32.xlu0 %v4927
      %v4929 = vpop.xlane.xlu0 %4928
      %v4930 = vsel %vm948, %v4926, 0.0
      %4931 = vadd.xlane.f32.xlu0 %v4930
      %v4932 = vpop.xlane.xlu0 %4931
      %v4933 = vmul.f32 %v4929, %v955
      %v4934 = vmul.f32 %v4932, %v955
      %v4935 = vadd.f32 %v4933, 1e-05
      %v4936 = vadd.f32 %v4934, 1e-05
      %v4937 = vrsqrt.pop %v4935
      %v4938 = vrsqrt.pop %v4936
      %v4939 = vmul.f32 %v4923, %v4937
      %v4940 = vmul.f32 %v4924, %v4938
      %v4941 = vlaneseq
      %v4942 = vshrl.u32 %v4941, 7
      %v4943 = vsub.s32 0, %v4942
      %v4944 = vrot.slane %v4914, %v4943
      %v4945 = vmul.f32 %v4939, %v4944
      %v4946 = vmul.f32 %v4940, %v4944
      %v4947 = vlaneseq
      %v4948 = vshrl.u32 %v4947, 7
      %v4949 = vsub.s32 1, %v4948
      %v4950 = vrot.slane %v4914, %v4949
      %v4951 = vadd.f32 %v4945, %v4950
      %v4952 = vadd.f32 %v4946, %v4950
      %v4953 = vld [vmem:[%s642] sm:$0xff]
      %v4954 = vld [vmem:[%s642 + $0x8] sm:$0xff]
      %v4955 = vld [vmem:[%s642 + $0x10] sm:$0xff]
      %v4956 = vld [vmem:[%s642 + $0x18] sm:$0xff]
      %v4959 = vrot.slane %v4952, 7
      %vm4960 = vcmask 1041409
      %v4961 = vsel %vm4960, %v4959, %v4951
      %v4962 = vsel %vm948, %v4961, 0
      %4964 = vmatprep.subr.mxu0 0.0
      %4965 = vmatpush1.msra.mxu0 %v4953
      %4966 = vmatprep.subr.mxu0 0.0
      %4967 = vmatpush1.msra.mxu0 %v4954
      %4968 = vmatprep.subr.mxu0 0.0
      %4969 = vmatpush1.msra.mxu0 %v4955
      %4970 = vmatprep.subr.mxu0 0.0
      %4971 = vmatpush1.msra.mxu0 %v4956
      %4972 = vmatprep.subr.mxu0 0.0
      %4973 = vmatpush1.msra.mxu0 0.0
      %4974 = vmatprep.subr.mxu0 0.0
      %4975 = vmatpush1.msra.mxu0 0.0
      %4976 = vmatprep.subr.mxu0 0.0
      %4977 = vmatpush1.msra.mxu0 0.0
      %4978 = vmatprep.subr.mxu0 0.0
      %4979 = vmatpush1.msra.mxu0 0.0
      %4980 = vmatprep.subr.mxu0 0.0
      %4981 = vmatpush1.msra.mxu0 0.0
      %4982 = vmatprep.subr.mxu0 0.0
      %4983 = vmatpush1.msra.mxu0 0.0
      %4984 = vmatprep.subr.mxu0 0.0
      %4985 = vmatpush1.msra.mxu0 0.0
      %4986 = vmatprep.subr.mxu0 0.0
      %4987 = vmatpush1.msra.mxu0 0.0
      %4988 = vmatprep.subr.mxu0 0.0
      %4989 = vmatpush1.msra.mxu0 0.0
      %4990 = vmatprep.subr.mxu0 0.0
      %4991 = vmatpush1.msra.mxu0 0.0
      %4992 = vmatprep.subr.mxu0 0.0
      %4993 = vmatpush1.msra.mxu0 0.0
      %4994 = vmatprep.subr.mxu0 0.0
      %4995 = vmatpush1.msra.mxu0 0.0
      %4996 = vmatprep.subr.mxu0 0.0
      %4997 = vmatpush1.msra.mxu0 0.0
      %4998 = vmatprep.subr.mxu0 0.0
      %4999 = vmatpush1.msra.mxu0 0.0
      %5000 = vmatprep.subr.mxu0 0.0
      %5001 = vmatpush1.msra.mxu0 0.0
      %5002 = vmatprep.subr.mxu0 0.0
      %5003 = vmatpush1.msra.mxu0 0.0
      %5004 = vmatprep.subr.mxu0 0.0
      %5005 = vmatpush1.msra.mxu0 0.0
      %5006 = vmatprep.subr.mxu0 0.0
      %5007 = vmatpush1.msra.mxu0 0.0
      %5008 = vmatprep.subr.mxu0 0.0
      %5009 = vmatpush1.msra.mxu0 0.0
      %5010 = vmatprep.subr.mxu0 0.0
      %5011 = vmatpush1.msra.mxu0 0.0
      %5012 = vmatprep.subr.mxu0 0.0
      %5013 = vmatpush1.msra.mxu0 0.0
      %5014 = vmatprep.subr.mxu0 0.0
      %5015 = vmatpush1.msra.mxu0 0.0
      %5016 = vmatprep.subr.mxu0 0.0
      %5017 = vmatpush1.msra.mxu0 0.0
      %5018 = vmatprep.subr.mxu0 0.0
      %5019 = vmatpush1.msra.mxu0 0.0
      %5020 = vmatprep.subr.mxu0 0.0
      %5021 = vmatpush1.msra.mxu0 0.0
      %5022 = vmatprep.subr.mxu0 0.0
      %5023 = vmatpush1.msra.mxu0 0.0
      %5024 = vmatprep.subr.mxu0 0.0
      %5025 = vmatpush1.msra.mxu0 0.0
      %5026 = vmatprep.subr.mxu0 0.0
      %5027 = vmatpush1.msra.mxu0 0.0
      %5028 = vmatprep.mubr.f32.mxu0 0.0
      %5029 = vmatmul.mubr.f32.gmra.mrb[0].mxu0 %v4962
      %v5030 = vpop.f32.mrb[0].mxu0
      %v5031 = vadd.f32 0.0, %v5030
      %v5032 = vpop.f32.mrb[0].mxu0
      %5033 = vdwg.mxu0
      %v5034 = vmul.f32 %v5031, %v5031
      %vm5035 = vcmask 254976
      %v5036 = vsel %vm5035, %v5034, 0.0
      %5037 = vadd.xlane.f32.xlu0 %v5036
      %v5038 = vpop.xlane.xlu0 %5037
      %v5039 = vmax.f32 %v5038, 1e-24
      %v5040 = vrsqrt.pop %v5039
      %v5041 = vmul.f32 %v5031, %v5040
      %5042 = vst.msk [vmem:[%s646] sm:$0x3] %vm5035, %v5041
      %p5043 = scmp.lt.s32.totalorder %s26, 1
      %s5044 = scalar_select %p5043, %s26, 1
      %s5045 = smul.addr %s5044, 2
      %s5046 = scalar_lea.vmem %s15, %s5045
      // Predicated region
      $region89: #{beit3_retrieval_forward.1} parent=79 // pred_check
        %p5047 = pneg %p404
      $region90: #{beit3_retrieval_forward.1} parent=79 // pred_check_branch
        %5049 = sbr.rel (%p5047) target = $region92
      $region91: #{beit3_retrieval_forward.1} parent=79 // pred_region
        _
      $region92: #{beit3_retrieval_forward.1} parent=79 // pred_fallthru
        _
    $region80: #{beit3_retrieval_forward.1} parent=5 // pred_fallthru
      _
    %p5050 = scmp.le.s32.totalorder 2, %s21
    // Predicated region
    $region93: #{beit3_retrieval_forward.1} parent=5 // pred_check
      %p5051 = pneg %p5050
    $region94: #{beit3_retrieval_forward.1} parent=5 // pred_check_branch
      %5053 = sbr.rel (%p5051) target = $region96
    $region95: #{beit3_retrieval_forward.1} parent=5 // pred_region
      %s5054 = ssub.s32 %s21, 2
      // Predicated region
      $region97: #{beit3_retrieval_forward.1} parent=95 // pred_check
        %p5055 = pneg %p410
      $region98: #{beit3_retrieval_forward.1} parent=95 // pred_check_branch
        %5057 = sbr.rel (%p5055) target = $region100
      $region99: #{beit3_retrieval_forward.1} parent=95 // pred_region
        %p5058 = scmp.lt.s32.totalorder %s27, 1
        %s5059 = scalar_select %p5058, %s27, 1
        %s5060 = smul.addr %s5059, 2
        %s5061 = scalar_lea.vmem %s15, %s5060
      $region100: #{beit3_retrieval_forward.1} parent=95 // pred_fallthru
        _
    $region96: #{beit3_retrieval_forward.1} parent=5 // pred_fallthru
      _
  $region6: #{beit3_retrieval_forward.1} parent=0 // loop_footer
    %s25 = sadd.s32 1, %s21
  $region7: #{beit3_retrieval_forward.1} parent=0 // loop_footer_branch
    %20 = sbr.rel target = $region3
  $region8: #{beit3_retrieval_forward.1} parent=0 // loop_exit
    _

</llo_original>
